<compile_context>
chip_gen: v6e
topology: v6e:2x2x1
jax: 0.10.0
libtpu: 0.0.40
codegen_flags: <defaults>
</compile_context>

<pallas_src>
import functools

import jax
import jax.numpy as jnp
from jax.experimental import pallas as pl
from jax.experimental.pallas import tpu as pltpu

# --- constants that are module-level globals in the original file -----------
VOCAB_LEN = 50
VOCAB_PAD = 128          # pad vocab to the 128-lane width for the BoW matmul
MAX_BOXES = 8
MAX_WORDS = 8
CONTEXT_LEN = 3          # self.context_len
ANSWER_LEN = 30          # asserted `in_answers.size(2) == 30`
NBOX_USED = 3            # box_lstmed[:, 2, :] only depends on boxes/steps 0..2
PAD_IDX = VOCAB_LEN      # sentinel index; emb rows [VOCAB_LEN, VOCAB_PAD) are zero

CTX_SLOTS = CONTEXT_LEN * NBOX_USED * MAX_WORDS     # 72
ANS_SLOTS = CONTEXT_LEN * ANSWER_LEN                # 90
NSLOT = 256                                         # lane-dense index slab width


# -----------------------------------------------------------------------------
# Pallas kernel
# -----------------------------------------------------------------------------
def _dot(a, b, precision=None):
    """MXU dot with f32 accumulation. precision=None (default) = 1 MXU pass."""
    return jnp.dot(a, b, preferred_element_type=jnp.float32, precision=precision)


def _lstm_step(xgates, h, c, whh_t, D, precision):
    """One LSTM step; input projection already folded into xgates.
    Gate column order is [i, f, o, g] so the sigmoids share one slice."""
    gates = xgates + _dot(h.astype(whh_t.dtype), whh_t, precision)   # (rows, 4D) f32
    sg = jax.nn.sigmoid(gates[:, :3 * D])
    i = sg[:, 0 * D:1 * D]
    f = sg[:, 1 * D:2 * D]
    o = sg[:, 2 * D:3 * D]
    g = jnp.tanh(gates[:, 3 * D:4 * D])
    c_new = f * c + i * g
    h_new = o * jnp.tanh(c_new)
    return h_new, c_new


def text_only_kernel(slab_ref, emb_ref, embw1_ref, whh1_ref, b1_ref,
                     wih2_ref, whh2_ref, b2_ref, preds_ref, *, BT, D, precision):
    f32 = jnp.float32
    slab = slab_ref[...]                 # (BT, NSLOT) int32, lane-dense indices
    emb = emb_ref[...]                   # (VOCAB_PAD, D)
    embw1 = embw1_ref[...]               # (VOCAB_PAD, 4D) = emb_pad @ Wih1^T (fused)
    whh1 = whh1_ref[...]                 # (D, 4D)
    b1 = b1_ref[...].astype(f32)         # (1, 4D)
    wih2 = wih2_ref[...]                 # (D, 4D)
    whh2 = whh2_ref[...]                 # (D, 4D)
    b2 = b2_ref[...].astype(f32)         # (1, 4D)
    wd = emb.dtype

    # Hoisted lane iota (JAX does not CSE broadcast_in_dim).
    vocab_iota = jax.lax.broadcasted_iota(jnp.int32, (BT, VOCAB_PAD), 1)

    def bow_counts(cols):
        """counts[r, v] = #{w in cols : slab[r, w] == v}.  Masked slots hold
        PAD_IDX whose embedding row is zero, so no mask multiplies needed."""
        counts = jnp.zeros((BT, VOCAB_PAD), f32)
        for col in cols:
            counts = counts + (slab[:, col:col + 1] == vocab_iota).astype(f32)
        return counts

    # ---- LSTM #1 over boxes (only the 3 steps feeding box_lstmed[:, 2, :]) ---
    # Row space: (panel, batch) stacked on sublanes -> (3*BT, .)
    h1 = jnp.zeros((CONTEXT_LEN * BT, D), f32)
    c1 = jnp.zeros((CONTEXT_LEN * BT, D), f32)
    for bx in range(NBOX_USED):
        counts_bx = jnp.concatenate(
            [bow_counts(range((p * NBOX_USED + bx) * MAX_WORDS,
                              (p * NBOX_USED + bx) * MAX_WORDS + MAX_WORDS))
             for p in range(CONTEXT_LEN)], axis=0)                  # (3BT, 128)
        # Fused embedding + hoisted input projection: one dense 128x4D matmul.
        xg = _dot(counts_bx.astype(wd), embw1, precision) + b1      # (3BT, 4D)
        h1, c1 = _lstm_step(xg, h1, c1, whh1, D, precision)
    box_out2 = h1                                                   # box_lstmed[:, 2, :]

    # ---- LSTM #2 over the 3 context panels -----------------------------------
    xg2 = _dot(box_out2.astype(wd), wih2, precision) + b2           # hoisted input proj
    h2 = jnp.zeros((BT, D), f32)
    c2 = jnp.zeros((BT, D), f32)
    for p in range(CONTEXT_LEN):
        h2, c2 = _lstm_step(xg2[p * BT:(p + 1) * BT, :], h2, c2, whh2, D, precision)
    ctx_final = h2                                                  # context_box_final[:, 2, :]

    # ---- answers: BoW matmul, dot scores, softmax -----------------------------
    score_cols = []
    for p in range(CONTEXT_LEN):
        counts_a = bow_counts(range(CTX_SLOTS + p * ANSWER_LEN,
                                    CTX_SLOTS + (p + 1) * ANSWER_LEN))
        arep = _dot(counts_a.astype(wd), emb, precision)            # (BT, D)
        score_cols.append(jnp.sum(ctx_final * arep, axis=1, keepdims=True))
    scores = jnp.concatenate(score_cols, axis=1)                    # (BT, 3)
    preds_ref[...] = jax.nn.softmax(scores, axis=1)                 # tiny store; not hot


# -----------------------------------------------------------------------------
# Wrapper: mask folding, lane-dense index slab, weight prep, pallas_call
# -----------------------------------------------------------------------------
def _reorder_gate_cols(w_t, D):
    """Columns ordered [i, f, g, o] (PyTorch) -> [i, f, o, g]."""
    return jnp.concatenate([w_t[:, :2 * D], w_t[:, 3 * D:4 * D], w_t[:, 2 * D:3 * D]],
                           axis=1)


def text_only_forward(params, inputs, *, B, D, batch_tile=None,
                      use_bf16=True, matmul_precision=None):
    (_, _, in_bb_mask, in_context, in_c_mask,
     _, _, in_answers, in_a_mask) = inputs

    if batch_tile is None:
        # v7x has 2 TensorCores -> keep the parallel grid at length 2 when the
        # tile stays (8,128)-aligned; otherwise one big tile (grid=1) is best
        # on v5e/v6e and costs at most one ~0.6us extra step on v7x.
        batch_tile = B // 2 if (B % 16 == 0) else B
    BT = batch_tile
    assert B % BT == 0, "batch must divide evenly into batch tiles"

    # --- fold masks into indices (masks are binary 0/1 in this model) --------
    # TODO(synk): if masks were ever fractional, fold them as weights instead.
    ctx_idx = in_context[:, :, :NBOX_USED, :].astype(jnp.int32)            # (B,3,3,8)
    keep_c = (in_c_mask[:, :, :NBOX_USED, :] > 0) & \
             (in_bb_mask[:, :, :NBOX_USED, None] > 0)
    ctx_idx = jnp.where(keep_c, ctx_idx, PAD_IDX)
    ans_idx = jnp.where(in_a_mask > 0, in_answers.astype(jnp.int32), PAD_IDX)  # (B,3,30)

    # One lane-dense int32 slab per sample: [72 ctx | 90 ans | pad] -> 256 lanes.
    pad = jnp.full((B, NSLOT - CTX_SLOTS - ANS_SLOTS), PAD_IDX, jnp.int32)
    slab = jnp.concatenate(
        [ctx_idx.reshape(B, CTX_SLOTS), ans_idx.reshape(B, ANS_SLOTS), pad], axis=1)

    wdt = jnp.bfloat16 if use_bf16 else jnp.float32
    HI = jax.lax.Precision.HIGHEST

    # Vocab-padded embedding table (50 -> 128 rows); rows >= VOCAB_LEN are zero
    # (the PAD_IDX sentinel relies on this invariant).
    emb_p = jnp.zeros((VOCAB_PAD, D), jnp.float32).at[:VOCAB_LEN].set(params["emb"])
    wih1_t = _reorder_gate_cols(params["wih1"].T, D)                       # (D, 4D) f32
    whh1_t = _reorder_gate_cols(params["whh1"].T, D).astype(wdt)
    b1 = _reorder_gate_cols((params["bih1"] + params["bhh1"]).reshape(1, 4 * D), D)
    wih2_t = _reorder_gate_cols(params["wih2"].T, D).astype(wdt)
    whh2_t = _reorder_gate_cols(params["whh2"].T, D).astype(wdt)
    b2 = _reorder_gate_cols((params["bih2"] + params["bhh2"]).reshape(1, 4 * D), D)
    b1 = b1.astype(jnp.float32)
    b2 = b2.astype(jnp.float32)

    # Fuse embedding into the LSTM-1 input projection (one-time tiny matmul,
    # done at HIGHEST precision so the fusion itself adds no error).
    emb_wih1 = jnp.dot(emb_p, wih1_t, precision=HI).astype(wdt)            # (128, 4D)
    emb_p = emb_p.astype(wdt)

    kernel = functools.partial(text_only_kernel, BT=BT, D=D,
                               precision=matmul_precision)

    def resident(arr):
        return pl.BlockSpec(arr.shape, lambda b: (0, 0))   # stays VMEM-resident

    preds = pl.pallas_call(
        kernel,
        out_shape=jax.ShapeDtypeStruct((B, CONTEXT_LEN), jnp.float32),
        grid=(B // BT,),
        in_specs=[
            pl.BlockSpec((BT, NSLOT), lambda b: (b, 0)),    # index slab (batched)
            resident(emb_p), resident(emb_wih1), resident(whh1_t), resident(b1),
            resident(wih2_t), resident(whh2_t), resident(b2),
        ],
        out_specs=pl.BlockSpec((BT, CONTEXT_LEN), lambda b: (b, 0)),
        compiler_params=pltpu.CompilerParams(
            dimension_semantics=("parallel",),              # shards grid on v7x's 2 TCs
            vmem_limit_bytes=32 * 1024 * 1024),
    )(slab, emb_p, emb_wih1, whh1_t, b1, wih2_t, whh2_t, b2)
    return preds


# -----------------------------------------------------------------------------
# Pure-JAX reference (mirrors the PyTorch forward, full 8-box / 8-step LSTM)
# -----------------------------------------------------------------------------
def reference_forward(params, inputs, *, B, D):
    (_, _, in_bb_mask, in_context, in_c_mask,
     _, _, in_answers, in_a_mask) = inputs
    emb = params["emb"]
    HI = jax.lax.Precision.HIGHEST

    def lstm(x_seq, wih, whh, bih, bhh):
        n, T, _ = x_seq.shape
        h = jnp.zeros((n, D), jnp.float32)
        c = jnp.zeros((n, D), jnp.float32)
        outs = []
        for t in range(T):
            gates = (jnp.dot(x_seq[:, t, :], wih.T, precision=HI) + bih
                     + jnp.dot(h, whh.T, precision=HI) + bhh)
            i = jax.nn.sigmoid(gates[:, 0 * D:1 * D])
            f = jax.nn.sigmoid(gates[:, 1 * D:2 * D])
            g = jnp.tanh(gates[:, 2 * D:3 * D])
            o = jax.nn.sigmoid(gates[:, 3 * D:4 * D])
            c = f * c + i * g
            h = o * jnp.tanh(c)
            outs.append(h)
        return jnp.stack(outs, axis=1)

    ctx_emb = jnp.take(emb, in_context.astype(jnp.int32), axis=0)      # (B,3,MB,MW,D)
    context_box = jnp.sum(ctx_emb * in_c_mask[..., None], axis=3)      # (B,3,MB,D)
    context_box = context_box.reshape(-1, MAX_BOXES, D)
    masked = context_box * in_bb_mask.reshape(-1, MAX_BOXES)[..., None]
    box_lstmed = lstm(masked, params["wih1"], params["whh1"],
                      params["bih1"], params["bhh1"])[:, 2, :]
    box_lstmed = box_lstmed.reshape(-1, CONTEXT_LEN, D)
    ctx_final = lstm(box_lstmed, params["wih2"], params["whh2"],
                     params["bih2"], params["bhh2"])[:, 2, :]

    ans_emb = jnp.take(emb, in_answers.astype(jnp.int32), axis=0)      # (B,3,30,D)
    answers_rep = jnp.sum(ans_emb * in_a_mask[..., None], axis=2)      # (B,3,D)
    scores = jnp.sum(ctx_final[:, None, :] * answers_rep, axis=2)
    return jax.nn.softmax(scores, axis=1)


# -----------------------------------------------------------------------------
if __name__ == "__main__":
    B = 16                 # exercises the 2-step parallel grid (BT = B // 2 = 8)
    D_WORD = 32            # d_word == d_hidden
    key = jax.random.PRNGKey(0)
    ks = jax.random.split(key, 16)
    s = 1.0 / jnp.sqrt(jnp.float32(D_WORD))

    params = {
        "emb":  jax.random.normal(ks[0], (VOCAB_LEN, D_WORD), jnp.float32) * 0.1,
        "wih1": jax.random.uniform(ks[1], (4 * D_WORD, D_WORD), jnp.float32, -s, s),
        "whh1": jax.random.uniform(ks[2], (4 * D_WORD, D_WORD), jnp.float32, -s, s),
        "bih1": jax.random.uniform(ks[3], (4 * D_WORD,), jnp.float32, -s, s),
        "bhh1": jax.random.uniform(ks[4], (4 * D_WORD,), jnp.float32, -s, s),
        "wih2": jax.random.uniform(ks[5], (4 * D_WORD, D_WORD), jnp.float32, -s, s),
        "whh2": jax.random.uniform(ks[6], (4 * D_WORD, D_WORD), jnp.float32, -s, s),
        "bih2": jax.random.uniform(ks[7], (4 * D_WORD,), jnp.float32, -s, s),
        "bhh2": jax.random.uniform(ks[8], (4 * D_WORD,), jnp.float32, -s, s),
    }

    # Inputs mirroring the 9-tuple of the PyTorch forward (fc7 / bb unused).
    in_context_fc7 = jnp.zeros((B, CONTEXT_LEN, 4096), jnp.float32)
    in_context_bb = jnp.zeros((B, CONTEXT_LEN, MAX_BOXES, 4), jnp.float32)
    in_bb_mask = (jax.random.uniform(ks[9], (B, CONTEXT_LEN, MAX_BOXES)) > 0.3
                  ).astype(jnp.float32)
    in_context = jax.random.randint(ks[10], (B, CONTEXT_LEN, MAX_BOXES, MAX_WORDS),
                                    0, VOCAB_LEN, jnp.int32)
    in_c_mask = (jax.random.uniform(ks[11], (B, CONTEXT_LEN, MAX_BOXES, MAX_WORDS))
                 > 0.3).astype(jnp.float32)
    in_answer_fc7 = jnp.zeros((B, CONTEXT_LEN, 4096), jnp.float32)
    in_answer_bb = jnp.zeros((B, CONTEXT_LEN, 4), jnp.float32)
    in_answers = jax.random.randint(ks[12], (B, CONTEXT_LEN, ANSWER_LEN),
                                    0, VOCAB_LEN, jnp.int32)
    in_a_mask = (jax.random.uniform(ks[13], (B, CONTEXT_LEN, ANSWER_LEN)) > 0.3
                 ).astype(jnp.float32)

    inputs = (in_context_fc7, in_context_bb, in_bb_mask, in_context, in_c_mask,
              in_answer_fc7, in_answer_bb, in_answers, in_a_mask)

    ref = reference_forward(params, inputs, B=B, D=D_WORD)

    # Production (fast) path: bf16 weights/emb, default matmul precision.
    preds_fast = jax.block_until_ready(
        text_only_forward(params, inputs, B=B, D=D_WORD))
    assert preds_fast.shape == (B, CONTEXT_LEN)
    assert jnp.allclose(preds_fast, ref, atol=5e-2), (preds_fast, ref)
    assert jnp.allclose(jnp.sum(preds_fast, axis=1), 1.0, atol=1e-2)

    # Accuracy-check path: f32 weights + HIGHEST matmul precision (test-only).
    preds_acc = jax.block_until_ready(
        text_only_forward(params, inputs, B=B, D=D_WORD, use_bf16=False,
                          matmul_precision=jax.lax.Precision.HIGHEST))
    assert jnp.allclose(preds_acc, ref, atol=1e-3, rtol=1e-3), (preds_acc, ref)
    assert jnp.allclose(jnp.sum(preds_acc, axis=1), 1.0, atol=1e-5)

    print("KERNEL_OK")
</pallas_src>

<mosaic_0001>
module attributes {stable_mosaic.version = 11 : i64} {
  func.func @text_only_kernel(%arg0: i32, %arg1: memref<8x256xi32, #tpu.memory_space<vmem>>, %arg2: memref<128x32xbf16, #tpu.memory_space<vmem>>, %arg3: memref<128x128xbf16, #tpu.memory_space<vmem>>, %arg4: memref<32x128xbf16, #tpu.memory_space<vmem>>, %arg5: memref<1x128xf32, #tpu.memory_space<vmem>>, %arg6: memref<32x128xbf16, #tpu.memory_space<vmem>>, %arg7: memref<32x128xbf16, #tpu.memory_space<vmem>>, %arg8: memref<1x128xf32, #tpu.memory_space<vmem>>, %arg9: memref<8x3xf32, #tpu.memory_space<vmem>>) attributes {dimension_semantics = [#tpu.dimension_semantics<parallel>], iteration_bounds = array<i64: 2>, scalar_prefetch = 0 : i64, scratch_operands = 0 : i64, tpu.core_type = #tpu.core_type<tc>, window_params = [{transform_indices = @transform_0, window_bounds = array<i64: 8, 256>}, {pipeline_mode = #tpu.pipeline_mode<synchronous>, transform_indices = @transform_1, window_bounds = array<i64: 128, 32>}, {pipeline_mode = #tpu.pipeline_mode<synchronous>, transform_indices = @transform_2, window_bounds = array<i64: 128, 128>}, {pipeline_mode = #tpu.pipeline_mode<synchronous>, transform_indices = @transform_3, window_bounds = array<i64: 32, 128>}, {pipeline_mode = #tpu.pipeline_mode<synchronous>, transform_indices = @transform_4, window_bounds = array<i64: 1, 128>}, {pipeline_mode = #tpu.pipeline_mode<synchronous>, transform_indices = @transform_5, window_bounds = array<i64: 32, 128>}, {pipeline_mode = #tpu.pipeline_mode<synchronous>, transform_indices = @transform_6, window_bounds = array<i64: 32, 128>}, {pipeline_mode = #tpu.pipeline_mode<synchronous>, transform_indices = @transform_7, window_bounds = array<i64: 1, 128>}, {transform_indices = @transform_8, window_bounds = array<i64: 8, 3>}]} {
    %c0 = arith.constant 0 : index
    %c0_0 = arith.constant 0 : index
    %0 = vector.load %arg1[%c0, %c0_0] : memref<8x256xi32, #tpu.memory_space<vmem>>, vector<8x256xi32>
    %c0_1 = arith.constant 0 : index
    %c0_2 = arith.constant 0 : index
    %1 = vector.load %arg2[%c0_1, %c0_2] : memref<128x32xbf16, #tpu.memory_space<vmem>>, vector<128x32xbf16>
    %c0_3 = arith.constant 0 : index
    %c0_4 = arith.constant 0 : index
    %2 = vector.load %arg3[%c0_3, %c0_4] : memref<128x128xbf16, #tpu.memory_space<vmem>>, vector<128x128xbf16>
    %c0_5 = arith.constant 0 : index
    %c0_6 = arith.constant 0 : index
    %3 = vector.load %arg4[%c0_5, %c0_6] : memref<32x128xbf16, #tpu.memory_space<vmem>>, vector<32x128xbf16>
    %c0_7 = arith.constant 0 : index
    %c0_8 = arith.constant 0 : index
    %4 = vector.load %arg5[%c0_7, %c0_8] : memref<1x128xf32, #tpu.memory_space<vmem>>, vector<1x128xf32>
    %c0_9 = arith.constant 0 : index
    %c0_10 = arith.constant 0 : index
    %5 = vector.load %arg6[%c0_9, %c0_10] : memref<32x128xbf16, #tpu.memory_space<vmem>>, vector<32x128xbf16>
    %c0_11 = arith.constant 0 : index
    %c0_12 = arith.constant 0 : index
    %6 = vector.load %arg7[%c0_11, %c0_12] : memref<32x128xbf16, #tpu.memory_space<vmem>>, vector<32x128xbf16>
    %c0_13 = arith.constant 0 : index
    %c0_14 = arith.constant 0 : index
    %7 = vector.load %arg8[%c0_13, %c0_14] : memref<1x128xf32, #tpu.memory_space<vmem>>, vector<1x128xf32>
    %8 = tpu.iota {dimensions = array<i32: 1>} : vector<8x128xi32>
    %cst = arith.constant 0.000000e+00 : f32
    %9 = vector.broadcast %cst : f32 to vector<24x32xf32>
    %cst_15 = arith.constant 0.000000e+00 : f32
    %10 = vector.broadcast %cst_15 : f32 to vector<24x32xf32>
    %cst_16 = arith.constant 0.000000e+00 : f32
    %11 = vector.broadcast %cst_16 : f32 to vector<8x128xf32>
    %12 = vector.extract_strided_slice %0 {offsets = [0, 0], sizes = [8, 1], strides = [1, 1]} : vector<8x256xi32> to vector<8x1xi32>
    %13 = vector.broadcast %12 : vector<8x1xi32> to vector<8x128xi32>
    %14 = arith.cmpi eq, %13, %8 : vector<8x128xi32>
    %15 = arith.extui %14 : vector<8x128xi1> to vector<8x128xi32>
    %16 = arith.sitofp %15 : vector<8x128xi32> to vector<8x128xf32>
    %17 = arith.addf %11, %16 : vector<8x128xf32>
    %18 = vector.extract_strided_slice %0 {offsets = [0, 1], sizes = [8, 1], strides = [1, 1]} : vector<8x256xi32> to vector<8x1xi32>
    %19 = vector.broadcast %18 : vector<8x1xi32> to vector<8x128xi32>
    %20 = arith.cmpi eq, %19, %8 : vector<8x128xi32>
    %21 = arith.extui %20 : vector<8x128xi1> to vector<8x128xi32>
    %22 = arith.sitofp %21 : vector<8x128xi32> to vector<8x128xf32>
    %23 = arith.addf %17, %22 : vector<8x128xf32>
    %24 = vector.extract_strided_slice %0 {offsets = [0, 2], sizes = [8, 1], strides = [1, 1]} : vector<8x256xi32> to vector<8x1xi32>
    %25 = vector.broadcast %24 : vector<8x1xi32> to vector<8x128xi32>
    %26 = arith.cmpi eq, %25, %8 : vector<8x128xi32>
    %27 = arith.extui %26 : vector<8x128xi1> to vector<8x128xi32>
    %28 = arith.sitofp %27 : vector<8x128xi32> to vector<8x128xf32>
    %29 = arith.addf %23, %28 : vector<8x128xf32>
    %30 = vector.extract_strided_slice %0 {offsets = [0, 3], sizes = [8, 1], strides = [1, 1]} : vector<8x256xi32> to vector<8x1xi32>
    %31 = vector.broadcast %30 : vector<8x1xi32> to vector<8x128xi32>
    %32 = arith.cmpi eq, %31, %8 : vector<8x128xi32>
    %33 = arith.extui %32 : vector<8x128xi1> to vector<8x128xi32>
    %34 = arith.sitofp %33 : vector<8x128xi32> to vector<8x128xf32>
    %35 = arith.addf %29, %34 : vector<8x128xf32>
    %36 = vector.extract_strided_slice %0 {offsets = [0, 4], sizes = [8, 1], strides = [1, 1]} : vector<8x256xi32> to vector<8x1xi32>
    %37 = vector.broadcast %36 : vector<8x1xi32> to vector<8x128xi32>
    %38 = arith.cmpi eq, %37, %8 : vector<8x128xi32>
    %39 = arith.extui %38 : vector<8x128xi1> to vector<8x128xi32>
    %40 = arith.sitofp %39 : vector<8x128xi32> to vector<8x128xf32>
    %41 = arith.addf %35, %40 : vector<8x128xf32>
    %42 = vector.extract_strided_slice %0 {offsets = [0, 5], sizes = [8, 1], strides = [1, 1]} : vector<8x256xi32> to vector<8x1xi32>
    %43 = vector.broadcast %42 : vector<8x1xi32> to vector<8x128xi32>
    %44 = arith.cmpi eq, %43, %8 : vector<8x128xi32>
    %45 = arith.extui %44 : vector<8x128xi1> to vector<8x128xi32>
    %46 = arith.sitofp %45 : vector<8x128xi32> to vector<8x128xf32>
    %47 = arith.addf %41, %46 : vector<8x128xf32>
    %48 = vector.extract_strided_slice %0 {offsets = [0, 6], sizes = [8, 1], strides = [1, 1]} : vector<8x256xi32> to vector<8x1xi32>
    %49 = vector.broadcast %48 : vector<8x1xi32> to vector<8x128xi32>
    %50 = arith.cmpi eq, %49, %8 : vector<8x128xi32>
    %51 = arith.extui %50 : vector<8x128xi1> to vector<8x128xi32>
    %52 = arith.sitofp %51 : vector<8x128xi32> to vector<8x128xf32>
    %53 = arith.addf %47, %52 : vector<8x128xf32>
    %54 = vector.extract_strided_slice %0 {offsets = [0, 7], sizes = [8, 1], strides = [1, 1]} : vector<8x256xi32> to vector<8x1xi32>
    %55 = vector.broadcast %54 : vector<8x1xi32> to vector<8x128xi32>
    %56 = arith.cmpi eq, %55, %8 : vector<8x128xi32>
    %57 = arith.extui %56 : vector<8x128xi1> to vector<8x128xi32>
    %58 = arith.sitofp %57 : vector<8x128xi32> to vector<8x128xf32>
    %59 = arith.addf %53, %58 : vector<8x128xf32>
    %cst_17 = arith.constant 0.000000e+00 : f32
    %60 = vector.broadcast %cst_17 : f32 to vector<8x128xf32>
    %61 = vector.extract_strided_slice %0 {offsets = [0, 24], sizes = [8, 1], strides = [1, 1]} : vector<8x256xi32> to vector<8x1xi32>
    %62 = vector.broadcast %61 : vector<8x1xi32> to vector<8x128xi32>
    %63 = arith.cmpi eq, %62, %8 : vector<8x128xi32>
    %64 = arith.extui %63 : vector<8x128xi1> to vector<8x128xi32>
    %65 = arith.sitofp %64 : vector<8x128xi32> to vector<8x128xf32>
    %66 = arith.addf %60, %65 : vector<8x128xf32>
    %67 = vector.extract_strided_slice %0 {offsets = [0, 25], sizes = [8, 1], strides = [1, 1]} : vector<8x256xi32> to vector<8x1xi32>
    %68 = vector.broadcast %67 : vector<8x1xi32> to vector<8x128xi32>
    %69 = arith.cmpi eq, %68, %8 : vector<8x128xi32>
    %70 = arith.extui %69 : vector<8x128xi1> to vector<8x128xi32>
    %71 = arith.sitofp %70 : vector<8x128xi32> to vector<8x128xf32>
    %72 = arith.addf %66, %71 : vector<8x128xf32>
    %73 = vector.extract_strided_slice %0 {offsets = [0, 26], sizes = [8, 1], strides = [1, 1]} : vector<8x256xi32> to vector<8x1xi32>
    %74 = vector.broadcast %73 : vector<8x1xi32> to vector<8x128xi32>
    %75 = arith.cmpi eq, %74, %8 : vector<8x128xi32>
    %76 = arith.extui %75 : vector<8x128xi1> to vector<8x128xi32>
    %77 = arith.sitofp %76 : vector<8x128xi32> to vector<8x128xf32>
    %78 = arith.addf %72, %77 : vector<8x128xf32>
    %79 = vector.extract_strided_slice %0 {offsets = [0, 27], sizes = [8, 1], strides = [1, 1]} : vector<8x256xi32> to vector<8x1xi32>
    %80 = vector.broadcast %79 : vector<8x1xi32> to vector<8x128xi32>
    %81 = arith.cmpi eq, %80, %8 : vector<8x128xi32>
    %82 = arith.extui %81 : vector<8x128xi1> to vector<8x128xi32>
    %83 = arith.sitofp %82 : vector<8x128xi32> to vector<8x128xf32>
    %84 = arith.addf %78, %83 : vector<8x128xf32>
    %85 = vector.extract_strided_slice %0 {offsets = [0, 28], sizes = [8, 1], strides = [1, 1]} : vector<8x256xi32> to vector<8x1xi32>
    %86 = vector.broadcast %85 : vector<8x1xi32> to vector<8x128xi32>
    %87 = arith.cmpi eq, %86, %8 : vector<8x128xi32>
    %88 = arith.extui %87 : vector<8x128xi1> to vector<8x128xi32>
    %89 = arith.sitofp %88 : vector<8x128xi32> to vector<8x128xf32>
    %90 = arith.addf %84, %89 : vector<8x128xf32>
    %91 = vector.extract_strided_slice %0 {offsets = [0, 29], sizes = [8, 1], strides = [1, 1]} : vector<8x256xi32> to vector<8x1xi32>
    %92 = vector.broadcast %91 : vector<8x1xi32> to vector<8x128xi32>
    %93 = arith.cmpi eq, %92, %8 : vector<8x128xi32>
    %94 = arith.extui %93 : vector<8x128xi1> to vector<8x128xi32>
    %95 = arith.sitofp %94 : vector<8x128xi32> to vector<8x128xf32>
    %96 = arith.addf %90, %95 : vector<8x128xf32>
    %97 = vector.extract_strided_slice %0 {offsets = [0, 30], sizes = [8, 1], strides = [1, 1]} : vector<8x256xi32> to vector<8x1xi32>
    %98 = vector.broadcast %97 : vector<8x1xi32> to vector<8x128xi32>
    %99 = arith.cmpi eq, %98, %8 : vector<8x128xi32>
    %100 = arith.extui %99 : vector<8x128xi1> to vector<8x128xi32>
    %101 = arith.sitofp %100 : vector<8x128xi32> to vector<8x128xf32>
    %102 = arith.addf %96, %101 : vector<8x128xf32>
    %103 = vector.extract_strided_slice %0 {offsets = [0, 31], sizes = [8, 1], strides = [1, 1]} : vector<8x256xi32> to vector<8x1xi32>
    %104 = vector.broadcast %103 : vector<8x1xi32> to vector<8x128xi32>
    %105 = arith.cmpi eq, %104, %8 : vector<8x128xi32>
    %106 = arith.extui %105 : vector<8x128xi1> to vector<8x128xi32>
    %107 = arith.sitofp %106 : vector<8x128xi32> to vector<8x128xf32>
    %108 = arith.addf %102, %107 : vector<8x128xf32>
    %cst_18 = arith.constant 0.000000e+00 : f32
    %109 = vector.broadcast %cst_18 : f32 to vector<8x128xf32>
    %110 = vector.extract_strided_slice %0 {offsets = [0, 48], sizes = [8, 1], strides = [1, 1]} : vector<8x256xi32> to vector<8x1xi32>
    %111 = vector.broadcast %110 : vector<8x1xi32> to vector<8x128xi32>
    %112 = arith.cmpi eq, %111, %8 : vector<8x128xi32>
    %113 = arith.extui %112 : vector<8x128xi1> to vector<8x128xi32>
    %114 = arith.sitofp %113 : vector<8x128xi32> to vector<8x128xf32>
    %115 = arith.addf %109, %114 : vector<8x128xf32>
    %116 = vector.extract_strided_slice %0 {offsets = [0, 49], sizes = [8, 1], strides = [1, 1]} : vector<8x256xi32> to vector<8x1xi32>
    %117 = vector.broadcast %116 : vector<8x1xi32> to vector<8x128xi32>
    %118 = arith.cmpi eq, %117, %8 : vector<8x128xi32>
    %119 = arith.extui %118 : vector<8x128xi1> to vector<8x128xi32>
    %120 = arith.sitofp %119 : vector<8x128xi32> to vector<8x128xf32>
    %121 = arith.addf %115, %120 : vector<8x128xf32>
    %122 = vector.extract_strided_slice %0 {offsets = [0, 50], sizes = [8, 1], strides = [1, 1]} : vector<8x256xi32> to vector<8x1xi32>
    %123 = vector.broadcast %122 : vector<8x1xi32> to vector<8x128xi32>
    %124 = arith.cmpi eq, %123, %8 : vector<8x128xi32>
    %125 = arith.extui %124 : vector<8x128xi1> to vector<8x128xi32>
    %126 = arith.sitofp %125 : vector<8x128xi32> to vector<8x128xf32>
    %127 = arith.addf %121, %126 : vector<8x128xf32>
    %128 = vector.extract_strided_slice %0 {offsets = [0, 51], sizes = [8, 1], strides = [1, 1]} : vector<8x256xi32> to vector<8x1xi32>
    %129 = vector.broadcast %128 : vector<8x1xi32> to vector<8x128xi32>
    %130 = arith.cmpi eq, %129, %8 : vector<8x128xi32>
    %131 = arith.extui %130 : vector<8x128xi1> to vector<8x128xi32>
    %132 = arith.sitofp %131 : vector<8x128xi32> to vector<8x128xf32>
    %133 = arith.addf %127, %132 : vector<8x128xf32>
    %134 = vector.extract_strided_slice %0 {offsets = [0, 52], sizes = [8, 1], strides = [1, 1]} : vector<8x256xi32> to vector<8x1xi32>
    %135 = vector.broadcast %134 : vector<8x1xi32> to vector<8x128xi32>
    %136 = arith.cmpi eq, %135, %8 : vector<8x128xi32>
    %137 = arith.extui %136 : vector<8x128xi1> to vector<8x128xi32>
    %138 = arith.sitofp %137 : vector<8x128xi32> to vector<8x128xf32>
    %139 = arith.addf %133, %138 : vector<8x128xf32>
    %140 = vector.extract_strided_slice %0 {offsets = [0, 53], sizes = [8, 1], strides = [1, 1]} : vector<8x256xi32> to vector<8x1xi32>
    %141 = vector.broadcast %140 : vector<8x1xi32> to vector<8x128xi32>
    %142 = arith.cmpi eq, %141, %8 : vector<8x128xi32>
    %143 = arith.extui %142 : vector<8x128xi1> to vector<8x128xi32>
    %144 = arith.sitofp %143 : vector<8x128xi32> to vector<8x128xf32>
    %145 = arith.addf %139, %144 : vector<8x128xf32>
    %146 = vector.extract_strided_slice %0 {offsets = [0, 54], sizes = [8, 1], strides = [1, 1]} : vector<8x256xi32> to vector<8x1xi32>
    %147 = vector.broadcast %146 : vector<8x1xi32> to vector<8x128xi32>
    %148 = arith.cmpi eq, %147, %8 : vector<8x128xi32>
    %149 = arith.extui %148 : vector<8x128xi1> to vector<8x128xi32>
    %150 = arith.sitofp %149 : vector<8x128xi32> to vector<8x128xf32>
    %151 = arith.addf %145, %150 : vector<8x128xf32>
    %152 = vector.extract_strided_slice %0 {offsets = [0, 55], sizes = [8, 1], strides = [1, 1]} : vector<8x256xi32> to vector<8x1xi32>
    %153 = vector.broadcast %152 : vector<8x1xi32> to vector<8x128xi32>
    %154 = arith.cmpi eq, %153, %8 : vector<8x128xi32>
    %155 = arith.extui %154 : vector<8x128xi1> to vector<8x128xi32>
    %156 = arith.sitofp %155 : vector<8x128xi32> to vector<8x128xf32>
    %157 = arith.addf %151, %156 : vector<8x128xf32>
    %158 = tpu.concatenate %59, %108, %157 in 0 : vector<8x128xf32>, vector<8x128xf32>, vector<8x128xf32> -> vector<24x128xf32>
    %159 = arith.truncf %158 : vector<24x128xf32> to vector<24x128xbf16>
    %cst_19 = arith.constant dense<0.000000e+00> : vector<24x128xf32>
    %160 = tpu.matmul %159, %2, %cst_19 {dimension_numbers = #tpu.dot_dimension_numbers<[1], [0], [0], [1], [0, 0, 1, 1], [], []>} : vector<24x128xbf16>, vector<128x128xbf16>, vector<24x128xf32> -> vector<24x128xf32>
    %161 = vector.broadcast %4 : vector<1x128xf32> to vector<24x128xf32>
    %162 = arith.addf %160, %161 : vector<24x128xf32>
    %163 = arith.truncf %9 : vector<24x32xf32> to vector<24x32xbf16>
    %cst_20 = arith.constant dense<0.000000e+00> : vector<24x128xf32>
    %164 = tpu.matmul %163, %3, %cst_20 {dimension_numbers = #tpu.dot_dimension_numbers<[1], [0], [0], [1], [0, 0, 1, 1], [], []>} : vector<24x32xbf16>, vector<32x128xbf16>, vector<24x128xf32> -> vector<24x128xf32>
    %165 = arith.addf %162, %164 : vector<24x128xf32>
    %166 = vector.extract_strided_slice %165 {offsets = [0, 0], sizes = [24, 96], strides = [1, 1]} : vector<24x128xf32> to vector<24x96xf32>
    %167 = arith.negf %166 : vector<24x96xf32>
    %168 = math.exp %167 : vector<24x96xf32>
    %cst_21 = arith.constant 1.000000e+00 : f32
    %169 = vector.broadcast %cst_21 : f32 to vector<24x96xf32>
    %170 = arith.addf %169, %168 : vector<24x96xf32>
    %171 = arith.divf %169, %170 : vector<24x96xf32>
    %172 = vector.extract_strided_slice %171 {offsets = [0, 0], sizes = [24, 32], strides = [1, 1]} : vector<24x96xf32> to vector<24x32xf32>
    %173 = vector.extract_strided_slice %171 {offsets = [0, 32], sizes = [24, 32], strides = [1, 1]} : vector<24x96xf32> to vector<24x32xf32>
    %174 = vector.extract_strided_slice %171 {offsets = [0, 64], sizes = [24, 32], strides = [1, 1]} : vector<24x96xf32> to vector<24x32xf32>
    %175 = vector.extract_strided_slice %165 {offsets = [0, 96], sizes = [24, 32], strides = [1, 1]} : vector<24x128xf32> to vector<24x32xf32>
    %176 = math.tanh %175 : vector<24x32xf32>
    %177 = arith.mulf %173, %10 : vector<24x32xf32>
    %178 = arith.mulf %172, %176 : vector<24x32xf32>
    %179 = arith.addf %177, %178 : vector<24x32xf32>
    %180 = math.tanh %179 : vector<24x32xf32>
    %181 = arith.mulf %174, %180 : vector<24x32xf32>
    %cst_22 = arith.constant 0.000000e+00 : f32
    %182 = vector.broadcast %cst_22 : f32 to vector<8x128xf32>
    %183 = vector.extract_strided_slice %0 {offsets = [0, 8], sizes = [8, 1], strides = [1, 1]} : vector<8x256xi32> to vector<8x1xi32>
    %184 = vector.broadcast %183 : vector<8x1xi32> to vector<8x128xi32>
    %185 = arith.cmpi eq, %184, %8 : vector<8x128xi32>
    %186 = arith.extui %185 : vector<8x128xi1> to vector<8x128xi32>
    %187 = arith.sitofp %186 : vector<8x128xi32> to vector<8x128xf32>
    %188 = arith.addf %182, %187 : vector<8x128xf32>
    %189 = vector.extract_strided_slice %0 {offsets = [0, 9], sizes = [8, 1], strides = [1, 1]} : vector<8x256xi32> to vector<8x1xi32>
    %190 = vector.broadcast %189 : vector<8x1xi32> to vector<8x128xi32>
    %191 = arith.cmpi eq, %190, %8 : vector<8x128xi32>
    %192 = arith.extui %191 : vector<8x128xi1> to vector<8x128xi32>
    %193 = arith.sitofp %192 : vector<8x128xi32> to vector<8x128xf32>
    %194 = arith.addf %188, %193 : vector<8x128xf32>
    %195 = vector.extract_strided_slice %0 {offsets = [0, 10], sizes = [8, 1], strides = [1, 1]} : vector<8x256xi32> to vector<8x1xi32>
    %196 = vector.broadcast %195 : vector<8x1xi32> to vector<8x128xi32>
    %197 = arith.cmpi eq, %196, %8 : vector<8x128xi32>
    %198 = arith.extui %197 : vector<8x128xi1> to vector<8x128xi32>
    %199 = arith.sitofp %198 : vector<8x128xi32> to vector<8x128xf32>
    %200 = arith.addf %194, %199 : vector<8x128xf32>
    %201 = vector.extract_strided_slice %0 {offsets = [0, 11], sizes = [8, 1], strides = [1, 1]} : vector<8x256xi32> to vector<8x1xi32>
    %202 = vector.broadcast %201 : vector<8x1xi32> to vector<8x128xi32>
    %203 = arith.cmpi eq, %202, %8 : vector<8x128xi32>
    %204 = arith.extui %203 : vector<8x128xi1> to vector<8x128xi32>
    %205 = arith.sitofp %204 : vector<8x128xi32> to vector<8x128xf32>
    %206 = arith.addf %200, %205 : vector<8x128xf32>
    %207 = vector.extract_strided_slice %0 {offsets = [0, 12], sizes = [8, 1], strides = [1, 1]} : vector<8x256xi32> to vector<8x1xi32>
    %208 = vector.broadcast %207 : vector<8x1xi32> to vector<8x128xi32>
    %209 = arith.cmpi eq, %208, %8 : vector<8x128xi32>
    %210 = arith.extui %209 : vector<8x128xi1> to vector<8x128xi32>
    %211 = arith.sitofp %210 : vector<8x128xi32> to vector<8x128xf32>
    %212 = arith.addf %206, %211 : vector<8x128xf32>
    %213 = vector.extract_strided_slice %0 {offsets = [0, 13], sizes = [8, 1], strides = [1, 1]} : vector<8x256xi32> to vector<8x1xi32>
    %214 = vector.broadcast %213 : vector<8x1xi32> to vector<8x128xi32>
    %215 = arith.cmpi eq, %214, %8 : vector<8x128xi32>
    %216 = arith.extui %215 : vector<8x128xi1> to vector<8x128xi32>
    %217 = arith.sitofp %216 : vector<8x128xi32> to vector<8x128xf32>
    %218 = arith.addf %212, %217 : vector<8x128xf32>
    %219 = vector.extract_strided_slice %0 {offsets = [0, 14], sizes = [8, 1], strides = [1, 1]} : vector<8x256xi32> to vector<8x1xi32>
    %220 = vector.broadcast %219 : vector<8x1xi32> to vector<8x128xi32>
    %221 = arith.cmpi eq, %220, %8 : vector<8x128xi32>
    %222 = arith.extui %221 : vector<8x128xi1> to vector<8x128xi32>
    %223 = arith.sitofp %222 : vector<8x128xi32> to vector<8x128xf32>
    %224 = arith.addf %218, %223 : vector<8x128xf32>
    %225 = vector.extract_strided_slice %0 {offsets = [0, 15], sizes = [8, 1], strides = [1, 1]} : vector<8x256xi32> to vector<8x1xi32>
    %226 = vector.broadcast %225 : vector<8x1xi32> to vector<8x128xi32>
    %227 = arith.cmpi eq, %226, %8 : vector<8x128xi32>
    %228 = arith.extui %227 : vector<8x128xi1> to vector<8x128xi32>
    %229 = arith.sitofp %228 : vector<8x128xi32> to vector<8x128xf32>
    %230 = arith.addf %224, %229 : vector<8x128xf32>
    %cst_23 = arith.constant 0.000000e+00 : f32
    %231 = vector.broadcast %cst_23 : f32 to vector<8x128xf32>
    %232 = vector.extract_strided_slice %0 {offsets = [0, 32], sizes = [8, 1], strides = [1, 1]} : vector<8x256xi32> to vector<8x1xi32>
    %233 = vector.broadcast %232 : vector<8x1xi32> to vector<8x128xi32>
    %234 = arith.cmpi eq, %233, %8 : vector<8x128xi32>
    %235 = arith.extui %234 : vector<8x128xi1> to vector<8x128xi32>
    %236 = arith.sitofp %235 : vector<8x128xi32> to vector<8x128xf32>
    %237 = arith.addf %231, %236 : vector<8x128xf32>
    %238 = vector.extract_strided_slice %0 {offsets = [0, 33], sizes = [8, 1], strides = [1, 1]} : vector<8x256xi32> to vector<8x1xi32>
    %239 = vector.broadcast %238 : vector<8x1xi32> to vector<8x128xi32>
    %240 = arith.cmpi eq, %239, %8 : vector<8x128xi32>
    %241 = arith.extui %240 : vector<8x128xi1> to vector<8x128xi32>
    %242 = arith.sitofp %241 : vector<8x128xi32> to vector<8x128xf32>
    %243 = arith.addf %237, %242 : vector<8x128xf32>
    %244 = vector.extract_strided_slice %0 {offsets = [0, 34], sizes = [8, 1], strides = [1, 1]} : vector<8x256xi32> to vector<8x1xi32>
    %245 = vector.broadcast %244 : vector<8x1xi32> to vector<8x128xi32>
    %246 = arith.cmpi eq, %245, %8 : vector<8x128xi32>
    %247 = arith.extui %246 : vector<8x128xi1> to vector<8x128xi32>
    %248 = arith.sitofp %247 : vector<8x128xi32> to vector<8x128xf32>
    %249 = arith.addf %243, %248 : vector<8x128xf32>
    %250 = vector.extract_strided_slice %0 {offsets = [0, 35], sizes = [8, 1], strides = [1, 1]} : vector<8x256xi32> to vector<8x1xi32>
    %251 = vector.broadcast %250 : vector<8x1xi32> to vector<8x128xi32>
    %252 = arith.cmpi eq, %251, %8 : vector<8x128xi32>
    %253 = arith.extui %252 : vector<8x128xi1> to vector<8x128xi32>
    %254 = arith.sitofp %253 : vector<8x128xi32> to vector<8x128xf32>
    %255 = arith.addf %249, %254 : vector<8x128xf32>
    %256 = vector.extract_strided_slice %0 {offsets = [0, 36], sizes = [8, 1], strides = [1, 1]} : vector<8x256xi32> to vector<8x1xi32>
    %257 = vector.broadcast %256 : vector<8x1xi32> to vector<8x128xi32>
    %258 = arith.cmpi eq, %257, %8 : vector<8x128xi32>
    %259 = arith.extui %258 : vector<8x128xi1> to vector<8x128xi32>
    %260 = arith.sitofp %259 : vector<8x128xi32> to vector<8x128xf32>
    %261 = arith.addf %255, %260 : vector<8x128xf32>
    %262 = vector.extract_strided_slice %0 {offsets = [0, 37], sizes = [8, 1], strides = [1, 1]} : vector<8x256xi32> to vector<8x1xi32>
    %263 = vector.broadcast %262 : vector<8x1xi32> to vector<8x128xi32>
    %264 = arith.cmpi eq, %263, %8 : vector<8x128xi32>
    %265 = arith.extui %264 : vector<8x128xi1> to vector<8x128xi32>
    %266 = arith.sitofp %265 : vector<8x128xi32> to vector<8x128xf32>
    %267 = arith.addf %261, %266 : vector<8x128xf32>
    %268 = vector.extract_strided_slice %0 {offsets = [0, 38], sizes = [8, 1], strides = [1, 1]} : vector<8x256xi32> to vector<8x1xi32>
    %269 = vector.broadcast %268 : vector<8x1xi32> to vector<8x128xi32>
    %270 = arith.cmpi eq, %269, %8 : vector<8x128xi32>
    %271 = arith.extui %270 : vector<8x128xi1> to vector<8x128xi32>
    %272 = arith.sitofp %271 : vector<8x128xi32> to vector<8x128xf32>
    %273 = arith.addf %267, %272 : vector<8x128xf32>
    %274 = vector.extract_strided_slice %0 {offsets = [0, 39], sizes = [8, 1], strides = [1, 1]} : vector<8x256xi32> to vector<8x1xi32>
    %275 = vector.broadcast %274 : vector<8x1xi32> to vector<8x128xi32>
    %276 = arith.cmpi eq, %275, %8 : vector<8x128xi32>
    %277 = arith.extui %276 : vector<8x128xi1> to vector<8x128xi32>
    %278 = arith.sitofp %277 : vector<8x128xi32> to vector<8x128xf32>
    %279 = arith.addf %273, %278 : vector<8x128xf32>
    %cst_24 = arith.constant 0.000000e+00 : f32
    %280 = vector.broadcast %cst_24 : f32 to vector<8x128xf32>
    %281 = vector.extract_strided_slice %0 {offsets = [0, 56], sizes = [8, 1], strides = [1, 1]} : vector<8x256xi32> to vector<8x1xi32>
    %282 = vector.broadcast %281 : vector<8x1xi32> to vector<8x128xi32>
    %283 = arith.cmpi eq, %282, %8 : vector<8x128xi32>
    %284 = arith.extui %283 : vector<8x128xi1> to vector<8x128xi32>
    %285 = arith.sitofp %284 : vector<8x128xi32> to vector<8x128xf32>
    %286 = arith.addf %280, %285 : vector<8x128xf32>
    %287 = vector.extract_strided_slice %0 {offsets = [0, 57], sizes = [8, 1], strides = [1, 1]} : vector<8x256xi32> to vector<8x1xi32>
    %288 = vector.broadcast %287 : vector<8x1xi32> to vector<8x128xi32>
    %289 = arith.cmpi eq, %288, %8 : vector<8x128xi32>
    %290 = arith.extui %289 : vector<8x128xi1> to vector<8x128xi32>
    %291 = arith.sitofp %290 : vector<8x128xi32> to vector<8x128xf32>
    %292 = arith.addf %286, %291 : vector<8x128xf32>
    %293 = vector.extract_strided_slice %0 {offsets = [0, 58], sizes = [8, 1], strides = [1, 1]} : vector<8x256xi32> to vector<8x1xi32>
    %294 = vector.broadcast %293 : vector<8x1xi32> to vector<8x128xi32>
    %295 = arith.cmpi eq, %294, %8 : vector<8x128xi32>
    %296 = arith.extui %295 : vector<8x128xi1> to vector<8x128xi32>
    %297 = arith.sitofp %296 : vector<8x128xi32> to vector<8x128xf32>
    %298 = arith.addf %292, %297 : vector<8x128xf32>
    %299 = vector.extract_strided_slice %0 {offsets = [0, 59], sizes = [8, 1], strides = [1, 1]} : vector<8x256xi32> to vector<8x1xi32>
    %300 = vector.broadcast %299 : vector<8x1xi32> to vector<8x128xi32>
    %301 = arith.cmpi eq, %300, %8 : vector<8x128xi32>
    %302 = arith.extui %301 : vector<8x128xi1> to vector<8x128xi32>
    %303 = arith.sitofp %302 : vector<8x128xi32> to vector<8x128xf32>
    %304 = arith.addf %298, %303 : vector<8x128xf32>
    %305 = vector.extract_strided_slice %0 {offsets = [0, 60], sizes = [8, 1], strides = [1, 1]} : vector<8x256xi32> to vector<8x1xi32>
    %306 = vector.broadcast %305 : vector<8x1xi32> to vector<8x128xi32>
    %307 = arith.cmpi eq, %306, %8 : vector<8x128xi32>
    %308 = arith.extui %307 : vector<8x128xi1> to vector<8x128xi32>
    %309 = arith.sitofp %308 : vector<8x128xi32> to vector<8x128xf32>
    %310 = arith.addf %304, %309 : vector<8x128xf32>
    %311 = vector.extract_strided_slice %0 {offsets = [0, 61], sizes = [8, 1], strides = [1, 1]} : vector<8x256xi32> to vector<8x1xi32>
    %312 = vector.broadcast %311 : vector<8x1xi32> to vector<8x128xi32>
    %313 = arith.cmpi eq, %312, %8 : vector<8x128xi32>
    %314 = arith.extui %313 : vector<8x128xi1> to vector<8x128xi32>
    %315 = arith.sitofp %314 : vector<8x128xi32> to vector<8x128xf32>
    %316 = arith.addf %310, %315 : vector<8x128xf32>
    %317 = vector.extract_strided_slice %0 {offsets = [0, 62], sizes = [8, 1], strides = [1, 1]} : vector<8x256xi32> to vector<8x1xi32>
    %318 = vector.broadcast %317 : vector<8x1xi32> to vector<8x128xi32>
    %319 = arith.cmpi eq, %318, %8 : vector<8x128xi32>
    %320 = arith.extui %319 : vector<8x128xi1> to vector<8x128xi32>
    %321 = arith.sitofp %320 : vector<8x128xi32> to vector<8x128xf32>
    %322 = arith.addf %316, %321 : vector<8x128xf32>
    %323 = vector.extract_strided_slice %0 {offsets = [0, 63], sizes = [8, 1], strides = [1, 1]} : vector<8x256xi32> to vector<8x1xi32>
    %324 = vector.broadcast %323 : vector<8x1xi32> to vector<8x128xi32>
    %325 = arith.cmpi eq, %324, %8 : vector<8x128xi32>
    %326 = arith.extui %325 : vector<8x128xi1> to vector<8x128xi32>
    %327 = arith.sitofp %326 : vector<8x128xi32> to vector<8x128xf32>
    %328 = arith.addf %322, %327 : vector<8x128xf32>
    %329 = tpu.concatenate %230, %279, %328 in 0 : vector<8x128xf32>, vector<8x128xf32>, vector<8x128xf32> -> vector<24x128xf32>
    %330 = arith.truncf %329 : vector<24x128xf32> to vector<24x128xbf16>
    %cst_25 = arith.constant dense<0.000000e+00> : vector<24x128xf32>
    %331 = tpu.matmul %330, %2, %cst_25 {dimension_numbers = #tpu.dot_dimension_numbers<[1], [0], [0], [1], [0, 0, 1, 1], [], []>} : vector<24x128xbf16>, vector<128x128xbf16>, vector<24x128xf32> -> vector<24x128xf32>
    %332 = vector.broadcast %4 : vector<1x128xf32> to vector<24x128xf32>
    %333 = arith.addf %331, %332 : vector<24x128xf32>
    %334 = arith.truncf %181 : vector<24x32xf32> to vector<24x32xbf16>
    %cst_26 = arith.constant dense<0.000000e+00> : vector<24x128xf32>
    %335 = tpu.matmul %334, %3, %cst_26 {dimension_numbers = #tpu.dot_dimension_numbers<[1], [0], [0], [1], [0, 0, 1, 1], [], []>} : vector<24x32xbf16>, vector<32x128xbf16>, vector<24x128xf32> -> vector<24x128xf32>
    %336 = arith.addf %333, %335 : vector<24x128xf32>
    %337 = vector.extract_strided_slice %336 {offsets = [0, 0], sizes = [24, 96], strides = [1, 1]} : vector<24x128xf32> to vector<24x96xf32>
    %338 = arith.negf %337 : vector<24x96xf32>
    %339 = math.exp %338 : vector<24x96xf32>
    %cst_27 = arith.constant 1.000000e+00 : f32
    %340 = vector.broadcast %cst_27 : f32 to vector<24x96xf32>
    %341 = arith.addf %340, %339 : vector<24x96xf32>
    %342 = arith.divf %340, %341 : vector<24x96xf32>
    %343 = vector.extract_strided_slice %342 {offsets = [0, 0], sizes = [24, 32], strides = [1, 1]} : vector<24x96xf32> to vector<24x32xf32>
    %344 = vector.extract_strided_slice %342 {offsets = [0, 32], sizes = [24, 32], strides = [1, 1]} : vector<24x96xf32> to vector<24x32xf32>
    %345 = vector.extract_strided_slice %342 {offsets = [0, 64], sizes = [24, 32], strides = [1, 1]} : vector<24x96xf32> to vector<24x32xf32>
    %346 = vector.extract_strided_slice %336 {offsets = [0, 96], sizes = [24, 32], strides = [1, 1]} : vector<24x128xf32> to vector<24x32xf32>
    %347 = math.tanh %346 : vector<24x32xf32>
    %348 = arith.mulf %344, %179 : vector<24x32xf32>
    %349 = arith.mulf %343, %347 : vector<24x32xf32>
    %350 = arith.addf %348, %349 : vector<24x32xf32>
    %351 = math.tanh %350 : vector<24x32xf32>
    %352 = arith.mulf %345, %351 : vector<24x32xf32>
    %cst_28 = arith.constant 0.000000e+00 : f32
    %353 = vector.broadcast %cst_28 : f32 to vector<8x128xf32>
    %354 = vector.extract_strided_slice %0 {offsets = [0, 16], sizes = [8, 1], strides = [1, 1]} : vector<8x256xi32> to vector<8x1xi32>
    %355 = vector.broadcast %354 : vector<8x1xi32> to vector<8x128xi32>
    %356 = arith.cmpi eq, %355, %8 : vector<8x128xi32>
    %357 = arith.extui %356 : vector<8x128xi1> to vector<8x128xi32>
    %358 = arith.sitofp %357 : vector<8x128xi32> to vector<8x128xf32>
    %359 = arith.addf %353, %358 : vector<8x128xf32>
    %360 = vector.extract_strided_slice %0 {offsets = [0, 17], sizes = [8, 1], strides = [1, 1]} : vector<8x256xi32> to vector<8x1xi32>
    %361 = vector.broadcast %360 : vector<8x1xi32> to vector<8x128xi32>
    %362 = arith.cmpi eq, %361, %8 : vector<8x128xi32>
    %363 = arith.extui %362 : vector<8x128xi1> to vector<8x128xi32>
    %364 = arith.sitofp %363 : vector<8x128xi32> to vector<8x128xf32>
    %365 = arith.addf %359, %364 : vector<8x128xf32>
    %366 = vector.extract_strided_slice %0 {offsets = [0, 18], sizes = [8, 1], strides = [1, 1]} : vector<8x256xi32> to vector<8x1xi32>
    %367 = vector.broadcast %366 : vector<8x1xi32> to vector<8x128xi32>
    %368 = arith.cmpi eq, %367, %8 : vector<8x128xi32>
    %369 = arith.extui %368 : vector<8x128xi1> to vector<8x128xi32>
    %370 = arith.sitofp %369 : vector<8x128xi32> to vector<8x128xf32>
    %371 = arith.addf %365, %370 : vector<8x128xf32>
    %372 = vector.extract_strided_slice %0 {offsets = [0, 19], sizes = [8, 1], strides = [1, 1]} : vector<8x256xi32> to vector<8x1xi32>
    %373 = vector.broadcast %372 : vector<8x1xi32> to vector<8x128xi32>
    %374 = arith.cmpi eq, %373, %8 : vector<8x128xi32>
    %375 = arith.extui %374 : vector<8x128xi1> to vector<8x128xi32>
    %376 = arith.sitofp %375 : vector<8x128xi32> to vector<8x128xf32>
    %377 = arith.addf %371, %376 : vector<8x128xf32>
    %378 = vector.extract_strided_slice %0 {offsets = [0, 20], sizes = [8, 1], strides = [1, 1]} : vector<8x256xi32> to vector<8x1xi32>
    %379 = vector.broadcast %378 : vector<8x1xi32> to vector<8x128xi32>
    %380 = arith.cmpi eq, %379, %8 : vector<8x128xi32>
    %381 = arith.extui %380 : vector<8x128xi1> to vector<8x128xi32>
    %382 = arith.sitofp %381 : vector<8x128xi32> to vector<8x128xf32>
    %383 = arith.addf %377, %382 : vector<8x128xf32>
    %384 = vector.extract_strided_slice %0 {offsets = [0, 21], sizes = [8, 1], strides = [1, 1]} : vector<8x256xi32> to vector<8x1xi32>
    %385 = vector.broadcast %384 : vector<8x1xi32> to vector<8x128xi32>
    %386 = arith.cmpi eq, %385, %8 : vector<8x128xi32>
    %387 = arith.extui %386 : vector<8x128xi1> to vector<8x128xi32>
    %388 = arith.sitofp %387 : vector<8x128xi32> to vector<8x128xf32>
    %389 = arith.addf %383, %388 : vector<8x128xf32>
    %390 = vector.extract_strided_slice %0 {offsets = [0, 22], sizes = [8, 1], strides = [1, 1]} : vector<8x256xi32> to vector<8x1xi32>
    %391 = vector.broadcast %390 : vector<8x1xi32> to vector<8x128xi32>
    %392 = arith.cmpi eq, %391, %8 : vector<8x128xi32>
    %393 = arith.extui %392 : vector<8x128xi1> to vector<8x128xi32>
    %394 = arith.sitofp %393 : vector<8x128xi32> to vector<8x128xf32>
    %395 = arith.addf %389, %394 : vector<8x128xf32>
    %396 = vector.extract_strided_slice %0 {offsets = [0, 23], sizes = [8, 1], strides = [1, 1]} : vector<8x256xi32> to vector<8x1xi32>
    %397 = vector.broadcast %396 : vector<8x1xi32> to vector<8x128xi32>
    %398 = arith.cmpi eq, %397, %8 : vector<8x128xi32>
    %399 = arith.extui %398 : vector<8x128xi1> to vector<8x128xi32>
    %400 = arith.sitofp %399 : vector<8x128xi32> to vector<8x128xf32>
    %401 = arith.addf %395, %400 : vector<8x128xf32>
    %cst_29 = arith.constant 0.000000e+00 : f32
    %402 = vector.broadcast %cst_29 : f32 to vector<8x128xf32>
    %403 = vector.extract_strided_slice %0 {offsets = [0, 40], sizes = [8, 1], strides = [1, 1]} : vector<8x256xi32> to vector<8x1xi32>
    %404 = vector.broadcast %403 : vector<8x1xi32> to vector<8x128xi32>
    %405 = arith.cmpi eq, %404, %8 : vector<8x128xi32>
    %406 = arith.extui %405 : vector<8x128xi1> to vector<8x128xi32>
    %407 = arith.sitofp %406 : vector<8x128xi32> to vector<8x128xf32>
    %408 = arith.addf %402, %407 : vector<8x128xf32>
    %409 = vector.extract_strided_slice %0 {offsets = [0, 41], sizes = [8, 1], strides = [1, 1]} : vector<8x256xi32> to vector<8x1xi32>
    %410 = vector.broadcast %409 : vector<8x1xi32> to vector<8x128xi32>
    %411 = arith.cmpi eq, %410, %8 : vector<8x128xi32>
    %412 = arith.extui %411 : vector<8x128xi1> to vector<8x128xi32>
    %413 = arith.sitofp %412 : vector<8x128xi32> to vector<8x128xf32>
    %414 = arith.addf %408, %413 : vector<8x128xf32>
    %415 = vector.extract_strided_slice %0 {offsets = [0, 42], sizes = [8, 1], strides = [1, 1]} : vector<8x256xi32> to vector<8x1xi32>
    %416 = vector.broadcast %415 : vector<8x1xi32> to vector<8x128xi32>
    %417 = arith.cmpi eq, %416, %8 : vector<8x128xi32>
    %418 = arith.extui %417 : vector<8x128xi1> to vector<8x128xi32>
    %419 = arith.sitofp %418 : vector<8x128xi32> to vector<8x128xf32>
    %420 = arith.addf %414, %419 : vector<8x128xf32>
    %421 = vector.extract_strided_slice %0 {offsets = [0, 43], sizes = [8, 1], strides = [1, 1]} : vector<8x256xi32> to vector<8x1xi32>
    %422 = vector.broadcast %421 : vector<8x1xi32> to vector<8x128xi32>
    %423 = arith.cmpi eq, %422, %8 : vector<8x128xi32>
    %424 = arith.extui %423 : vector<8x128xi1> to vector<8x128xi32>
    %425 = arith.sitofp %424 : vector<8x128xi32> to vector<8x128xf32>
    %426 = arith.addf %420, %425 : vector<8x128xf32>
    %427 = vector.extract_strided_slice %0 {offsets = [0, 44], sizes = [8, 1], strides = [1, 1]} : vector<8x256xi32> to vector<8x1xi32>
    %428 = vector.broadcast %427 : vector<8x1xi32> to vector<8x128xi32>
    %429 = arith.cmpi eq, %428, %8 : vector<8x128xi32>
    %430 = arith.extui %429 : vector<8x128xi1> to vector<8x128xi32>
    %431 = arith.sitofp %430 : vector<8x128xi32> to vector<8x128xf32>
    %432 = arith.addf %426, %431 : vector<8x128xf32>
    %433 = vector.extract_strided_slice %0 {offsets = [0, 45], sizes = [8, 1], strides = [1, 1]} : vector<8x256xi32> to vector<8x1xi32>
    %434 = vector.broadcast %433 : vector<8x1xi32> to vector<8x128xi32>
    %435 = arith.cmpi eq, %434, %8 : vector<8x128xi32>
    %436 = arith.extui %435 : vector<8x128xi1> to vector<8x128xi32>
    %437 = arith.sitofp %436 : vector<8x128xi32> to vector<8x128xf32>
    %438 = arith.addf %432, %437 : vector<8x128xf32>
    %439 = vector.extract_strided_slice %0 {offsets = [0, 46], sizes = [8, 1], strides = [1, 1]} : vector<8x256xi32> to vector<8x1xi32>
    %440 = vector.broadcast %439 : vector<8x1xi32> to vector<8x128xi32>
    %441 = arith.cmpi eq, %440, %8 : vector<8x128xi32>
    %442 = arith.extui %441 : vector<8x128xi1> to vector<8x128xi32>
    %443 = arith.sitofp %442 : vector<8x128xi32> to vector<8x128xf32>
    %444 = arith.addf %438, %443 : vector<8x128xf32>
    %445 = vector.extract_strided_slice %0 {offsets = [0, 47], sizes = [8, 1], strides = [1, 1]} : vector<8x256xi32> to vector<8x1xi32>
    %446 = vector.broadcast %445 : vector<8x1xi32> to vector<8x128xi32>
    %447 = arith.cmpi eq, %446, %8 : vector<8x128xi32>
    %448 = arith.extui %447 : vector<8x128xi1> to vector<8x128xi32>
    %449 = arith.sitofp %448 : vector<8x128xi32> to vector<8x128xf32>
    %450 = arith.addf %444, %449 : vector<8x128xf32>
    %cst_30 = arith.constant 0.000000e+00 : f32
    %451 = vector.broadcast %cst_30 : f32 to vector<8x128xf32>
    %452 = vector.extract_strided_slice %0 {offsets = [0, 64], sizes = [8, 1], strides = [1, 1]} : vector<8x256xi32> to vector<8x1xi32>
    %453 = vector.broadcast %452 : vector<8x1xi32> to vector<8x128xi32>
    %454 = arith.cmpi eq, %453, %8 : vector<8x128xi32>
    %455 = arith.extui %454 : vector<8x128xi1> to vector<8x128xi32>
    %456 = arith.sitofp %455 : vector<8x128xi32> to vector<8x128xf32>
    %457 = arith.addf %451, %456 : vector<8x128xf32>
    %458 = vector.extract_strided_slice %0 {offsets = [0, 65], sizes = [8, 1], strides = [1, 1]} : vector<8x256xi32> to vector<8x1xi32>
    %459 = vector.broadcast %458 : vector<8x1xi32> to vector<8x128xi32>
    %460 = arith.cmpi eq, %459, %8 : vector<8x128xi32>
    %461 = arith.extui %460 : vector<8x128xi1> to vector<8x128xi32>
    %462 = arith.sitofp %461 : vector<8x128xi32> to vector<8x128xf32>
    %463 = arith.addf %457, %462 : vector<8x128xf32>
    %464 = vector.extract_strided_slice %0 {offsets = [0, 66], sizes = [8, 1], strides = [1, 1]} : vector<8x256xi32> to vector<8x1xi32>
    %465 = vector.broadcast %464 : vector<8x1xi32> to vector<8x128xi32>
    %466 = arith.cmpi eq, %465, %8 : vector<8x128xi32>
    %467 = arith.extui %466 : vector<8x128xi1> to vector<8x128xi32>
    %468 = arith.sitofp %467 : vector<8x128xi32> to vector<8x128xf32>
    %469 = arith.addf %463, %468 : vector<8x128xf32>
    %470 = vector.extract_strided_slice %0 {offsets = [0, 67], sizes = [8, 1], strides = [1, 1]} : vector<8x256xi32> to vector<8x1xi32>
    %471 = vector.broadcast %470 : vector<8x1xi32> to vector<8x128xi32>
    %472 = arith.cmpi eq, %471, %8 : vector<8x128xi32>
    %473 = arith.extui %472 : vector<8x128xi1> to vector<8x128xi32>
    %474 = arith.sitofp %473 : vector<8x128xi32> to vector<8x128xf32>
    %475 = arith.addf %469, %474 : vector<8x128xf32>
    %476 = vector.extract_strided_slice %0 {offsets = [0, 68], sizes = [8, 1], strides = [1, 1]} : vector<8x256xi32> to vector<8x1xi32>
    %477 = vector.broadcast %476 : vector<8x1xi32> to vector<8x128xi32>
    %478 = arith.cmpi eq, %477, %8 : vector<8x128xi32>
    %479 = arith.extui %478 : vector<8x128xi1> to vector<8x128xi32>
    %480 = arith.sitofp %479 : vector<8x128xi32> to vector<8x128xf32>
    %481 = arith.addf %475, %480 : vector<8x128xf32>
    %482 = vector.extract_strided_slice %0 {offsets = [0, 69], sizes = [8, 1], strides = [1, 1]} : vector<8x256xi32> to vector<8x1xi32>
    %483 = vector.broadcast %482 : vector<8x1xi32> to vector<8x128xi32>
    %484 = arith.cmpi eq, %483, %8 : vector<8x128xi32>
    %485 = arith.extui %484 : vector<8x128xi1> to vector<8x128xi32>
    %486 = arith.sitofp %485 : vector<8x128xi32> to vector<8x128xf32>
    %487 = arith.addf %481, %486 : vector<8x128xf32>
    %488 = vector.extract_strided_slice %0 {offsets = [0, 70], sizes = [8, 1], strides = [1, 1]} : vector<8x256xi32> to vector<8x1xi32>
    %489 = vector.broadcast %488 : vector<8x1xi32> to vector<8x128xi32>
    %490 = arith.cmpi eq, %489, %8 : vector<8x128xi32>
    %491 = arith.extui %490 : vector<8x128xi1> to vector<8x128xi32>
    %492 = arith.sitofp %491 : vector<8x128xi32> to vector<8x128xf32>
    %493 = arith.addf %487, %492 : vector<8x128xf32>
    %494 = vector.extract_strided_slice %0 {offsets = [0, 71], sizes = [8, 1], strides = [1, 1]} : vector<8x256xi32> to vector<8x1xi32>
    %495 = vector.broadcast %494 : vector<8x1xi32> to vector<8x128xi32>
    %496 = arith.cmpi eq, %495, %8 : vector<8x128xi32>
    %497 = arith.extui %496 : vector<8x128xi1> to vector<8x128xi32>
    %498 = arith.sitofp %497 : vector<8x128xi32> to vector<8x128xf32>
    %499 = arith.addf %493, %498 : vector<8x128xf32>
    %500 = tpu.concatenate %401, %450, %499 in 0 : vector<8x128xf32>, vector<8x128xf32>, vector<8x128xf32> -> vector<24x128xf32>
    %501 = arith.truncf %500 : vector<24x128xf32> to vector<24x128xbf16>
    %cst_31 = arith.constant dense<0.000000e+00> : vector<24x128xf32>
    %502 = tpu.matmul %501, %2, %cst_31 {dimension_numbers = #tpu.dot_dimension_numbers<[1], [0], [0], [1], [0, 0, 1, 1], [], []>} : vector<24x128xbf16>, vector<128x128xbf16>, vector<24x128xf32> -> vector<24x128xf32>
    %503 = vector.broadcast %4 : vector<1x128xf32> to vector<24x128xf32>
    %504 = arith.addf %502, %503 : vector<24x128xf32>
    %505 = arith.truncf %352 : vector<24x32xf32> to vector<24x32xbf16>
    %cst_32 = arith.constant dense<0.000000e+00> : vector<24x128xf32>
    %506 = tpu.matmul %505, %3, %cst_32 {dimension_numbers = #tpu.dot_dimension_numbers<[1], [0], [0], [1], [0, 0, 1, 1], [], []>} : vector<24x32xbf16>, vector<32x128xbf16>, vector<24x128xf32> -> vector<24x128xf32>
    %507 = arith.addf %504, %506 : vector<24x128xf32>
    %508 = vector.extract_strided_slice %507 {offsets = [0, 0], sizes = [24, 96], strides = [1, 1]} : vector<24x128xf32> to vector<24x96xf32>
    %509 = arith.negf %508 : vector<24x96xf32>
    %510 = math.exp %509 : vector<24x96xf32>
    %cst_33 = arith.constant 1.000000e+00 : f32
    %511 = vector.broadcast %cst_33 : f32 to vector<24x96xf32>
    %512 = arith.addf %511, %510 : vector<24x96xf32>
    %513 = arith.divf %511, %512 : vector<24x96xf32>
    %514 = vector.extract_strided_slice %513 {offsets = [0, 0], sizes = [24, 32], strides = [1, 1]} : vector<24x96xf32> to vector<24x32xf32>
    %515 = vector.extract_strided_slice %513 {offsets = [0, 32], sizes = [24, 32], strides = [1, 1]} : vector<24x96xf32> to vector<24x32xf32>
    %516 = vector.extract_strided_slice %513 {offsets = [0, 64], sizes = [24, 32], strides = [1, 1]} : vector<24x96xf32> to vector<24x32xf32>
    %517 = vector.extract_strided_slice %507 {offsets = [0, 96], sizes = [24, 32], strides = [1, 1]} : vector<24x128xf32> to vector<24x32xf32>
    %518 = math.tanh %517 : vector<24x32xf32>
    %519 = arith.mulf %515, %350 : vector<24x32xf32>
    %520 = arith.mulf %514, %518 : vector<24x32xf32>
    %521 = arith.addf %519, %520 : vector<24x32xf32>
    %522 = math.tanh %521 : vector<24x32xf32>
    %523 = arith.mulf %516, %522 : vector<24x32xf32>
    %524 = arith.truncf %523 : vector<24x32xf32> to vector<24x32xbf16>
    %cst_34 = arith.constant dense<0.000000e+00> : vector<24x128xf32>
    %525 = tpu.matmul %524, %5, %cst_34 {dimension_numbers = #tpu.dot_dimension_numbers<[1], [0], [0], [1], [0, 0, 1, 1], [], []>} : vector<24x32xbf16>, vector<32x128xbf16>, vector<24x128xf32> -> vector<24x128xf32>
    %526 = vector.broadcast %7 : vector<1x128xf32> to vector<24x128xf32>
    %527 = arith.addf %525, %526 : vector<24x128xf32>
    %cst_35 = arith.constant 0.000000e+00 : f32
    %528 = vector.broadcast %cst_35 : f32 to vector<8x32xf32>
    %cst_36 = arith.constant 0.000000e+00 : f32
    %529 = vector.broadcast %cst_36 : f32 to vector<8x32xf32>
    %530 = vector.extract_strided_slice %527 {offsets = [0, 0], sizes = [8, 128], strides = [1, 1]} : vector<24x128xf32> to vector<8x128xf32>
    %531 = arith.truncf %528 : vector<8x32xf32> to vector<8x32xbf16>
    %cst_37 = arith.constant dense<0.000000e+00> : vector<8x128xf32>
    %532 = tpu.matmul %531, %6, %cst_37 {dimension_numbers = #tpu.dot_dimension_numbers<[1], [0], [0], [1], [0, 0, 1, 1], [], []>} : vector<8x32xbf16>, vector<32x128xbf16>, vector<8x128xf32> -> vector<8x128xf32>
    %533 = arith.addf %530, %532 : vector<8x128xf32>
    %534 = vector.extract_strided_slice %533 {offsets = [0, 0], sizes = [8, 96], strides = [1, 1]} : vector<8x128xf32> to vector<8x96xf32>
    %535 = arith.negf %534 : vector<8x96xf32>
    %536 = math.exp %535 : vector<8x96xf32>
    %cst_38 = arith.constant 1.000000e+00 : f32
    %537 = vector.broadcast %cst_38 : f32 to vector<8x96xf32>
    %538 = arith.addf %537, %536 : vector<8x96xf32>
    %539 = arith.divf %537, %538 : vector<8x96xf32>
    %540 = vector.extract_strided_slice %539 {offsets = [0, 0], sizes = [8, 32], strides = [1, 1]} : vector<8x96xf32> to vector<8x32xf32>
    %541 = vector.extract_strided_slice %539 {offsets = [0, 32], sizes = [8, 32], strides = [1, 1]} : vector<8x96xf32> to vector<8x32xf32>
    %542 = vector.extract_strided_slice %539 {offsets = [0, 64], sizes = [8, 32], strides = [1, 1]} : vector<8x96xf32> to vector<8x32xf32>
    %543 = vector.extract_strided_slice %533 {offsets = [0, 96], sizes = [8, 32], strides = [1, 1]} : vector<8x128xf32> to vector<8x32xf32>
    %544 = math.tanh %543 : vector<8x32xf32>
    %545 = arith.mulf %541, %529 : vector<8x32xf32>
    %546 = arith.mulf %540, %544 : vector<8x32xf32>
    %547 = arith.addf %545, %546 : vector<8x32xf32>
    %548 = math.tanh %547 : vector<8x32xf32>
    %549 = arith.mulf %542, %548 : vector<8x32xf32>
    %550 = vector.extract_strided_slice %527 {offsets = [8, 0], sizes = [8, 128], strides = [1, 1]} : vector<24x128xf32> to vector<8x128xf32>
    %551 = arith.truncf %549 : vector<8x32xf32> to vector<8x32xbf16>
    %cst_39 = arith.constant dense<0.000000e+00> : vector<8x128xf32>
    %552 = tpu.matmul %551, %6, %cst_39 {dimension_numbers = #tpu.dot_dimension_numbers<[1], [0], [0], [1], [0, 0, 1, 1], [], []>} : vector<8x32xbf16>, vector<32x128xbf16>, vector<8x128xf32> -> vector<8x128xf32>
    %553 = arith.addf %550, %552 : vector<8x128xf32>
    %554 = vector.extract_strided_slice %553 {offsets = [0, 0], sizes = [8, 96], strides = [1, 1]} : vector<8x128xf32> to vector<8x96xf32>
    %555 = arith.negf %554 : vector<8x96xf32>
    %556 = math.exp %555 : vector<8x96xf32>
    %cst_40 = arith.constant 1.000000e+00 : f32
    %557 = vector.broadcast %cst_40 : f32 to vector<8x96xf32>
    %558 = arith.addf %557, %556 : vector<8x96xf32>
    %559 = arith.divf %557, %558 : vector<8x96xf32>
    %560 = vector.extract_strided_slice %559 {offsets = [0, 0], sizes = [8, 32], strides = [1, 1]} : vector<8x96xf32> to vector<8x32xf32>
    %561 = vector.extract_strided_slice %559 {offsets = [0, 32], sizes = [8, 32], strides = [1, 1]} : vector<8x96xf32> to vector<8x32xf32>
    %562 = vector.extract_strided_slice %559 {offsets = [0, 64], sizes = [8, 32], strides = [1, 1]} : vector<8x96xf32> to vector<8x32xf32>
    %563 = vector.extract_strided_slice %553 {offsets = [0, 96], sizes = [8, 32], strides = [1, 1]} : vector<8x128xf32> to vector<8x32xf32>
    %564 = math.tanh %563 : vector<8x32xf32>
    %565 = arith.mulf %561, %547 : vector<8x32xf32>
    %566 = arith.mulf %560, %564 : vector<8x32xf32>
    %567 = arith.addf %565, %566 : vector<8x32xf32>
    %568 = math.tanh %567 : vector<8x32xf32>
    %569 = arith.mulf %562, %568 : vector<8x32xf32>
    %570 = vector.extract_strided_slice %527 {offsets = [16, 0], sizes = [8, 128], strides = [1, 1]} : vector<24x128xf32> to vector<8x128xf32>
    %571 = arith.truncf %569 : vector<8x32xf32> to vector<8x32xbf16>
    %cst_41 = arith.constant dense<0.000000e+00> : vector<8x128xf32>
    %572 = tpu.matmul %571, %6, %cst_41 {dimension_numbers = #tpu.dot_dimension_numbers<[1], [0], [0], [1], [0, 0, 1, 1], [], []>} : vector<8x32xbf16>, vector<32x128xbf16>, vector<8x128xf32> -> vector<8x128xf32>
    %573 = arith.addf %570, %572 : vector<8x128xf32>
    %574 = vector.extract_strided_slice %573 {offsets = [0, 0], sizes = [8, 96], strides = [1, 1]} : vector<8x128xf32> to vector<8x96xf32>
    %575 = arith.negf %574 : vector<8x96xf32>
    %576 = math.exp %575 : vector<8x96xf32>
    %cst_42 = arith.constant 1.000000e+00 : f32
    %577 = vector.broadcast %cst_42 : f32 to vector<8x96xf32>
    %578 = arith.addf %577, %576 : vector<8x96xf32>
    %579 = arith.divf %577, %578 : vector<8x96xf32>
    %580 = vector.extract_strided_slice %579 {offsets = [0, 0], sizes = [8, 32], strides = [1, 1]} : vector<8x96xf32> to vector<8x32xf32>
    %581 = vector.extract_strided_slice %579 {offsets = [0, 32], sizes = [8, 32], strides = [1, 1]} : vector<8x96xf32> to vector<8x32xf32>
    %582 = vector.extract_strided_slice %579 {offsets = [0, 64], sizes = [8, 32], strides = [1, 1]} : vector<8x96xf32> to vector<8x32xf32>
    %583 = vector.extract_strided_slice %573 {offsets = [0, 96], sizes = [8, 32], strides = [1, 1]} : vector<8x128xf32> to vector<8x32xf32>
    %584 = math.tanh %583 : vector<8x32xf32>
    %585 = arith.mulf %581, %567 : vector<8x32xf32>
    %586 = arith.mulf %580, %584 : vector<8x32xf32>
    %587 = arith.addf %585, %586 : vector<8x32xf32>
    %588 = math.tanh %587 : vector<8x32xf32>
    %589 = arith.mulf %582, %588 : vector<8x32xf32>
    %cst_43 = arith.constant 0.000000e+00 : f32
    %590 = vector.broadcast %cst_43 : f32 to vector<8x128xf32>
    %591 = vector.extract_strided_slice %0 {offsets = [0, 72], sizes = [8, 1], strides = [1, 1]} : vector<8x256xi32> to vector<8x1xi32>
    %592 = vector.broadcast %591 : vector<8x1xi32> to vector<8x128xi32>
    %593 = arith.cmpi eq, %592, %8 : vector<8x128xi32>
    %594 = arith.extui %593 : vector<8x128xi1> to vector<8x128xi32>
    %595 = arith.sitofp %594 : vector<8x128xi32> to vector<8x128xf32>
    %596 = arith.addf %590, %595 : vector<8x128xf32>
    %597 = vector.extract_strided_slice %0 {offsets = [0, 73], sizes = [8, 1], strides = [1, 1]} : vector<8x256xi32> to vector<8x1xi32>
    %598 = vector.broadcast %597 : vector<8x1xi32> to vector<8x128xi32>
    %599 = arith.cmpi eq, %598, %8 : vector<8x128xi32>
    %600 = arith.extui %599 : vector<8x128xi1> to vector<8x128xi32>
    %601 = arith.sitofp %600 : vector<8x128xi32> to vector<8x128xf32>
    %602 = arith.addf %596, %601 : vector<8x128xf32>
    %603 = vector.extract_strided_slice %0 {offsets = [0, 74], sizes = [8, 1], strides = [1, 1]} : vector<8x256xi32> to vector<8x1xi32>
    %604 = vector.broadcast %603 : vector<8x1xi32> to vector<8x128xi32>
    %605 = arith.cmpi eq, %604, %8 : vector<8x128xi32>
    %606 = arith.extui %605 : vector<8x128xi1> to vector<8x128xi32>
    %607 = arith.sitofp %606 : vector<8x128xi32> to vector<8x128xf32>
    %608 = arith.addf %602, %607 : vector<8x128xf32>
    %609 = vector.extract_strided_slice %0 {offsets = [0, 75], sizes = [8, 1], strides = [1, 1]} : vector<8x256xi32> to vector<8x1xi32>
    %610 = vector.broadcast %609 : vector<8x1xi32> to vector<8x128xi32>
    %611 = arith.cmpi eq, %610, %8 : vector<8x128xi32>
    %612 = arith.extui %611 : vector<8x128xi1> to vector<8x128xi32>
    %613 = arith.sitofp %612 : vector<8x128xi32> to vector<8x128xf32>
    %614 = arith.addf %608, %613 : vector<8x128xf32>
    %615 = vector.extract_strided_slice %0 {offsets = [0, 76], sizes = [8, 1], strides = [1, 1]} : vector<8x256xi32> to vector<8x1xi32>
    %616 = vector.broadcast %615 : vector<8x1xi32> to vector<8x128xi32>
    %617 = arith.cmpi eq, %616, %8 : vector<8x128xi32>
    %618 = arith.extui %617 : vector<8x128xi1> to vector<8x128xi32>
    %619 = arith.sitofp %618 : vector<8x128xi32> to vector<8x128xf32>
    %620 = arith.addf %614, %619 : vector<8x128xf32>
    %621 = vector.extract_strided_slice %0 {offsets = [0, 77], sizes = [8, 1], strides = [1, 1]} : vector<8x256xi32> to vector<8x1xi32>
    %622 = vector.broadcast %621 : vector<8x1xi32> to vector<8x128xi32>
    %623 = arith.cmpi eq, %622, %8 : vector<8x128xi32>
    %624 = arith.extui %623 : vector<8x128xi1> to vector<8x128xi32>
    %625 = arith.sitofp %624 : vector<8x128xi32> to vector<8x128xf32>
    %626 = arith.addf %620, %625 : vector<8x128xf32>
    %627 = vector.extract_strided_slice %0 {offsets = [0, 78], sizes = [8, 1], strides = [1, 1]} : vector<8x256xi32> to vector<8x1xi32>
    %628 = vector.broadcast %627 : vector<8x1xi32> to vector<8x128xi32>
    %629 = arith.cmpi eq, %628, %8 : vector<8x128xi32>
    %630 = arith.extui %629 : vector<8x128xi1> to vector<8x128xi32>
    %631 = arith.sitofp %630 : vector<8x128xi32> to vector<8x128xf32>
    %632 = arith.addf %626, %631 : vector<8x128xf32>
    %633 = vector.extract_strided_slice %0 {offsets = [0, 79], sizes = [8, 1], strides = [1, 1]} : vector<8x256xi32> to vector<8x1xi32>
    %634 = vector.broadcast %633 : vector<8x1xi32> to vector<8x128xi32>
    %635 = arith.cmpi eq, %634, %8 : vector<8x128xi32>
    %636 = arith.extui %635 : vector<8x128xi1> to vector<8x128xi32>
    %637 = arith.sitofp %636 : vector<8x128xi32> to vector<8x128xf32>
    %638 = arith.addf %632, %637 : vector<8x128xf32>
    %639 = vector.extract_strided_slice %0 {offsets = [0, 80], sizes = [8, 1], strides = [1, 1]} : vector<8x256xi32> to vector<8x1xi32>
    %640 = vector.broadcast %639 : vector<8x1xi32> to vector<8x128xi32>
    %641 = arith.cmpi eq, %640, %8 : vector<8x128xi32>
    %642 = arith.extui %641 : vector<8x128xi1> to vector<8x128xi32>
    %643 = arith.sitofp %642 : vector<8x128xi32> to vector<8x128xf32>
    %644 = arith.addf %638, %643 : vector<8x128xf32>
    %645 = vector.extract_strided_slice %0 {offsets = [0, 81], sizes = [8, 1], strides = [1, 1]} : vector<8x256xi32> to vector<8x1xi32>
    %646 = vector.broadcast %645 : vector<8x1xi32> to vector<8x128xi32>
    %647 = arith.cmpi eq, %646, %8 : vector<8x128xi32>
    %648 = arith.extui %647 : vector<8x128xi1> to vector<8x128xi32>
    %649 = arith.sitofp %648 : vector<8x128xi32> to vector<8x128xf32>
    %650 = arith.addf %644, %649 : vector<8x128xf32>
    %651 = vector.extract_strided_slice %0 {offsets = [0, 82], sizes = [8, 1], strides = [1, 1]} : vector<8x256xi32> to vector<8x1xi32>
    %652 = vector.broadcast %651 : vector<8x1xi32> to vector<8x128xi32>
    %653 = arith.cmpi eq, %652, %8 : vector<8x128xi32>
    %654 = arith.extui %653 : vector<8x128xi1> to vector<8x128xi32>
    %655 = arith.sitofp %654 : vector<8x128xi32> to vector<8x128xf32>
    %656 = arith.addf %650, %655 : vector<8x128xf32>
    %657 = vector.extract_strided_slice %0 {offsets = [0, 83], sizes = [8, 1], strides = [1, 1]} : vector<8x256xi32> to vector<8x1xi32>
    %658 = vector.broadcast %657 : vector<8x1xi32> to vector<8x128xi32>
    %659 = arith.cmpi eq, %658, %8 : vector<8x128xi32>
    %660 = arith.extui %659 : vector<8x128xi1> to vector<8x128xi32>
    %661 = arith.sitofp %660 : vector<8x128xi32> to vector<8x128xf32>
    %662 = arith.addf %656, %661 : vector<8x128xf32>
    %663 = vector.extract_strided_slice %0 {offsets = [0, 84], sizes = [8, 1], strides = [1, 1]} : vector<8x256xi32> to vector<8x1xi32>
    %664 = vector.broadcast %663 : vector<8x1xi32> to vector<8x128xi32>
    %665 = arith.cmpi eq, %664, %8 : vector<8x128xi32>
    %666 = arith.extui %665 : vector<8x128xi1> to vector<8x128xi32>
    %667 = arith.sitofp %666 : vector<8x128xi32> to vector<8x128xf32>
    %668 = arith.addf %662, %667 : vector<8x128xf32>
    %669 = vector.extract_strided_slice %0 {offsets = [0, 85], sizes = [8, 1], strides = [1, 1]} : vector<8x256xi32> to vector<8x1xi32>
    %670 = vector.broadcast %669 : vector<8x1xi32> to vector<8x128xi32>
    %671 = arith.cmpi eq, %670, %8 : vector<8x128xi32>
    %672 = arith.extui %671 : vector<8x128xi1> to vector<8x128xi32>
    %673 = arith.sitofp %672 : vector<8x128xi32> to vector<8x128xf32>
    %674 = arith.addf %668, %673 : vector<8x128xf32>
    %675 = vector.extract_strided_slice %0 {offsets = [0, 86], sizes = [8, 1], strides = [1, 1]} : vector<8x256xi32> to vector<8x1xi32>
    %676 = vector.broadcast %675 : vector<8x1xi32> to vector<8x128xi32>
    %677 = arith.cmpi eq, %676, %8 : vector<8x128xi32>
    %678 = arith.extui %677 : vector<8x128xi1> to vector<8x128xi32>
    %679 = arith.sitofp %678 : vector<8x128xi32> to vector<8x128xf32>
    %680 = arith.addf %674, %679 : vector<8x128xf32>
    %681 = vector.extract_strided_slice %0 {offsets = [0, 87], sizes = [8, 1], strides = [1, 1]} : vector<8x256xi32> to vector<8x1xi32>
    %682 = vector.broadcast %681 : vector<8x1xi32> to vector<8x128xi32>
    %683 = arith.cmpi eq, %682, %8 : vector<8x128xi32>
    %684 = arith.extui %683 : vector<8x128xi1> to vector<8x128xi32>
    %685 = arith.sitofp %684 : vector<8x128xi32> to vector<8x128xf32>
    %686 = arith.addf %680, %685 : vector<8x128xf32>
    %687 = vector.extract_strided_slice %0 {offsets = [0, 88], sizes = [8, 1], strides = [1, 1]} : vector<8x256xi32> to vector<8x1xi32>
    %688 = vector.broadcast %687 : vector<8x1xi32> to vector<8x128xi32>
    %689 = arith.cmpi eq, %688, %8 : vector<8x128xi32>
    %690 = arith.extui %689 : vector<8x128xi1> to vector<8x128xi32>
    %691 = arith.sitofp %690 : vector<8x128xi32> to vector<8x128xf32>
    %692 = arith.addf %686, %691 : vector<8x128xf32>
    %693 = vector.extract_strided_slice %0 {offsets = [0, 89], sizes = [8, 1], strides = [1, 1]} : vector<8x256xi32> to vector<8x1xi32>
    %694 = vector.broadcast %693 : vector<8x1xi32> to vector<8x128xi32>
    %695 = arith.cmpi eq, %694, %8 : vector<8x128xi32>
    %696 = arith.extui %695 : vector<8x128xi1> to vector<8x128xi32>
    %697 = arith.sitofp %696 : vector<8x128xi32> to vector<8x128xf32>
    %698 = arith.addf %692, %697 : vector<8x128xf32>
    %699 = vector.extract_strided_slice %0 {offsets = [0, 90], sizes = [8, 1], strides = [1, 1]} : vector<8x256xi32> to vector<8x1xi32>
    %700 = vector.broadcast %699 : vector<8x1xi32> to vector<8x128xi32>
    %701 = arith.cmpi eq, %700, %8 : vector<8x128xi32>
    %702 = arith.extui %701 : vector<8x128xi1> to vector<8x128xi32>
    %703 = arith.sitofp %702 : vector<8x128xi32> to vector<8x128xf32>
    %704 = arith.addf %698, %703 : vector<8x128xf32>
    %705 = vector.extract_strided_slice %0 {offsets = [0, 91], sizes = [8, 1], strides = [1, 1]} : vector<8x256xi32> to vector<8x1xi32>
    %706 = vector.broadcast %705 : vector<8x1xi32> to vector<8x128xi32>
    %707 = arith.cmpi eq, %706, %8 : vector<8x128xi32>
    %708 = arith.extui %707 : vector<8x128xi1> to vector<8x128xi32>
    %709 = arith.sitofp %708 : vector<8x128xi32> to vector<8x128xf32>
    %710 = arith.addf %704, %709 : vector<8x128xf32>
    %711 = vector.extract_strided_slice %0 {offsets = [0, 92], sizes = [8, 1], strides = [1, 1]} : vector<8x256xi32> to vector<8x1xi32>
    %712 = vector.broadcast %711 : vector<8x1xi32> to vector<8x128xi32>
    %713 = arith.cmpi eq, %712, %8 : vector<8x128xi32>
    %714 = arith.extui %713 : vector<8x128xi1> to vector<8x128xi32>
    %715 = arith.sitofp %714 : vector<8x128xi32> to vector<8x128xf32>
    %716 = arith.addf %710, %715 : vector<8x128xf32>
    %717 = vector.extract_strided_slice %0 {offsets = [0, 93], sizes = [8, 1], strides = [1, 1]} : vector<8x256xi32> to vector<8x1xi32>
    %718 = vector.broadcast %717 : vector<8x1xi32> to vector<8x128xi32>
    %719 = arith.cmpi eq, %718, %8 : vector<8x128xi32>
    %720 = arith.extui %719 : vector<8x128xi1> to vector<8x128xi32>
    %721 = arith.sitofp %720 : vector<8x128xi32> to vector<8x128xf32>
    %722 = arith.addf %716, %721 : vector<8x128xf32>
    %723 = vector.extract_strided_slice %0 {offsets = [0, 94], sizes = [8, 1], strides = [1, 1]} : vector<8x256xi32> to vector<8x1xi32>
    %724 = vector.broadcast %723 : vector<8x1xi32> to vector<8x128xi32>
    %725 = arith.cmpi eq, %724, %8 : vector<8x128xi32>
    %726 = arith.extui %725 : vector<8x128xi1> to vector<8x128xi32>
    %727 = arith.sitofp %726 : vector<8x128xi32> to vector<8x128xf32>
    %728 = arith.addf %722, %727 : vector<8x128xf32>
    %729 = vector.extract_strided_slice %0 {offsets = [0, 95], sizes = [8, 1], strides = [1, 1]} : vector<8x256xi32> to vector<8x1xi32>
    %730 = vector.broadcast %729 : vector<8x1xi32> to vector<8x128xi32>
    %731 = arith.cmpi eq, %730, %8 : vector<8x128xi32>
    %732 = arith.extui %731 : vector<8x128xi1> to vector<8x128xi32>
    %733 = arith.sitofp %732 : vector<8x128xi32> to vector<8x128xf32>
    %734 = arith.addf %728, %733 : vector<8x128xf32>
    %735 = vector.extract_strided_slice %0 {offsets = [0, 96], sizes = [8, 1], strides = [1, 1]} : vector<8x256xi32> to vector<8x1xi32>
    %736 = vector.broadcast %735 : vector<8x1xi32> to vector<8x128xi32>
    %737 = arith.cmpi eq, %736, %8 : vector<8x128xi32>
    %738 = arith.extui %737 : vector<8x128xi1> to vector<8x128xi32>
    %739 = arith.sitofp %738 : vector<8x128xi32> to vector<8x128xf32>
    %740 = arith.addf %734, %739 : vector<8x128xf32>
    %741 = vector.extract_strided_slice %0 {offsets = [0, 97], sizes = [8, 1], strides = [1, 1]} : vector<8x256xi32> to vector<8x1xi32>
    %742 = vector.broadcast %741 : vector<8x1xi32> to vector<8x128xi32>
    %743 = arith.cmpi eq, %742, %8 : vector<8x128xi32>
    %744 = arith.extui %743 : vector<8x128xi1> to vector<8x128xi32>
    %745 = arith.sitofp %744 : vector<8x128xi32> to vector<8x128xf32>
    %746 = arith.addf %740, %745 : vector<8x128xf32>
    %747 = vector.extract_strided_slice %0 {offsets = [0, 98], sizes = [8, 1], strides = [1, 1]} : vector<8x256xi32> to vector<8x1xi32>
    %748 = vector.broadcast %747 : vector<8x1xi32> to vector<8x128xi32>
    %749 = arith.cmpi eq, %748, %8 : vector<8x128xi32>
    %750 = arith.extui %749 : vector<8x128xi1> to vector<8x128xi32>
    %751 = arith.sitofp %750 : vector<8x128xi32> to vector<8x128xf32>
    %752 = arith.addf %746, %751 : vector<8x128xf32>
    %753 = vector.extract_strided_slice %0 {offsets = [0, 99], sizes = [8, 1], strides = [1, 1]} : vector<8x256xi32> to vector<8x1xi32>
    %754 = vector.broadcast %753 : vector<8x1xi32> to vector<8x128xi32>
    %755 = arith.cmpi eq, %754, %8 : vector<8x128xi32>
    %756 = arith.extui %755 : vector<8x128xi1> to vector<8x128xi32>
    %757 = arith.sitofp %756 : vector<8x128xi32> to vector<8x128xf32>
    %758 = arith.addf %752, %757 : vector<8x128xf32>
    %759 = vector.extract_strided_slice %0 {offsets = [0, 100], sizes = [8, 1], strides = [1, 1]} : vector<8x256xi32> to vector<8x1xi32>
    %760 = vector.broadcast %759 : vector<8x1xi32> to vector<8x128xi32>
    %761 = arith.cmpi eq, %760, %8 : vector<8x128xi32>
    %762 = arith.extui %761 : vector<8x128xi1> to vector<8x128xi32>
    %763 = arith.sitofp %762 : vector<8x128xi32> to vector<8x128xf32>
    %764 = arith.addf %758, %763 : vector<8x128xf32>
    %765 = vector.extract_strided_slice %0 {offsets = [0, 101], sizes = [8, 1], strides = [1, 1]} : vector<8x256xi32> to vector<8x1xi32>
    %766 = vector.broadcast %765 : vector<8x1xi32> to vector<8x128xi32>
    %767 = arith.cmpi eq, %766, %8 : vector<8x128xi32>
    %768 = arith.extui %767 : vector<8x128xi1> to vector<8x128xi32>
    %769 = arith.sitofp %768 : vector<8x128xi32> to vector<8x128xf32>
    %770 = arith.addf %764, %769 : vector<8x128xf32>
    %771 = arith.truncf %770 : vector<8x128xf32> to vector<8x128xbf16>
    %cst_44 = arith.constant dense<0.000000e+00> : vector<8x32xf32>
    %772 = tpu.matmul %771, %1, %cst_44 {dimension_numbers = #tpu.dot_dimension_numbers<[1], [0], [0], [1], [0, 0, 1, 1], [], []>} : vector<8x128xbf16>, vector<128x32xbf16>, vector<8x32xf32> -> vector<8x32xf32>
    %773 = arith.mulf %589, %772 : vector<8x32xf32>
    %cst_45 = arith.constant dense<0.000000e+00> : vector<8xf32>
    %774 = vector.multi_reduction <add>, %773, %cst_45 [1] : vector<8x32xf32> to vector<8xf32>
    %775 = vector.shape_cast %774 : vector<8xf32> to vector<8x1xf32>
    %cst_46 = arith.constant 0.000000e+00 : f32
    %776 = vector.broadcast %cst_46 : f32 to vector<8x128xf32>
    %777 = vector.extract_strided_slice %0 {offsets = [0, 102], sizes = [8, 1], strides = [1, 1]} : vector<8x256xi32> to vector<8x1xi32>
    %778 = vector.broadcast %777 : vector<8x1xi32> to vector<8x128xi32>
    %779 = arith.cmpi eq, %778, %8 : vector<8x128xi32>
    %780 = arith.extui %779 : vector<8x128xi1> to vector<8x128xi32>
    %781 = arith.sitofp %780 : vector<8x128xi32> to vector<8x128xf32>
    %782 = arith.addf %776, %781 : vector<8x128xf32>
    %783 = vector.extract_strided_slice %0 {offsets = [0, 103], sizes = [8, 1], strides = [1, 1]} : vector<8x256xi32> to vector<8x1xi32>
    %784 = vector.broadcast %783 : vector<8x1xi32> to vector<8x128xi32>
    %785 = arith.cmpi eq, %784, %8 : vector<8x128xi32>
    %786 = arith.extui %785 : vector<8x128xi1> to vector<8x128xi32>
    %787 = arith.sitofp %786 : vector<8x128xi32> to vector<8x128xf32>
    %788 = arith.addf %782, %787 : vector<8x128xf32>
    %789 = vector.extract_strided_slice %0 {offsets = [0, 104], sizes = [8, 1], strides = [1, 1]} : vector<8x256xi32> to vector<8x1xi32>
    %790 = vector.broadcast %789 : vector<8x1xi32> to vector<8x128xi32>
    %791 = arith.cmpi eq, %790, %8 : vector<8x128xi32>
    %792 = arith.extui %791 : vector<8x128xi1> to vector<8x128xi32>
    %793 = arith.sitofp %792 : vector<8x128xi32> to vector<8x128xf32>
    %794 = arith.addf %788, %793 : vector<8x128xf32>
    %795 = vector.extract_strided_slice %0 {offsets = [0, 105], sizes = [8, 1], strides = [1, 1]} : vector<8x256xi32> to vector<8x1xi32>
    %796 = vector.broadcast %795 : vector<8x1xi32> to vector<8x128xi32>
    %797 = arith.cmpi eq, %796, %8 : vector<8x128xi32>
    %798 = arith.extui %797 : vector<8x128xi1> to vector<8x128xi32>
    %799 = arith.sitofp %798 : vector<8x128xi32> to vector<8x128xf32>
    %800 = arith.addf %794, %799 : vector<8x128xf32>
    %801 = vector.extract_strided_slice %0 {offsets = [0, 106], sizes = [8, 1], strides = [1, 1]} : vector<8x256xi32> to vector<8x1xi32>
    %802 = vector.broadcast %801 : vector<8x1xi32> to vector<8x128xi32>
    %803 = arith.cmpi eq, %802, %8 : vector<8x128xi32>
    %804 = arith.extui %803 : vector<8x128xi1> to vector<8x128xi32>
    %805 = arith.sitofp %804 : vector<8x128xi32> to vector<8x128xf32>
    %806 = arith.addf %800, %805 : vector<8x128xf32>
    %807 = vector.extract_strided_slice %0 {offsets = [0, 107], sizes = [8, 1], strides = [1, 1]} : vector<8x256xi32> to vector<8x1xi32>
    %808 = vector.broadcast %807 : vector<8x1xi32> to vector<8x128xi32>
    %809 = arith.cmpi eq, %808, %8 : vector<8x128xi32>
    %810 = arith.extui %809 : vector<8x128xi1> to vector<8x128xi32>
    %811 = arith.sitofp %810 : vector<8x128xi32> to vector<8x128xf32>
    %812 = arith.addf %806, %811 : vector<8x128xf32>
    %813 = vector.extract_strided_slice %0 {offsets = [0, 108], sizes = [8, 1], strides = [1, 1]} : vector<8x256xi32> to vector<8x1xi32>
    %814 = vector.broadcast %813 : vector<8x1xi32> to vector<8x128xi32>
    %815 = arith.cmpi eq, %814, %8 : vector<8x128xi32>
    %816 = arith.extui %815 : vector<8x128xi1> to vector<8x128xi32>
    %817 = arith.sitofp %816 : vector<8x128xi32> to vector<8x128xf32>
    %818 = arith.addf %812, %817 : vector<8x128xf32>
    %819 = vector.extract_strided_slice %0 {offsets = [0, 109], sizes = [8, 1], strides = [1, 1]} : vector<8x256xi32> to vector<8x1xi32>
    %820 = vector.broadcast %819 : vector<8x1xi32> to vector<8x128xi32>
    %821 = arith.cmpi eq, %820, %8 : vector<8x128xi32>
    %822 = arith.extui %821 : vector<8x128xi1> to vector<8x128xi32>
    %823 = arith.sitofp %822 : vector<8x128xi32> to vector<8x128xf32>
    %824 = arith.addf %818, %823 : vector<8x128xf32>
    %825 = vector.extract_strided_slice %0 {offsets = [0, 110], sizes = [8, 1], strides = [1, 1]} : vector<8x256xi32> to vector<8x1xi32>
    %826 = vector.broadcast %825 : vector<8x1xi32> to vector<8x128xi32>
    %827 = arith.cmpi eq, %826, %8 : vector<8x128xi32>
    %828 = arith.extui %827 : vector<8x128xi1> to vector<8x128xi32>
    %829 = arith.sitofp %828 : vector<8x128xi32> to vector<8x128xf32>
    %830 = arith.addf %824, %829 : vector<8x128xf32>
    %831 = vector.extract_strided_slice %0 {offsets = [0, 111], sizes = [8, 1], strides = [1, 1]} : vector<8x256xi32> to vector<8x1xi32>
    %832 = vector.broadcast %831 : vector<8x1xi32> to vector<8x128xi32>
    %833 = arith.cmpi eq, %832, %8 : vector<8x128xi32>
    %834 = arith.extui %833 : vector<8x128xi1> to vector<8x128xi32>
    %835 = arith.sitofp %834 : vector<8x128xi32> to vector<8x128xf32>
    %836 = arith.addf %830, %835 : vector<8x128xf32>
    %837 = vector.extract_strided_slice %0 {offsets = [0, 112], sizes = [8, 1], strides = [1, 1]} : vector<8x256xi32> to vector<8x1xi32>
    %838 = vector.broadcast %837 : vector<8x1xi32> to vector<8x128xi32>
    %839 = arith.cmpi eq, %838, %8 : vector<8x128xi32>
    %840 = arith.extui %839 : vector<8x128xi1> to vector<8x128xi32>
    %841 = arith.sitofp %840 : vector<8x128xi32> to vector<8x128xf32>
    %842 = arith.addf %836, %841 : vector<8x128xf32>
    %843 = vector.extract_strided_slice %0 {offsets = [0, 113], sizes = [8, 1], strides = [1, 1]} : vector<8x256xi32> to vector<8x1xi32>
    %844 = vector.broadcast %843 : vector<8x1xi32> to vector<8x128xi32>
    %845 = arith.cmpi eq, %844, %8 : vector<8x128xi32>
    %846 = arith.extui %845 : vector<8x128xi1> to vector<8x128xi32>
    %847 = arith.sitofp %846 : vector<8x128xi32> to vector<8x128xf32>
    %848 = arith.addf %842, %847 : vector<8x128xf32>
    %849 = vector.extract_strided_slice %0 {offsets = [0, 114], sizes = [8, 1], strides = [1, 1]} : vector<8x256xi32> to vector<8x1xi32>
    %850 = vector.broadcast %849 : vector<8x1xi32> to vector<8x128xi32>
    %851 = arith.cmpi eq, %850, %8 : vector<8x128xi32>
    %852 = arith.extui %851 : vector<8x128xi1> to vector<8x128xi32>
    %853 = arith.sitofp %852 : vector<8x128xi32> to vector<8x128xf32>
    %854 = arith.addf %848, %853 : vector<8x128xf32>
    %855 = vector.extract_strided_slice %0 {offsets = [0, 115], sizes = [8, 1], strides = [1, 1]} : vector<8x256xi32> to vector<8x1xi32>
    %856 = vector.broadcast %855 : vector<8x1xi32> to vector<8x128xi32>
    %857 = arith.cmpi eq, %856, %8 : vector<8x128xi32>
    %858 = arith.extui %857 : vector<8x128xi1> to vector<8x128xi32>
    %859 = arith.sitofp %858 : vector<8x128xi32> to vector<8x128xf32>
    %860 = arith.addf %854, %859 : vector<8x128xf32>
    %861 = vector.extract_strided_slice %0 {offsets = [0, 116], sizes = [8, 1], strides = [1, 1]} : vector<8x256xi32> to vector<8x1xi32>
    %862 = vector.broadcast %861 : vector<8x1xi32> to vector<8x128xi32>
    %863 = arith.cmpi eq, %862, %8 : vector<8x128xi32>
    %864 = arith.extui %863 : vector<8x128xi1> to vector<8x128xi32>
    %865 = arith.sitofp %864 : vector<8x128xi32> to vector<8x128xf32>
    %866 = arith.addf %860, %865 : vector<8x128xf32>
    %867 = vector.extract_strided_slice %0 {offsets = [0, 117], sizes = [8, 1], strides = [1, 1]} : vector<8x256xi32> to vector<8x1xi32>
    %868 = vector.broadcast %867 : vector<8x1xi32> to vector<8x128xi32>
    %869 = arith.cmpi eq, %868, %8 : vector<8x128xi32>
    %870 = arith.extui %869 : vector<8x128xi1> to vector<8x128xi32>
    %871 = arith.sitofp %870 : vector<8x128xi32> to vector<8x128xf32>
    %872 = arith.addf %866, %871 : vector<8x128xf32>
    %873 = vector.extract_strided_slice %0 {offsets = [0, 118], sizes = [8, 1], strides = [1, 1]} : vector<8x256xi32> to vector<8x1xi32>
    %874 = vector.broadcast %873 : vector<8x1xi32> to vector<8x128xi32>
    %875 = arith.cmpi eq, %874, %8 : vector<8x128xi32>
    %876 = arith.extui %875 : vector<8x128xi1> to vector<8x128xi32>
    %877 = arith.sitofp %876 : vector<8x128xi32> to vector<8x128xf32>
    %878 = arith.addf %872, %877 : vector<8x128xf32>
    %879 = vector.extract_strided_slice %0 {offsets = [0, 119], sizes = [8, 1], strides = [1, 1]} : vector<8x256xi32> to vector<8x1xi32>
    %880 = vector.broadcast %879 : vector<8x1xi32> to vector<8x128xi32>
    %881 = arith.cmpi eq, %880, %8 : vector<8x128xi32>
    %882 = arith.extui %881 : vector<8x128xi1> to vector<8x128xi32>
    %883 = arith.sitofp %882 : vector<8x128xi32> to vector<8x128xf32>
    %884 = arith.addf %878, %883 : vector<8x128xf32>
    %885 = vector.extract_strided_slice %0 {offsets = [0, 120], sizes = [8, 1], strides = [1, 1]} : vector<8x256xi32> to vector<8x1xi32>
    %886 = vector.broadcast %885 : vector<8x1xi32> to vector<8x128xi32>
    %887 = arith.cmpi eq, %886, %8 : vector<8x128xi32>
    %888 = arith.extui %887 : vector<8x128xi1> to vector<8x128xi32>
    %889 = arith.sitofp %888 : vector<8x128xi32> to vector<8x128xf32>
    %890 = arith.addf %884, %889 : vector<8x128xf32>
    %891 = vector.extract_strided_slice %0 {offsets = [0, 121], sizes = [8, 1], strides = [1, 1]} : vector<8x256xi32> to vector<8x1xi32>
    %892 = vector.broadcast %891 : vector<8x1xi32> to vector<8x128xi32>
    %893 = arith.cmpi eq, %892, %8 : vector<8x128xi32>
    %894 = arith.extui %893 : vector<8x128xi1> to vector<8x128xi32>
    %895 = arith.sitofp %894 : vector<8x128xi32> to vector<8x128xf32>
    %896 = arith.addf %890, %895 : vector<8x128xf32>
    %897 = vector.extract_strided_slice %0 {offsets = [0, 122], sizes = [8, 1], strides = [1, 1]} : vector<8x256xi32> to vector<8x1xi32>
    %898 = vector.broadcast %897 : vector<8x1xi32> to vector<8x128xi32>
    %899 = arith.cmpi eq, %898, %8 : vector<8x128xi32>
    %900 = arith.extui %899 : vector<8x128xi1> to vector<8x128xi32>
    %901 = arith.sitofp %900 : vector<8x128xi32> to vector<8x128xf32>
    %902 = arith.addf %896, %901 : vector<8x128xf32>
    %903 = vector.extract_strided_slice %0 {offsets = [0, 123], sizes = [8, 1], strides = [1, 1]} : vector<8x256xi32> to vector<8x1xi32>
    %904 = vector.broadcast %903 : vector<8x1xi32> to vector<8x128xi32>
    %905 = arith.cmpi eq, %904, %8 : vector<8x128xi32>
    %906 = arith.extui %905 : vector<8x128xi1> to vector<8x128xi32>
    %907 = arith.sitofp %906 : vector<8x128xi32> to vector<8x128xf32>
    %908 = arith.addf %902, %907 : vector<8x128xf32>
    %909 = vector.extract_strided_slice %0 {offsets = [0, 124], sizes = [8, 1], strides = [1, 1]} : vector<8x256xi32> to vector<8x1xi32>
    %910 = vector.broadcast %909 : vector<8x1xi32> to vector<8x128xi32>
    %911 = arith.cmpi eq, %910, %8 : vector<8x128xi32>
    %912 = arith.extui %911 : vector<8x128xi1> to vector<8x128xi32>
    %913 = arith.sitofp %912 : vector<8x128xi32> to vector<8x128xf32>
    %914 = arith.addf %908, %913 : vector<8x128xf32>
    %915 = vector.extract_strided_slice %0 {offsets = [0, 125], sizes = [8, 1], strides = [1, 1]} : vector<8x256xi32> to vector<8x1xi32>
    %916 = vector.broadcast %915 : vector<8x1xi32> to vector<8x128xi32>
    %917 = arith.cmpi eq, %916, %8 : vector<8x128xi32>
    %918 = arith.extui %917 : vector<8x128xi1> to vector<8x128xi32>
    %919 = arith.sitofp %918 : vector<8x128xi32> to vector<8x128xf32>
    %920 = arith.addf %914, %919 : vector<8x128xf32>
    %921 = vector.extract_strided_slice %0 {offsets = [0, 126], sizes = [8, 1], strides = [1, 1]} : vector<8x256xi32> to vector<8x1xi32>
    %922 = vector.broadcast %921 : vector<8x1xi32> to vector<8x128xi32>
    %923 = arith.cmpi eq, %922, %8 : vector<8x128xi32>
    %924 = arith.extui %923 : vector<8x128xi1> to vector<8x128xi32>
    %925 = arith.sitofp %924 : vector<8x128xi32> to vector<8x128xf32>
    %926 = arith.addf %920, %925 : vector<8x128xf32>
    %927 = vector.extract_strided_slice %0 {offsets = [0, 127], sizes = [8, 1], strides = [1, 1]} : vector<8x256xi32> to vector<8x1xi32>
    %928 = vector.broadcast %927 : vector<8x1xi32> to vector<8x128xi32>
    %929 = arith.cmpi eq, %928, %8 : vector<8x128xi32>
    %930 = arith.extui %929 : vector<8x128xi1> to vector<8x128xi32>
    %931 = arith.sitofp %930 : vector<8x128xi32> to vector<8x128xf32>
    %932 = arith.addf %926, %931 : vector<8x128xf32>
    %933 = vector.extract_strided_slice %0 {offsets = [0, 128], sizes = [8, 1], strides = [1, 1]} : vector<8x256xi32> to vector<8x1xi32>
    %934 = vector.broadcast %933 : vector<8x1xi32> to vector<8x128xi32>
    %935 = arith.cmpi eq, %934, %8 : vector<8x128xi32>
    %936 = arith.extui %935 : vector<8x128xi1> to vector<8x128xi32>
    %937 = arith.sitofp %936 : vector<8x128xi32> to vector<8x128xf32>
    %938 = arith.addf %932, %937 : vector<8x128xf32>
    %939 = vector.extract_strided_slice %0 {offsets = [0, 129], sizes = [8, 1], strides = [1, 1]} : vector<8x256xi32> to vector<8x1xi32>
    %940 = vector.broadcast %939 : vector<8x1xi32> to vector<8x128xi32>
    %941 = arith.cmpi eq, %940, %8 : vector<8x128xi32>
    %942 = arith.extui %941 : vector<8x128xi1> to vector<8x128xi32>
    %943 = arith.sitofp %942 : vector<8x128xi32> to vector<8x128xf32>
    %944 = arith.addf %938, %943 : vector<8x128xf32>
    %945 = vector.extract_strided_slice %0 {offsets = [0, 130], sizes = [8, 1], strides = [1, 1]} : vector<8x256xi32> to vector<8x1xi32>
    %946 = vector.broadcast %945 : vector<8x1xi32> to vector<8x128xi32>
    %947 = arith.cmpi eq, %946, %8 : vector<8x128xi32>
    %948 = arith.extui %947 : vector<8x128xi1> to vector<8x128xi32>
    %949 = arith.sitofp %948 : vector<8x128xi32> to vector<8x128xf32>
    %950 = arith.addf %944, %949 : vector<8x128xf32>
    %951 = vector.extract_strided_slice %0 {offsets = [0, 131], sizes = [8, 1], strides = [1, 1]} : vector<8x256xi32> to vector<8x1xi32>
    %952 = vector.broadcast %951 : vector<8x1xi32> to vector<8x128xi32>
    %953 = arith.cmpi eq, %952, %8 : vector<8x128xi32>
    %954 = arith.extui %953 : vector<8x128xi1> to vector<8x128xi32>
    %955 = arith.sitofp %954 : vector<8x128xi32> to vector<8x128xf32>
    %956 = arith.addf %950, %955 : vector<8x128xf32>
    %957 = arith.truncf %956 : vector<8x128xf32> to vector<8x128xbf16>
    %cst_47 = arith.constant dense<0.000000e+00> : vector<8x32xf32>
    %958 = tpu.matmul %957, %1, %cst_47 {dimension_numbers = #tpu.dot_dimension_numbers<[1], [0], [0], [1], [0, 0, 1, 1], [], []>} : vector<8x128xbf16>, vector<128x32xbf16>, vector<8x32xf32> -> vector<8x32xf32>
    %959 = arith.mulf %589, %958 : vector<8x32xf32>
    %cst_48 = arith.constant dense<0.000000e+00> : vector<8xf32>
    %960 = vector.multi_reduction <add>, %959, %cst_48 [1] : vector<8x32xf32> to vector<8xf32>
    %961 = vector.shape_cast %960 : vector<8xf32> to vector<8x1xf32>
    %cst_49 = arith.constant 0.000000e+00 : f32
    %962 = vector.broadcast %cst_49 : f32 to vector<8x128xf32>
    %963 = vector.extract_strided_slice %0 {offsets = [0, 132], sizes = [8, 1], strides = [1, 1]} : vector<8x256xi32> to vector<8x1xi32>
    %964 = vector.broadcast %963 : vector<8x1xi32> to vector<8x128xi32>
    %965 = arith.cmpi eq, %964, %8 : vector<8x128xi32>
    %966 = arith.extui %965 : vector<8x128xi1> to vector<8x128xi32>
    %967 = arith.sitofp %966 : vector<8x128xi32> to vector<8x128xf32>
    %968 = arith.addf %962, %967 : vector<8x128xf32>
    %969 = vector.extract_strided_slice %0 {offsets = [0, 133], sizes = [8, 1], strides = [1, 1]} : vector<8x256xi32> to vector<8x1xi32>
    %970 = vector.broadcast %969 : vector<8x1xi32> to vector<8x128xi32>
    %971 = arith.cmpi eq, %970, %8 : vector<8x128xi32>
    %972 = arith.extui %971 : vector<8x128xi1> to vector<8x128xi32>
    %973 = arith.sitofp %972 : vector<8x128xi32> to vector<8x128xf32>
    %974 = arith.addf %968, %973 : vector<8x128xf32>
    %975 = vector.extract_strided_slice %0 {offsets = [0, 134], sizes = [8, 1], strides = [1, 1]} : vector<8x256xi32> to vector<8x1xi32>
    %976 = vector.broadcast %975 : vector<8x1xi32> to vector<8x128xi32>
    %977 = arith.cmpi eq, %976, %8 : vector<8x128xi32>
    %978 = arith.extui %977 : vector<8x128xi1> to vector<8x128xi32>
    %979 = arith.sitofp %978 : vector<8x128xi32> to vector<8x128xf32>
    %980 = arith.addf %974, %979 : vector<8x128xf32>
    %981 = vector.extract_strided_slice %0 {offsets = [0, 135], sizes = [8, 1], strides = [1, 1]} : vector<8x256xi32> to vector<8x1xi32>
    %982 = vector.broadcast %981 : vector<8x1xi32> to vector<8x128xi32>
    %983 = arith.cmpi eq, %982, %8 : vector<8x128xi32>
    %984 = arith.extui %983 : vector<8x128xi1> to vector<8x128xi32>
    %985 = arith.sitofp %984 : vector<8x128xi32> to vector<8x128xf32>
    %986 = arith.addf %980, %985 : vector<8x128xf32>
    %987 = vector.extract_strided_slice %0 {offsets = [0, 136], sizes = [8, 1], strides = [1, 1]} : vector<8x256xi32> to vector<8x1xi32>
    %988 = vector.broadcast %987 : vector<8x1xi32> to vector<8x128xi32>
    %989 = arith.cmpi eq, %988, %8 : vector<8x128xi32>
    %990 = arith.extui %989 : vector<8x128xi1> to vector<8x128xi32>
    %991 = arith.sitofp %990 : vector<8x128xi32> to vector<8x128xf32>
    %992 = arith.addf %986, %991 : vector<8x128xf32>
    %993 = vector.extract_strided_slice %0 {offsets = [0, 137], sizes = [8, 1], strides = [1, 1]} : vector<8x256xi32> to vector<8x1xi32>
    %994 = vector.broadcast %993 : vector<8x1xi32> to vector<8x128xi32>
    %995 = arith.cmpi eq, %994, %8 : vector<8x128xi32>
    %996 = arith.extui %995 : vector<8x128xi1> to vector<8x128xi32>
    %997 = arith.sitofp %996 : vector<8x128xi32> to vector<8x128xf32>
    %998 = arith.addf %992, %997 : vector<8x128xf32>
    %999 = vector.extract_strided_slice %0 {offsets = [0, 138], sizes = [8, 1], strides = [1, 1]} : vector<8x256xi32> to vector<8x1xi32>
    %1000 = vector.broadcast %999 : vector<8x1xi32> to vector<8x128xi32>
    %1001 = arith.cmpi eq, %1000, %8 : vector<8x128xi32>
    %1002 = arith.extui %1001 : vector<8x128xi1> to vector<8x128xi32>
    %1003 = arith.sitofp %1002 : vector<8x128xi32> to vector<8x128xf32>
    %1004 = arith.addf %998, %1003 : vector<8x128xf32>
    %1005 = vector.extract_strided_slice %0 {offsets = [0, 139], sizes = [8, 1], strides = [1, 1]} : vector<8x256xi32> to vector<8x1xi32>
    %1006 = vector.broadcast %1005 : vector<8x1xi32> to vector<8x128xi32>
    %1007 = arith.cmpi eq, %1006, %8 : vector<8x128xi32>
    %1008 = arith.extui %1007 : vector<8x128xi1> to vector<8x128xi32>
    %1009 = arith.sitofp %1008 : vector<8x128xi32> to vector<8x128xf32>
    %1010 = arith.addf %1004, %1009 : vector<8x128xf32>
    %1011 = vector.extract_strided_slice %0 {offsets = [0, 140], sizes = [8, 1], strides = [1, 1]} : vector<8x256xi32> to vector<8x1xi32>
    %1012 = vector.broadcast %1011 : vector<8x1xi32> to vector<8x128xi32>
    %1013 = arith.cmpi eq, %1012, %8 : vector<8x128xi32>
    %1014 = arith.extui %1013 : vector<8x128xi1> to vector<8x128xi32>
    %1015 = arith.sitofp %1014 : vector<8x128xi32> to vector<8x128xf32>
    %1016 = arith.addf %1010, %1015 : vector<8x128xf32>
    %1017 = vector.extract_strided_slice %0 {offsets = [0, 141], sizes = [8, 1], strides = [1, 1]} : vector<8x256xi32> to vector<8x1xi32>
    %1018 = vector.broadcast %1017 : vector<8x1xi32> to vector<8x128xi32>
    %1019 = arith.cmpi eq, %1018, %8 : vector<8x128xi32>
    %1020 = arith.extui %1019 : vector<8x128xi1> to vector<8x128xi32>
    %1021 = arith.sitofp %1020 : vector<8x128xi32> to vector<8x128xf32>
    %1022 = arith.addf %1016, %1021 : vector<8x128xf32>
    %1023 = vector.extract_strided_slice %0 {offsets = [0, 142], sizes = [8, 1], strides = [1, 1]} : vector<8x256xi32> to vector<8x1xi32>
    %1024 = vector.broadcast %1023 : vector<8x1xi32> to vector<8x128xi32>
    %1025 = arith.cmpi eq, %1024, %8 : vector<8x128xi32>
    %1026 = arith.extui %1025 : vector<8x128xi1> to vector<8x128xi32>
    %1027 = arith.sitofp %1026 : vector<8x128xi32> to vector<8x128xf32>
    %1028 = arith.addf %1022, %1027 : vector<8x128xf32>
    %1029 = vector.extract_strided_slice %0 {offsets = [0, 143], sizes = [8, 1], strides = [1, 1]} : vector<8x256xi32> to vector<8x1xi32>
    %1030 = vector.broadcast %1029 : vector<8x1xi32> to vector<8x128xi32>
    %1031 = arith.cmpi eq, %1030, %8 : vector<8x128xi32>
    %1032 = arith.extui %1031 : vector<8x128xi1> to vector<8x128xi32>
    %1033 = arith.sitofp %1032 : vector<8x128xi32> to vector<8x128xf32>
    %1034 = arith.addf %1028, %1033 : vector<8x128xf32>
    %1035 = vector.extract_strided_slice %0 {offsets = [0, 144], sizes = [8, 1], strides = [1, 1]} : vector<8x256xi32> to vector<8x1xi32>
    %1036 = vector.broadcast %1035 : vector<8x1xi32> to vector<8x128xi32>
    %1037 = arith.cmpi eq, %1036, %8 : vector<8x128xi32>
    %1038 = arith.extui %1037 : vector<8x128xi1> to vector<8x128xi32>
    %1039 = arith.sitofp %1038 : vector<8x128xi32> to vector<8x128xf32>
    %1040 = arith.addf %1034, %1039 : vector<8x128xf32>
    %1041 = vector.extract_strided_slice %0 {offsets = [0, 145], sizes = [8, 1], strides = [1, 1]} : vector<8x256xi32> to vector<8x1xi32>
    %1042 = vector.broadcast %1041 : vector<8x1xi32> to vector<8x128xi32>
    %1043 = arith.cmpi eq, %1042, %8 : vector<8x128xi32>
    %1044 = arith.extui %1043 : vector<8x128xi1> to vector<8x128xi32>
    %1045 = arith.sitofp %1044 : vector<8x128xi32> to vector<8x128xf32>
    %1046 = arith.addf %1040, %1045 : vector<8x128xf32>
    %1047 = vector.extract_strided_slice %0 {offsets = [0, 146], sizes = [8, 1], strides = [1, 1]} : vector<8x256xi32> to vector<8x1xi32>
    %1048 = vector.broadcast %1047 : vector<8x1xi32> to vector<8x128xi32>
    %1049 = arith.cmpi eq, %1048, %8 : vector<8x128xi32>
    %1050 = arith.extui %1049 : vector<8x128xi1> to vector<8x128xi32>
    %1051 = arith.sitofp %1050 : vector<8x128xi32> to vector<8x128xf32>
    %1052 = arith.addf %1046, %1051 : vector<8x128xf32>
    %1053 = vector.extract_strided_slice %0 {offsets = [0, 147], sizes = [8, 1], strides = [1, 1]} : vector<8x256xi32> to vector<8x1xi32>
    %1054 = vector.broadcast %1053 : vector<8x1xi32> to vector<8x128xi32>
    %1055 = arith.cmpi eq, %1054, %8 : vector<8x128xi32>
    %1056 = arith.extui %1055 : vector<8x128xi1> to vector<8x128xi32>
    %1057 = arith.sitofp %1056 : vector<8x128xi32> to vector<8x128xf32>
    %1058 = arith.addf %1052, %1057 : vector<8x128xf32>
    %1059 = vector.extract_strided_slice %0 {offsets = [0, 148], sizes = [8, 1], strides = [1, 1]} : vector<8x256xi32> to vector<8x1xi32>
    %1060 = vector.broadcast %1059 : vector<8x1xi32> to vector<8x128xi32>
    %1061 = arith.cmpi eq, %1060, %8 : vector<8x128xi32>
    %1062 = arith.extui %1061 : vector<8x128xi1> to vector<8x128xi32>
    %1063 = arith.sitofp %1062 : vector<8x128xi32> to vector<8x128xf32>
    %1064 = arith.addf %1058, %1063 : vector<8x128xf32>
    %1065 = vector.extract_strided_slice %0 {offsets = [0, 149], sizes = [8, 1], strides = [1, 1]} : vector<8x256xi32> to vector<8x1xi32>
    %1066 = vector.broadcast %1065 : vector<8x1xi32> to vector<8x128xi32>
    %1067 = arith.cmpi eq, %1066, %8 : vector<8x128xi32>
    %1068 = arith.extui %1067 : vector<8x128xi1> to vector<8x128xi32>
    %1069 = arith.sitofp %1068 : vector<8x128xi32> to vector<8x128xf32>
    %1070 = arith.addf %1064, %1069 : vector<8x128xf32>
    %1071 = vector.extract_strided_slice %0 {offsets = [0, 150], sizes = [8, 1], strides = [1, 1]} : vector<8x256xi32> to vector<8x1xi32>
    %1072 = vector.broadcast %1071 : vector<8x1xi32> to vector<8x128xi32>
    %1073 = arith.cmpi eq, %1072, %8 : vector<8x128xi32>
    %1074 = arith.extui %1073 : vector<8x128xi1> to vector<8x128xi32>
    %1075 = arith.sitofp %1074 : vector<8x128xi32> to vector<8x128xf32>
    %1076 = arith.addf %1070, %1075 : vector<8x128xf32>
    %1077 = vector.extract_strided_slice %0 {offsets = [0, 151], sizes = [8, 1], strides = [1, 1]} : vector<8x256xi32> to vector<8x1xi32>
    %1078 = vector.broadcast %1077 : vector<8x1xi32> to vector<8x128xi32>
    %1079 = arith.cmpi eq, %1078, %8 : vector<8x128xi32>
    %1080 = arith.extui %1079 : vector<8x128xi1> to vector<8x128xi32>
    %1081 = arith.sitofp %1080 : vector<8x128xi32> to vector<8x128xf32>
    %1082 = arith.addf %1076, %1081 : vector<8x128xf32>
    %1083 = vector.extract_strided_slice %0 {offsets = [0, 152], sizes = [8, 1], strides = [1, 1]} : vector<8x256xi32> to vector<8x1xi32>
    %1084 = vector.broadcast %1083 : vector<8x1xi32> to vector<8x128xi32>
    %1085 = arith.cmpi eq, %1084, %8 : vector<8x128xi32>
    %1086 = arith.extui %1085 : vector<8x128xi1> to vector<8x128xi32>
    %1087 = arith.sitofp %1086 : vector<8x128xi32> to vector<8x128xf32>
    %1088 = arith.addf %1082, %1087 : vector<8x128xf32>
    %1089 = vector.extract_strided_slice %0 {offsets = [0, 153], sizes = [8, 1], strides = [1, 1]} : vector<8x256xi32> to vector<8x1xi32>
    %1090 = vector.broadcast %1089 : vector<8x1xi32> to vector<8x128xi32>
    %1091 = arith.cmpi eq, %1090, %8 : vector<8x128xi32>
    %1092 = arith.extui %1091 : vector<8x128xi1> to vector<8x128xi32>
    %1093 = arith.sitofp %1092 : vector<8x128xi32> to vector<8x128xf32>
    %1094 = arith.addf %1088, %1093 : vector<8x128xf32>
    %1095 = vector.extract_strided_slice %0 {offsets = [0, 154], sizes = [8, 1], strides = [1, 1]} : vector<8x256xi32> to vector<8x1xi32>
    %1096 = vector.broadcast %1095 : vector<8x1xi32> to vector<8x128xi32>
    %1097 = arith.cmpi eq, %1096, %8 : vector<8x128xi32>
    %1098 = arith.extui %1097 : vector<8x128xi1> to vector<8x128xi32>
    %1099 = arith.sitofp %1098 : vector<8x128xi32> to vector<8x128xf32>
    %1100 = arith.addf %1094, %1099 : vector<8x128xf32>
    %1101 = vector.extract_strided_slice %0 {offsets = [0, 155], sizes = [8, 1], strides = [1, 1]} : vector<8x256xi32> to vector<8x1xi32>
    %1102 = vector.broadcast %1101 : vector<8x1xi32> to vector<8x128xi32>
    %1103 = arith.cmpi eq, %1102, %8 : vector<8x128xi32>
    %1104 = arith.extui %1103 : vector<8x128xi1> to vector<8x128xi32>
    %1105 = arith.sitofp %1104 : vector<8x128xi32> to vector<8x128xf32>
    %1106 = arith.addf %1100, %1105 : vector<8x128xf32>
    %1107 = vector.extract_strided_slice %0 {offsets = [0, 156], sizes = [8, 1], strides = [1, 1]} : vector<8x256xi32> to vector<8x1xi32>
    %1108 = vector.broadcast %1107 : vector<8x1xi32> to vector<8x128xi32>
    %1109 = arith.cmpi eq, %1108, %8 : vector<8x128xi32>
    %1110 = arith.extui %1109 : vector<8x128xi1> to vector<8x128xi32>
    %1111 = arith.sitofp %1110 : vector<8x128xi32> to vector<8x128xf32>
    %1112 = arith.addf %1106, %1111 : vector<8x128xf32>
    %1113 = vector.extract_strided_slice %0 {offsets = [0, 157], sizes = [8, 1], strides = [1, 1]} : vector<8x256xi32> to vector<8x1xi32>
    %1114 = vector.broadcast %1113 : vector<8x1xi32> to vector<8x128xi32>
    %1115 = arith.cmpi eq, %1114, %8 : vector<8x128xi32>
    %1116 = arith.extui %1115 : vector<8x128xi1> to vector<8x128xi32>
    %1117 = arith.sitofp %1116 : vector<8x128xi32> to vector<8x128xf32>
    %1118 = arith.addf %1112, %1117 : vector<8x128xf32>
    %1119 = vector.extract_strided_slice %0 {offsets = [0, 158], sizes = [8, 1], strides = [1, 1]} : vector<8x256xi32> to vector<8x1xi32>
    %1120 = vector.broadcast %1119 : vector<8x1xi32> to vector<8x128xi32>
    %1121 = arith.cmpi eq, %1120, %8 : vector<8x128xi32>
    %1122 = arith.extui %1121 : vector<8x128xi1> to vector<8x128xi32>
    %1123 = arith.sitofp %1122 : vector<8x128xi32> to vector<8x128xf32>
    %1124 = arith.addf %1118, %1123 : vector<8x128xf32>
    %1125 = vector.extract_strided_slice %0 {offsets = [0, 159], sizes = [8, 1], strides = [1, 1]} : vector<8x256xi32> to vector<8x1xi32>
    %1126 = vector.broadcast %1125 : vector<8x1xi32> to vector<8x128xi32>
    %1127 = arith.cmpi eq, %1126, %8 : vector<8x128xi32>
    %1128 = arith.extui %1127 : vector<8x128xi1> to vector<8x128xi32>
    %1129 = arith.sitofp %1128 : vector<8x128xi32> to vector<8x128xf32>
    %1130 = arith.addf %1124, %1129 : vector<8x128xf32>
    %1131 = vector.extract_strided_slice %0 {offsets = [0, 160], sizes = [8, 1], strides = [1, 1]} : vector<8x256xi32> to vector<8x1xi32>
    %1132 = vector.broadcast %1131 : vector<8x1xi32> to vector<8x128xi32>
    %1133 = arith.cmpi eq, %1132, %8 : vector<8x128xi32>
    %1134 = arith.extui %1133 : vector<8x128xi1> to vector<8x128xi32>
    %1135 = arith.sitofp %1134 : vector<8x128xi32> to vector<8x128xf32>
    %1136 = arith.addf %1130, %1135 : vector<8x128xf32>
    %1137 = vector.extract_strided_slice %0 {offsets = [0, 161], sizes = [8, 1], strides = [1, 1]} : vector<8x256xi32> to vector<8x1xi32>
    %1138 = vector.broadcast %1137 : vector<8x1xi32> to vector<8x128xi32>
    %1139 = arith.cmpi eq, %1138, %8 : vector<8x128xi32>
    %1140 = arith.extui %1139 : vector<8x128xi1> to vector<8x128xi32>
    %1141 = arith.sitofp %1140 : vector<8x128xi32> to vector<8x128xf32>
    %1142 = arith.addf %1136, %1141 : vector<8x128xf32>
    %1143 = arith.truncf %1142 : vector<8x128xf32> to vector<8x128xbf16>
    %cst_50 = arith.constant dense<0.000000e+00> : vector<8x32xf32>
    %1144 = tpu.matmul %1143, %1, %cst_50 {dimension_numbers = #tpu.dot_dimension_numbers<[1], [0], [0], [1], [0, 0, 1, 1], [], []>} : vector<8x128xbf16>, vector<128x32xbf16>, vector<8x32xf32> -> vector<8x32xf32>
    %1145 = arith.mulf %589, %1144 : vector<8x32xf32>
    %cst_51 = arith.constant dense<0.000000e+00> : vector<8xf32>
    %1146 = vector.multi_reduction <add>, %1145, %cst_51 [1] : vector<8x32xf32> to vector<8xf32>
    %1147 = vector.shape_cast %1146 : vector<8xf32> to vector<8x1xf32>
    %1148 = tpu.concatenate %775, %961, %1147 in 1 : vector<8x1xf32>, vector<8x1xf32>, vector<8x1xf32> -> vector<8x3xf32>
    %cst_52 = arith.constant dense<0xFF800000> : vector<8xf32>
    %1149 = vector.multi_reduction <maximumf>, %1148, %cst_52 [1] : vector<8x3xf32> to vector<8xf32>
    %cst_53 = arith.constant 0xFF800000 : f32
    %1150 = vector.broadcast %cst_53 : f32 to vector<8xf32>
    %1151 = arith.maximumf %1150, %1149 : vector<8xf32>
    %1152 = vector.shape_cast %1151 : vector<8xf32> to vector<8x1xf32>
    %1153 = vector.broadcast %1152 : vector<8x1xf32> to vector<8x3xf32>
    %1154 = arith.subf %1148, %1153 : vector<8x3xf32>
    %1155 = math.exp %1154 : vector<8x3xf32>
    %cst_54 = arith.constant dense<0.000000e+00> : vector<8xf32>
    %1156 = vector.multi_reduction <add>, %1155, %cst_54 [1] : vector<8x3xf32> to vector<8xf32>
    %1157 = vector.shape_cast %1156 : vector<8xf32> to vector<8x1xf32>
    %1158 = vector.broadcast %1157 : vector<8x1xf32> to vector<8x3xf32>
    %1159 = arith.divf %1155, %1158 : vector<8x3xf32>
    %c0_55 = arith.constant 0 : index
    %c0_56 = arith.constant 0 : index
    %1160 = vector.load %arg9[%c0_55, %c0_56] : memref<8x3xf32, #tpu.memory_space<vmem>>, vector<8x3xf32>
    tpu.vector_store %arg9[%c0_55, %c0_56], %1159 {strides = array<i32>} : memref<8x3xf32, #tpu.memory_space<vmem>>, vector<8x3xf32>,
    return
  }
  func.func @transform_0(%arg0: i32) -> (i32, i32) {
    %c0_i32 = arith.constant 0 : i32
    %c0_i32_0 = arith.constant 0 : i32
    return %arg0, %c0_i32 : i32, i32
  }
  func.func @transform_1(%arg0: i32) -> (i32, i32) {
    %c0_i32 = arith.constant 0 : i32
    %c0_i32_0 = arith.constant 0 : i32
    %c0_i32_1 = arith.constant 0 : i32
    return %c0_i32, %c0_i32_0 : i32, i32
  }
  func.func @transform_2(%arg0: i32) -> (i32, i32) {
    %c0_i32 = arith.constant 0 : i32
    %c0_i32_0 = arith.constant 0 : i32
    %c0_i32_1 = arith.constant 0 : i32
    return %c0_i32, %c0_i32_0 : i32, i32
  }
  func.func @transform_3(%arg0: i32) -> (i32, i32) {
    %c0_i32 = arith.constant 0 : i32
    %c0_i32_0 = arith.constant 0 : i32
    %c0_i32_1 = arith.constant 0 : i32
    return %c0_i32, %c0_i32_0 : i32, i32
  }
  func.func @transform_4(%arg0: i32) -> (i32, i32) {
    %c0_i32 = arith.constant 0 : i32
    %c0_i32_0 = arith.constant 0 : i32
    %c0_i32_1 = arith.constant 0 : i32
    return %c0_i32, %c0_i32_0 : i32, i32
  }
  func.func @transform_5(%arg0: i32) -> (i32, i32) {
    %c0_i32 = arith.constant 0 : i32
    %c0_i32_0 = arith.constant 0 : i32
    %c0_i32_1 = arith.constant 0 : i32
    return %c0_i32, %c0_i32_0 : i32, i32
  }
  func.func @transform_6(%arg0: i32) -> (i32, i32) {
    %c0_i32 = arith.constant 0 : i32
    %c0_i32_0 = arith.constant 0 : i32
    %c0_i32_1 = arith.constant 0 : i32
    return %c0_i32, %c0_i32_0 : i32, i32
  }
  func.func @transform_7(%arg0: i32) -> (i32, i32) {
    %c0_i32 = arith.constant 0 : i32
    %c0_i32_0 = arith.constant 0 : i32
    %c0_i32_1 = arith.constant 0 : i32
    return %c0_i32, %c0_i32_0 : i32, i32
  }
  func.func @transform_8(%arg0: i32) -> (i32, i32) {
    %c0_i32 = arith.constant 0 : i32
    %c0_i32_0 = arith.constant 0 : i32
    return %arg0, %c0_i32 : i32, i32
  }
}

</mosaic_0001>

<llo_original>
// kernel: tpu_custom_call.1
$region0: #{tpu_custom_call.1}
  #allocation0 [shape = 'u32[]', space=smem, size = 0x4, offset = 0x4, fixed_abs, tag = 'smem constant byte address 0x4 - core index']
  #allocation1 [shape = 'u32[144,128]{1,0:T(1,128)}', space=vmem, size = 0x12000, scoped, tag = 'internal scratch']
  %s0 = inlined_call_operand.hbm [shape: s32[16,256], index: 0, kind: input, shape index: {}]
  %s1 = inlined_call_operand.vmem [shape: bf16[128,32], index: 1, kind: input, shape index: {}]
  %s2 = inlined_call_operand.vmem [shape: bf16[128,128], index: 2, kind: input, shape index: {}]
  %s3 = inlined_call_operand.vmem [shape: bf16[32,128], index: 3, kind: input, shape index: {}]
  %s4 = inlined_call_operand.vmem [shape: f32[1,128], index: 4, kind: input, shape index: {}]
  %s5 = inlined_call_operand.hbm [shape: bf16[32,128], index: 5, kind: input, shape index: {}]
  %s6 = inlined_call_operand.hbm [shape: bf16[32,128], index: 6, kind: input, shape index: {}]
  %s7 = inlined_call_operand.vmem [shape: f32[1,128], index: 7, kind: input, shape index: {}]
  %s8 = inlined_call_operand.vmem [shape: f32[16,3], index: 8, kind: output, shape index: {}]
  %s9 = sld [smem:[#allocation0]]
  $region77: #{tpu_custom_call.1} parent=0
    _
  %s11 = ssub.s32 1, %s9
  %s12 = scalar_select 0, %s11, %s9
  $region1: #{tpu_custom_call.1} parent=0
    #allocation2 [shape = 'u8[16384]{0}', space=vmem, size = 0x4000, scoped, tag = 'input window, operand 0']
    #allocation3 [shape = 's32[2]{0}', space=sflag, size = 0x8, scoped, tag = 'scoped memory for tpu_custom_call.1']
    #allocation4 [shape = 'u8[8192]{0}', space=vmem, size = 0x2000, scoped, tag = 'input window, operand 5, single buffered']
    #allocation5 [shape = 's32[1]{0}', space=sflag, size = 0x4, scoped, tag = 'scoped memory for tpu_custom_call.1']
    #allocation6 [shape = 'u8[8192]{0}', space=vmem, size = 0x2000, scoped, tag = 'input window, operand 6, single buffered']
    %13 = vsyncpa [#allocation3], 0
    %s14 = scalar_lea.sflag [#allocation3], 1
    %15 = vsyncpa %s14, 0
    %16 = vsyncpa [#allocation5], 0
    loop: start=0, step=1, limit=4
    $region2: #{tpu_custom_call.1} parent=1 // loop_pre_header
      _
    $region3: #{tpu_custom_call.1} parent=1 // loop_header
      %s18 = sphi 0, %s22
      %p19 = scmp.ge.s32.totalorder %s18, 4
      %s28 = sphi 0, %s30
      %s31 = sphi 0, %s28
      %s32 = sphi 0, %s31
      %s48 = sphi 0, %s32
      %s52 = sphi 0, %s52
      %s54 = sphi 0, %s52
      %s55 = sphi 0, %s54
      %s69 = sphi 0, %s55
      %s73 = sphi 0, %s73
      %s75 = sphi 0, %s73
      %s76 = sphi 0, %s75
      %s90 = sphi 0, %s76
      %s94 = sphi 0, %s94
      %s96 = sphi 0, %s94
      %s97 = sphi 0, %s96
      %s111 = sphi 0, %s97
      %s115 = sphi 0, %s115
      %s117 = sphi 0, %s115
      %s118 = sphi 0, %s117
      %s132 = sphi 0, %s118
      %s136 = sphi 0, %s136
      %s138 = sphi 0, %s136
      %s139 = sphi 0, %s138
      %s153 = sphi 0, %s139
      %s157 = sphi 0, %s157
      %s159 = sphi 0, %s157
      %s160 = sphi 0, %s159
      %s174 = sphi 0, %s160
      %s178 = sphi 0, %s178
      %s180 = sphi 0, %s178
      %s181 = sphi 0, %s180
      %s195 = sphi 0, %s181
      %s201 = sphi 0, %s203
      %s204 = sphi 0, %s201
      %s205 = sphi 0, %s204
      %s221 = sphi 0, %s205
    $region4: #{tpu_custom_call.1} parent=1 // loop_header_branch
      %21 = sbr.rel (%p19) target = $region8
    $region5: #{tpu_custom_call.1} parent=1 // loop_body
      %s23 = ssub.s32 %s18, 1
      %s24 = ssub.s32 %s18, 2
      %s25 = sadd.s32 %s18, 1
      %s26 = ssub.s32 %s18, %s25
      %p27 = scmp.eq.s32.totalorder %s26, 0
      %s29 = sadd.s32 %s28, 1
      %s30 = scalar_select %p27, %s28, %s29
      %p33 = pneg %p27
      %p34 = scmp.eq.s32.totalorder %s18, 1
      %p35 = por %p33, %p34
      %p36 = scmp.ne.s32.totalorder %s28, %s31
      %p37 = scmp.eq.s32.totalorder %s18, 0
      %p38 = por %p36, %p37
      %p39 = scmp.ne.s32.totalorder %s28, %s31
      %p40 = scmp.eq.s32.totalorder %s23, 1
      %p41 = por %p39, %p40
      %p42 = scmp.ne.s32.totalorder %s31, %s32
      %p43 = scmp.eq.s32.totalorder %s23, 0
      %p44 = por %p42, %p43
      %p45 = scmp.ne.s32.totalorder %s31, %s32
      %p46 = scmp.eq.s32.totalorder %s24, 1
      %p47 = por %p45, %p46
      %p49 = scmp.ne.s32.totalorder %s32, %s48
      %p50 = scmp.eq.s32.totalorder %s24, 0
      %p51 = por %p49, %p50
      %s53 = sadd.s32 %s52, 1
      %p56 = scmp.eq.s32.totalorder %s18, 1
      %p57 = scmp.ne.s32.totalorder %s52, %s54
      %p58 = scmp.eq.s32.totalorder %s18, 0
      %p59 = por %p57, %p58
      %p60 = scmp.ne.s32.totalorder %s52, %s54
      %p61 = scmp.eq.s32.totalorder %s23, 1
      %p62 = por %p60, %p61
      %p63 = scmp.ne.s32.totalorder %s54, %s55
      %p64 = scmp.eq.s32.totalorder %s23, 0
      %p65 = por %p63, %p64
      %p66 = scmp.ne.s32.totalorder %s54, %s55
      %p67 = scmp.eq.s32.totalorder %s24, 1
      %p68 = por %p66, %p67
      %p70 = scmp.ne.s32.totalorder %s55, %s69
      %p71 = scmp.eq.s32.totalorder %s24, 0
      %p72 = por %p70, %p71
      %s74 = sadd.s32 %s73, 1
      %p77 = scmp.eq.s32.totalorder %s18, 1
      %p78 = scmp.ne.s32.totalorder %s73, %s75
      %p79 = scmp.eq.s32.totalorder %s18, 0
      %p80 = por %p78, %p79
      %p81 = scmp.ne.s32.totalorder %s73, %s75
      %p82 = scmp.eq.s32.totalorder %s23, 1
      %p83 = por %p81, %p82
      %p84 = scmp.ne.s32.totalorder %s75, %s76
      %p85 = scmp.eq.s32.totalorder %s23, 0
      %p86 = por %p84, %p85
      %p87 = scmp.ne.s32.totalorder %s75, %s76
      %p88 = scmp.eq.s32.totalorder %s24, 1
      %p89 = por %p87, %p88
      %p91 = scmp.ne.s32.totalorder %s76, %s90
      %p92 = scmp.eq.s32.totalorder %s24, 0
      %p93 = por %p91, %p92
      %s95 = sadd.s32 %s94, 1
      %p98 = scmp.eq.s32.totalorder %s18, 1
      %p99 = scmp.ne.s32.totalorder %s94, %s96
      %p100 = scmp.eq.s32.totalorder %s18, 0
      %p101 = por %p99, %p100
      %p102 = scmp.ne.s32.totalorder %s94, %s96
      %p103 = scmp.eq.s32.totalorder %s23, 1
      %p104 = por %p102, %p103
      %p105 = scmp.ne.s32.totalorder %s96, %s97
      %p106 = scmp.eq.s32.totalorder %s23, 0
      %p107 = por %p105, %p106
      %p108 = scmp.ne.s32.totalorder %s96, %s97
      %p109 = scmp.eq.s32.totalorder %s24, 1
      %p110 = por %p108, %p109
      %p112 = scmp.ne.s32.totalorder %s97, %s111
      %p113 = scmp.eq.s32.totalorder %s24, 0
      %p114 = por %p112, %p113
      %s116 = sadd.s32 %s115, 1
      %p119 = scmp.eq.s32.totalorder %s18, 1
      %p120 = scmp.ne.s32.totalorder %s115, %s117
      %p121 = scmp.eq.s32.totalorder %s18, 0
      %p122 = por %p120, %p121
      %p123 = scmp.ne.s32.totalorder %s115, %s117
      %p124 = scmp.eq.s32.totalorder %s23, 1
      %p125 = por %p123, %p124
      %p126 = scmp.ne.s32.totalorder %s117, %s118
      %p127 = scmp.eq.s32.totalorder %s23, 0
      %p128 = por %p126, %p127
      %p129 = scmp.ne.s32.totalorder %s117, %s118
      %p130 = scmp.eq.s32.totalorder %s24, 1
      %p131 = por %p129, %p130
      %p133 = scmp.ne.s32.totalorder %s118, %s132
      %p134 = scmp.eq.s32.totalorder %s24, 0
      %p135 = por %p133, %p134
      %s137 = sadd.s32 %s136, 1
      %p140 = scmp.eq.s32.totalorder %s18, 1
      %p141 = scmp.ne.s32.totalorder %s136, %s138
      %p142 = scmp.eq.s32.totalorder %s18, 0
      %p143 = por %p141, %p142
      %p144 = scmp.ne.s32.totalorder %s136, %s138
      %p145 = scmp.eq.s32.totalorder %s23, 1
      %p146 = por %p144, %p145
      %p147 = scmp.ne.s32.totalorder %s138, %s139
      %p148 = scmp.eq.s32.totalorder %s23, 0
      %p149 = por %p147, %p148
      %p150 = scmp.ne.s32.totalorder %s138, %s139
      %p151 = scmp.eq.s32.totalorder %s24, 1
      %p152 = por %p150, %p151
      %p154 = scmp.ne.s32.totalorder %s139, %s153
      %p155 = scmp.eq.s32.totalorder %s24, 0
      %p156 = por %p154, %p155
      %s158 = sadd.s32 %s157, 1
      %p161 = scmp.eq.s32.totalorder %s18, 1
      %p162 = scmp.ne.s32.totalorder %s157, %s159
      %p163 = scmp.eq.s32.totalorder %s18, 0
      %p164 = por %p162, %p163
      %p165 = scmp.ne.s32.totalorder %s157, %s159
      %p166 = scmp.eq.s32.totalorder %s23, 1
      %p167 = por %p165, %p166
      %p168 = scmp.ne.s32.totalorder %s159, %s160
      %p169 = scmp.eq.s32.totalorder %s23, 0
      %p170 = por %p168, %p169
      %p171 = scmp.ne.s32.totalorder %s159, %s160
      %p172 = scmp.eq.s32.totalorder %s24, 1
      %p173 = por %p171, %p172
      %p175 = scmp.ne.s32.totalorder %s160, %s174
      %p176 = scmp.eq.s32.totalorder %s24, 0
      %p177 = por %p175, %p176
      %s179 = sadd.s32 %s178, 1
      %p182 = scmp.eq.s32.totalorder %s18, 1
      %p183 = scmp.ne.s32.totalorder %s178, %s180
      %p184 = scmp.eq.s32.totalorder %s18, 0
      %p185 = por %p183, %p184
      %p186 = scmp.ne.s32.totalorder %s178, %s180
      %p187 = scmp.eq.s32.totalorder %s23, 1
      %p188 = por %p186, %p187
      %p189 = scmp.ne.s32.totalorder %s180, %s181
      %p190 = scmp.eq.s32.totalorder %s23, 0
      %p191 = por %p189, %p190
      %p192 = scmp.ne.s32.totalorder %s180, %s181
      %p193 = scmp.eq.s32.totalorder %s24, 1
      %p194 = por %p192, %p193
      %p196 = scmp.ne.s32.totalorder %s181, %s195
      %p197 = scmp.eq.s32.totalorder %s24, 0
      %p198 = por %p196, %p197
      %s199 = ssub.s32 %s18, %s25
      %p200 = scmp.eq.s32.totalorder %s199, 0
      %s202 = sadd.s32 %s201, 1
      %s203 = scalar_select %p200, %s201, %s202
      %p206 = pneg %p200
      %p207 = scmp.eq.s32.totalorder %s18, 1
      %p208 = por %p206, %p207
      %p209 = scmp.ne.s32.totalorder %s201, %s204
      %p210 = scmp.eq.s32.totalorder %s18, 0
      %p211 = por %p209, %p210
      %p212 = scmp.ne.s32.totalorder %s201, %s204
      %p213 = scmp.eq.s32.totalorder %s23, 1
      %p214 = por %p212, %p213
      %p215 = scmp.ne.s32.totalorder %s204, %s205
      %p216 = scmp.eq.s32.totalorder %s23, 0
      %p217 = por %p215, %p216
      %p218 = scmp.ne.s32.totalorder %s204, %s205
      %p219 = scmp.eq.s32.totalorder %s24, 1
      %p220 = por %p218, %p219
      %p222 = scmp.ne.s32.totalorder %s205, %s221
      %p223 = scmp.eq.s32.totalorder %s24, 0
      %p224 = por %p222, %p223
      %p225 = scmp.le.s32.totalorder 1, %s18
      %p226 = scmp.lt.s32.totalorder %s18, 3
      %p227 = pnand %p225, %p226
      %p228 = pneg %p227
      // Predicated region
      $region9: #{tpu_custom_call.1} parent=5 // pred_check
        _
      $region10: #{tpu_custom_call.1} parent=5 // pred_check_branch
        %230 = sbr.rel (%p227) target = $region12
      $region11: #{tpu_custom_call.1} parent=5 // pred_region
        %s231 = ssub.s32 %s18, 1
        // Predicated region
        $region13: #{tpu_custom_call.1} parent=11 // pred_check
          %p232 = pneg %p65
        $region14: #{tpu_custom_call.1} parent=11 // pred_check_branch
          %234 = sbr.rel (%p232) target = $region16
        $region15: #{tpu_custom_call.1} parent=11 // pred_region
          _
        $region16: #{tpu_custom_call.1} parent=11 // pred_fallthru
          _
        // Predicated region
        $region17: #{tpu_custom_call.1} parent=11 // pred_check
          %p235 = pneg %p86
        $region18: #{tpu_custom_call.1} parent=11 // pred_check_branch
          %237 = sbr.rel (%p235) target = $region20
        $region19: #{tpu_custom_call.1} parent=11 // pred_region
          _
        $region20: #{tpu_custom_call.1} parent=11 // pred_fallthru
          _
        // Predicated region
        $region21: #{tpu_custom_call.1} parent=11 // pred_check
          %p238 = pneg %p107
        $region22: #{tpu_custom_call.1} parent=11 // pred_check_branch
          %240 = sbr.rel (%p238) target = $region24
        $region23: #{tpu_custom_call.1} parent=11 // pred_region
          _
        $region24: #{tpu_custom_call.1} parent=11 // pred_fallthru
          _
        // Predicated region
        $region25: #{tpu_custom_call.1} parent=11 // pred_check
          %p241 = pneg %p128
        $region26: #{tpu_custom_call.1} parent=11 // pred_check_branch
          %243 = sbr.rel (%p241) target = $region28
        $region27: #{tpu_custom_call.1} parent=11 // pred_region
          _
        $region28: #{tpu_custom_call.1} parent=11 // pred_fallthru
          _
        // Predicated region
        $region29: #{tpu_custom_call.1} parent=11 // pred_check
          %p244 = pneg %p149
        $region30: #{tpu_custom_call.1} parent=11 // pred_check_branch
          %246 = sbr.rel (%p244) target = $region32
        $region31: #{tpu_custom_call.1} parent=11 // pred_region
          %s248 = ssub.s32 256, 256
          %249 = vsyncadd [#allocation5], %s248
          %s250 = sshll.u32 [#allocation4], 4
          %s251 = int_to_ptr.vmem [resolvable:$true] %s250
          %256 = dma.hbm_to_vmem [thread:$0]  %s5, 256, %s251, [#allocation5], 64, 64, 4
        $region32: #{tpu_custom_call.1} parent=11 // pred_fallthru
          _
        // Predicated region
        $region33: #{tpu_custom_call.1} parent=11 // pred_check
          %p257 = pneg %p170
        $region34: #{tpu_custom_call.1} parent=11 // pred_check_branch
          %259 = sbr.rel (%p257) target = $region36
        $region35: #{tpu_custom_call.1} parent=11 // pred_region
          %s261 = ssub.s32 256, 256
          %262 = vsyncadd [#allocation5], %s261
          %s263 = sshll.u32 [#allocation6], 4
          %s264 = int_to_ptr.vmem [resolvable:$true] %s263
          %269 = dma.hbm_to_vmem [thread:$0]  %s6, 256, %s264, [#allocation5], 64, 64, 4
        $region36: #{tpu_custom_call.1} parent=11 // pred_fallthru
          _
        // Predicated region
        $region37: #{tpu_custom_call.1} parent=11 // pred_check
          %p270 = pneg %p191
        $region38: #{tpu_custom_call.1} parent=11 // pred_check_branch
          %272 = sbr.rel (%p270) target = $region40
        $region39: #{tpu_custom_call.1} parent=11 // pred_region
          _
        $region40: #{tpu_custom_call.1} parent=11 // pred_fallthru
          _
      $region12: #{tpu_custom_call.1} parent=5 // pred_fallthru
        _
      %p273 = scmp.lt.s32.totalorder %s18, 2
      // Predicated region
      $region41: #{tpu_custom_call.1} parent=5 // pred_check
        %p274 = pneg %p273
      $region42: #{tpu_custom_call.1} parent=5 // pred_check_branch
        %276 = sbr.rel (%p274) target = $region44
      $region43: #{tpu_custom_call.1} parent=5 // pred_region
        // Predicated region
        $region45: #{tpu_custom_call.1} parent=43 // pred_check
          %p277 = pneg %p38
        $region46: #{tpu_custom_call.1} parent=43 // pred_check_branch
          %279 = sbr.rel (%p277) target = $region48
        $region47: #{tpu_custom_call.1} parent=43 // pred_region
          %s280 = sand.u32 %s28, 1
          %s281 = scalar_lea.sflag [#allocation3], %s280
          %s282 = sand.u32 %s28, 1
          %s283 = smul.addr %s282, 16
          %s284 = scalar_lea.vmem [#allocation2], %s283
          %s286 = ssub.s32 256, 256
          %287 = vsyncadd %s281, %s286
          %s288 = smul.addr %s18, 2
          %s289 = smul.addr %s288, 128
          %s290 = scalar_lea.hbm %s0, %s289
          %s292 = sshll.u32 %s284, 4
          %s293 = int_to_ptr.vmem [resolvable:$true] %s292
          %295 = dma.hbm_to_vmem [thread:$0]  %s290, 256, %s293, %s281
        $region48: #{tpu_custom_call.1} parent=43 // pred_fallthru
          _
      $region44: #{tpu_custom_call.1} parent=5 // pred_fallthru
        _
      %p296 = scmp.le.s32.totalorder 1, %s18
      %p297 = scmp.lt.s32.totalorder %s18, 3
      %p298 = pnand %p296, %p297
      %p299 = pneg %p298
      // Predicated region
      $region49: #{tpu_custom_call.1} parent=5 // pred_check
        _
      $region50: #{tpu_custom_call.1} parent=5 // pred_check_branch
        %301 = sbr.rel (%p298) target = $region52
      $region51: #{tpu_custom_call.1} parent=5 // pred_region
        %s302 = ssub.s32 %s18, 1
        %s303 = sand.u32 %s31, 1
        %s304 = scalar_lea.sflag [#allocation3], %s303
        %s305 = sand.u32 %s31, 1
        %s306 = smul.addr %s305, 16
        %s307 = scalar_lea.vmem [#allocation2], %s306
        // Predicated region
        $region53: #{tpu_custom_call.1} parent=51 // pred_check
          %p308 = pneg %p44
        $region54: #{tpu_custom_call.1} parent=51 // pred_check_branch
          %310 = sbr.rel (%p308) target = $region56
        $region55: #{tpu_custom_call.1} parent=51 // pred_region
          %311 = dma.done %s304, 256
        $region56: #{tpu_custom_call.1} parent=51 // pred_fallthru
          _
        // Predicated region
        $region57: #{tpu_custom_call.1} parent=51 // pred_check
          %p312 = pneg %p149
        $region58: #{tpu_custom_call.1} parent=51 // pred_check_branch
          %314 = sbr.rel (%p312) target = $region60
        $region59: #{tpu_custom_call.1} parent=51 // pred_region
          %315 = dma.done [#allocation5], 256
        $region60: #{tpu_custom_call.1} parent=51 // pred_fallthru
          _
        // Predicated region
        $region61: #{tpu_custom_call.1} parent=51 // pred_check
          %p316 = pneg %p170
        $region62: #{tpu_custom_call.1} parent=51 // pred_check_branch
          %318 = sbr.rel (%p316) target = $region64
        $region63: #{tpu_custom_call.1} parent=51 // pred_region
          %319 = dma.done [#allocation5], 256
        $region64: #{tpu_custom_call.1} parent=51 // pred_fallthru
          _
        %s320 = sand.u32 %s31, 1
        %s321 = scalar_lea.sflag [#allocation3], %s320
        %s322 = sand.u32 %s31, 1
        %s323 = smul.addr %s322, 16
        %s324 = scalar_lea.vmem [#allocation2], %s323
        %p325 = pneg %p44
        %p326 = pneg %p41
        %p327 = pneg %p65
        %p328 = pneg %p62
        %p329 = pneg %p86
        %p330 = pneg %p83
        %p331 = pneg %p107
        %p332 = pneg %p104
        %p333 = pneg %p128
        %p334 = pneg %p125
        %p335 = pneg %p149
        %p336 = pneg %p146
        %p337 = pneg %p170
        %p338 = pneg %p167
        %p339 = pneg %p191
        %p340 = pneg %p188
        %p341 = pneg %p217
        %p342 = pneg %p214
        %p343 = scmp.lt.s32.totalorder %s23, 1
        %s344 = scalar_select %p343, %s23, 1
        %s345 = smul.addr %s344, 8
        %s346 = scalar_lea.vmem %s8, %s345
        %p347 = scmp.lt.s32.totalorder %s23, 1
        %s348 = scalar_select %p347, %s23, 1
        %s349 = smul.addr %s348, 8
        %s350 = scalar_lea.vmem %s8, %s349
        %v352 = vld [vmem:[%s307] sm:$0xff]
        %v353 = vld [vmem:[%s307 + $0x8] sm:$0xff]
        %v354 = vld [vmem:[%s1] sm:$0xf]
        %v355 = vld [vmem:[%s1 + $0x4] sm:$0xf]
        %v356 = vld [vmem:[%s1 + $0x8] sm:$0xf]
        %v357 = vld [vmem:[%s1 + $0xc] sm:$0xf]
        %v358 = vld [vmem:[%s1 + $0x10] sm:$0xf]
        %v359 = vld [vmem:[%s1 + $0x14] sm:$0xf]
        %v360 = vld [vmem:[%s1 + $0x18] sm:$0xf]
        %v361 = vld [vmem:[%s1 + $0x1c] sm:$0xf]
        %v362 = vld [vmem:[%s1 + $0x20] sm:$0xf]
        %v363 = vld [vmem:[%s1 + $0x24] sm:$0xf]
        %v364 = vld [vmem:[%s1 + $0x28] sm:$0xf]
        %v365 = vld [vmem:[%s1 + $0x2c] sm:$0xf]
        %v366 = vld [vmem:[%s1 + $0x30] sm:$0xf]
        %v367 = vld [vmem:[%s1 + $0x34] sm:$0xf]
        %v368 = vld [vmem:[%s1 + $0x38] sm:$0xf]
        %v369 = vld [vmem:[%s1 + $0x3c] sm:$0xf]
        %v370 = vld [vmem:[%s2] sm:$0xf]
        %v371 = vld [vmem:[%s2 + $0x4] sm:$0xf]
        %v372 = vld [vmem:[%s2 + $0x8] sm:$0xf]
        %v373 = vld [vmem:[%s2 + $0xc] sm:$0xf]
        %v374 = vld [vmem:[%s2 + $0x10] sm:$0xf]
        %v375 = vld [vmem:[%s2 + $0x14] sm:$0xf]
        %v376 = vld [vmem:[%s2 + $0x18] sm:$0xf]
        %v377 = vld [vmem:[%s2 + $0x1c] sm:$0xf]
        %v378 = vld [vmem:[%s2 + $0x20] sm:$0xf]
        %v379 = vld [vmem:[%s2 + $0x24] sm:$0xf]
        %v380 = vld [vmem:[%s2 + $0x28] sm:$0xf]
        %v381 = vld [vmem:[%s2 + $0x2c] sm:$0xf]
        %v382 = vld [vmem:[%s2 + $0x30] sm:$0xf]
        %v383 = vld [vmem:[%s2 + $0x34] sm:$0xf]
        %v384 = vld [vmem:[%s2 + $0x38] sm:$0xf]
        %v385 = vld [vmem:[%s2 + $0x3c] sm:$0xf]
        %v386 = vld [vmem:[%s3] sm:$0xf]
        %v387 = vld [vmem:[%s3 + $0x4] sm:$0xf]
        %v388 = vld [vmem:[%s3 + $0x8] sm:$0xf]
        %v389 = vld [vmem:[%s3 + $0xc] sm:$0xf]
        %v390 = vld [vmem:[%s4] sm:$0x1]
        %v391 = vld [vmem:[#allocation4] sm:$0xf]
        %v392 = vld [vmem:[#allocation4 + $0x4] sm:$0xf]
        %v393 = vld [vmem:[#allocation4 + $0x8] sm:$0xf]
        %v394 = vld [vmem:[#allocation4 + $0xc] sm:$0xf]
        %v395 = vld [vmem:[#allocation6] sm:$0xf]
        %v396 = vld [vmem:[#allocation6 + $0x4] sm:$0xf]
        %v397 = vld [vmem:[#allocation6 + $0x8] sm:$0xf]
        %v398 = vld [vmem:[#allocation6 + $0xc] sm:$0xf]
        %v399 = vld [vmem:[%s7] sm:$0x1]
        %v400 = vlaneseq
        %v401 = vand.u32 %v400, 127
        %402 = vset.pattern.permute.xlu0 0
        %403 = vperm.xlu0 %402, %v352
        %v404 = vpop.permute.xlu0 %403
        %vm405 = vcmp.eq.s32.totalorder %v404, %v401
        %v406 = vsel %vm405, 1, 0
        %v407 = vcvt.s32.f32 %v406
        %v408 = vadd.f32 %v407, 0.0
        %409 = vset.pattern.permute.xlu0 1
        %410 = vperm.xlu0 %409, %v352
        %v411 = vpop.permute.xlu0 %410
        %vm412 = vcmp.eq.s32.totalorder %v411, %v401
        %v413 = vsel %vm412, 1, 0
        %v414 = vcvt.s32.f32 %v413
        %v415 = vadd.f32 %v408, %v414
        %416 = vset.pattern.permute.xlu0 2
        %417 = vperm.xlu0 %416, %v352
        %v418 = vpop.permute.xlu0 %417
        %vm419 = vcmp.eq.s32.totalorder %v418, %v401
        %v420 = vsel %vm419, 1, 0
        %v421 = vcvt.s32.f32 %v420
        %v422 = vadd.f32 %v415, %v421
        %423 = vset.pattern.permute.xlu0 3
        %424 = vperm.xlu0 %423, %v352
        %v425 = vpop.permute.xlu0 %424
        %vm426 = vcmp.eq.s32.totalorder %v425, %v401
        %v427 = vsel %vm426, 1, 0
        %v428 = vcvt.s32.f32 %v427
        %v429 = vadd.f32 %v422, %v428
        %430 = vset.pattern.permute.xlu0 4
        %431 = vperm.xlu0 %430, %v352
        %v432 = vpop.permute.xlu0 %431
        %vm433 = vcmp.eq.s32.totalorder %v432, %v401
        %v434 = vsel %vm433, 1, 0
        %v435 = vcvt.s32.f32 %v434
        %v436 = vadd.f32 %v429, %v435
        %437 = vset.pattern.permute.xlu0 5
        %438 = vperm.xlu0 %437, %v352
        %v439 = vpop.permute.xlu0 %438
        %vm440 = vcmp.eq.s32.totalorder %v439, %v401
        %v441 = vsel %vm440, 1, 0
        %v442 = vcvt.s32.f32 %v441
        %v443 = vadd.f32 %v436, %v442
        %444 = vset.pattern.permute.xlu0 6
        %445 = vperm.xlu0 %444, %v352
        %v446 = vpop.permute.xlu0 %445
        %vm447 = vcmp.eq.s32.totalorder %v446, %v401
        %v448 = vsel %vm447, 1, 0
        %v449 = vcvt.s32.f32 %v448
        %v450 = vadd.f32 %v443, %v449
        %451 = vset.pattern.permute.xlu0 7
        %452 = vperm.xlu0 %451, %v352
        %v453 = vpop.permute.xlu0 %452
        %vm454 = vcmp.eq.s32.totalorder %v453, %v401
        %v455 = vsel %vm454, 1, 0
        %v456 = vcvt.s32.f32 %v455
        %v457 = vadd.f32 %v450, %v456
        %458 = vset.pattern.permute.xlu0 24
        %459 = vperm.xlu0 %458, %v352
        %v460 = vpop.permute.xlu0 %459
        %vm461 = vcmp.eq.s32.totalorder %v460, %v401
        %v462 = vsel %vm461, 1, 0
        %v463 = vcvt.s32.f32 %v462
        %v464 = vadd.f32 %v463, 0.0
        %465 = vset.pattern.permute.xlu0 25
        %466 = vperm.xlu0 %465, %v352
        %v467 = vpop.permute.xlu0 %466
        %vm468 = vcmp.eq.s32.totalorder %v467, %v401
        %v469 = vsel %vm468, 1, 0
        %v470 = vcvt.s32.f32 %v469
        %v471 = vadd.f32 %v464, %v470
        %472 = vset.pattern.permute.xlu0 26
        %473 = vperm.xlu0 %472, %v352
        %v474 = vpop.permute.xlu0 %473
        %vm475 = vcmp.eq.s32.totalorder %v474, %v401
        %v476 = vsel %vm475, 1, 0
        %v477 = vcvt.s32.f32 %v476
        %v478 = vadd.f32 %v471, %v477
        %479 = vset.pattern.permute.xlu0 27
        %480 = vperm.xlu0 %479, %v352
        %v481 = vpop.permute.xlu0 %480
        %vm482 = vcmp.eq.s32.totalorder %v481, %v401
        %v483 = vsel %vm482, 1, 0
        %v484 = vcvt.s32.f32 %v483
        %v485 = vadd.f32 %v478, %v484
        %486 = vset.pattern.permute.xlu0 28
        %487 = vperm.xlu0 %486, %v352
        %v488 = vpop.permute.xlu0 %487
        %vm489 = vcmp.eq.s32.totalorder %v488, %v401
        %v490 = vsel %vm489, 1, 0
        %v491 = vcvt.s32.f32 %v490
        %v492 = vadd.f32 %v485, %v491
        %493 = vset.pattern.permute.xlu0 29
        %494 = vperm.xlu0 %493, %v352
        %v495 = vpop.permute.xlu0 %494
        %vm496 = vcmp.eq.s32.totalorder %v495, %v401
        %v497 = vsel %vm496, 1, 0
        %v498 = vcvt.s32.f32 %v497
        %v499 = vadd.f32 %v492, %v498
        %500 = vset.pattern.permute.xlu0 30
        %501 = vperm.xlu0 %500, %v352
        %v502 = vpop.permute.xlu0 %501
        %vm503 = vcmp.eq.s32.totalorder %v502, %v401
        %v504 = vsel %vm503, 1, 0
        %v505 = vcvt.s32.f32 %v504
        %v506 = vadd.f32 %v499, %v505
        %507 = vset.pattern.permute.xlu0 31
        %508 = vperm.xlu0 %507, %v352
        %v509 = vpop.permute.xlu0 %508
        %vm510 = vcmp.eq.s32.totalorder %v509, %v401
        %v511 = vsel %vm510, 1, 0
        %v512 = vcvt.s32.f32 %v511
        %v513 = vadd.f32 %v506, %v512
        %514 = vset.pattern.permute.xlu0 48
        %515 = vperm.xlu0 %514, %v352
        %v516 = vpop.permute.xlu0 %515
        %vm517 = vcmp.eq.s32.totalorder %v516, %v401
        %v518 = vsel %vm517, 1, 0
        %v519 = vcvt.s32.f32 %v518
        %v520 = vadd.f32 %v519, 0.0
        %521 = vset.pattern.permute.xlu0 49
        %522 = vperm.xlu0 %521, %v352
        %v523 = vpop.permute.xlu0 %522
        %vm524 = vcmp.eq.s32.totalorder %v523, %v401
        %v525 = vsel %vm524, 1, 0
        %v526 = vcvt.s32.f32 %v525
        %v527 = vadd.f32 %v520, %v526
        %528 = vset.pattern.permute.xlu0 50
        %529 = vperm.xlu0 %528, %v352
        %v530 = vpop.permute.xlu0 %529
        %vm531 = vcmp.eq.s32.totalorder %v530, %v401
        %v532 = vsel %vm531, 1, 0
        %v533 = vcvt.s32.f32 %v532
        %v534 = vadd.f32 %v527, %v533
        %535 = vset.pattern.permute.xlu0 51
        %536 = vperm.xlu0 %535, %v352
        %v537 = vpop.permute.xlu0 %536
        %vm538 = vcmp.eq.s32.totalorder %v537, %v401
        %v539 = vsel %vm538, 1, 0
        %v540 = vcvt.s32.f32 %v539
        %v541 = vadd.f32 %v534, %v540
        %542 = vset.pattern.permute.xlu0 52
        %543 = vperm.xlu0 %542, %v352
        %v544 = vpop.permute.xlu0 %543
        %vm545 = vcmp.eq.s32.totalorder %v544, %v401
        %v546 = vsel %vm545, 1, 0
        %v547 = vcvt.s32.f32 %v546
        %v548 = vadd.f32 %v541, %v547
        %549 = vset.pattern.permute.xlu0 53
        %550 = vperm.xlu0 %549, %v352
        %v551 = vpop.permute.xlu0 %550
        %vm552 = vcmp.eq.s32.totalorder %v551, %v401
        %v553 = vsel %vm552, 1, 0
        %v554 = vcvt.s32.f32 %v553
        %v555 = vadd.f32 %v548, %v554
        %556 = vset.pattern.permute.xlu0 54
        %557 = vperm.xlu0 %556, %v352
        %v558 = vpop.permute.xlu0 %557
        %vm559 = vcmp.eq.s32.totalorder %v558, %v401
        %v560 = vsel %vm559, 1, 0
        %v561 = vcvt.s32.f32 %v560
        %v562 = vadd.f32 %v555, %v561
        %563 = vset.pattern.permute.xlu0 55
        %564 = vperm.xlu0 %563, %v352
        %v565 = vpop.permute.xlu0 %564
        %vm566 = vcmp.eq.s32.totalorder %v565, %v401
        %v567 = vsel %vm566, 1, 0
        %v568 = vcvt.s32.f32 %v567
        %v569 = vadd.f32 %v562, %v568
        %v570 = vpack.c.bf16 %v513, %v457
        %v571 = vpack.c.bf16 %v569, %v569
        %v573 = vlaneseq
        %v574 = vshrl.u32 %v573, 7
        %v575 = vsub.s32 0, %v574
        %v576 = vrot.slane %v390, %v575
        %v594 = vunpack.c.l.b16 %v370
        %v595 = vunpack.c.l.b16 %v371
        %v596 = vunpack.c.l.b16 %v372
        %v597 = vunpack.c.l.b16 %v373
        %v598 = vunpack.c.l.b16 %v374
        %v599 = vunpack.c.l.b16 %v375
        %v600 = vunpack.c.l.b16 %v376
        %v601 = vunpack.c.l.b16 %v377
        %v602 = vunpack.c.l.b16 %v378
        %v603 = vunpack.c.l.b16 %v379
        %v604 = vunpack.c.l.b16 %v380
        %v605 = vunpack.c.l.b16 %v381
        %v606 = vunpack.c.l.b16 %v382
        %v607 = vunpack.c.l.b16 %v383
        %v608 = vunpack.c.l.b16 %v384
        %v609 = vunpack.c.l.b16 %v385
        %v610 = vpack.c.b16 %v595, %v594
        %v611 = vpack.c.b16 %v597, %v596
        %v612 = vpack.c.b16 %v599, %v598
        %v613 = vpack.c.b16 %v601, %v600
        %v614 = vpack.c.b16 %v603, %v602
        %v615 = vpack.c.b16 %v605, %v604
        %v616 = vpack.c.b16 %v607, %v606
        %v617 = vpack.c.b16 %v609, %v608
        %626 = vmatprep.subr.bf16.mxu0 0
        %627 = vmatpush1.bf16.msra.mxu0 %v617
        %628 = vmatprep.subr.bf16.mxu0 0
        %629 = vmatpush1.bf16.msra.mxu0 %v616
        %630 = vmatprep.subr.bf16.mxu0 0
        %631 = vmatpush1.bf16.msra.mxu0 %v615
        %632 = vmatprep.subr.bf16.mxu0 0
        %633 = vmatpush1.bf16.msra.mxu0 %v614
        %634 = vmatprep.subr.bf16.mxu0 0
        %635 = vmatpush1.bf16.msra.mxu0 %v613
        %636 = vmatprep.subr.bf16.mxu0 0
        %637 = vmatpush1.bf16.msra.mxu0 %v612
        %638 = vmatprep.subr.bf16.mxu0 0
        %639 = vmatpush1.bf16.msra.mxu0 %v611
        %640 = vmatprep.subr.bf16.mxu0 0
        %641 = vmatpush1.bf16.msra.mxu0 %v610
        %642 = vmatprep.subr.bf16.mxu0 0
        %643 = vmatpush2.bf16.msra.mxu0 0
        %644 = vmatprep.subr.bf16.mxu0 0
        %645 = vmatpush2.bf16.msra.mxu0 0
        %646 = vmatprep.subr.bf16.mxu0 0
        %647 = vmatpush2.bf16.msra.mxu0 0
        %648 = vmatprep.subr.bf16.mxu0 0
        %649 = vmatpush2.bf16.msra.mxu0 0
        %650 = vmatprep.subr.bf16.mxu0 0
        %651 = vmatpush2.bf16.msra.mxu0 0
        %652 = vmatprep.subr.bf16.mxu0 0
        %653 = vmatpush2.bf16.msra.mxu0 0
        %654 = vmatprep.subr.bf16.mxu0 0
        %655 = vmatpush2.bf16.msra.mxu0 0
        %656 = vmatprep.subr.bf16.mxu0 0
        %657 = vmatpush2.bf16.msra.mxu0 0
        %658 = vmatprep.mubr.bf16.mxu0 0
        %659 = vmatmul.mubr.bf16.gmra.mxu0 %v570
        %v660 = vpop.f32.mrf.mxu0
        %v661 = vadd.f32 %v576, %v660
        %v662 = vpop.f32.mrf.mxu0
        %v663 = vpop.f32.mrf.mxu0
        %v664 = vadd.f32 %v576, %v663
        %v665 = vpop.f32.mrf.mxu0
        %666 = vmatprep.mubr.bf16.mxu0 0
        %667 = vmatmul.mubr.bf16.gmra.mxu0 %v571
        %v668 = vpop.f32.mrf.mxu0
        %v669 = vadd.f32 %v576, %v668
        %v670 = vpop.f32.mrf.mxu0
        %v671 = vpop.f32.mrf.mxu0
        %v672 = vpop.f32.mrf.mxu0
        %673 = vdwg.mxu0
        %v678 = vunpack.c.l.b16 %v386
        %v679 = vunpack.c.l.b16 %v387
        %v680 = vunpack.c.l.b16 %v388
        %v681 = vunpack.c.l.b16 %v389
        %v682 = vpack.c.b16 %v679, %v678
        %v683 = vpack.c.b16 %v681, %v680
        %vm686 = vcmask 261120
        %v688 = vsel %vm686, 0, 0
        %690 = vmatprep.subr.bf16.mxu0 0
        %691 = vmatpush1.bf16.msra.mxu0 0
        %692 = vmatprep.subr.bf16.mxu0 0
        %693 = vmatpush1.bf16.msra.mxu0 0
        %694 = vmatprep.subr.bf16.mxu0 0
        %695 = vmatpush1.bf16.msra.mxu0 0
        %696 = vmatprep.subr.bf16.mxu0 0
        %697 = vmatpush1.bf16.msra.mxu0 0
        %698 = vmatprep.subr.bf16.mxu0 0
        %699 = vmatpush1.bf16.msra.mxu0 0
        %700 = vmatprep.subr.bf16.mxu0 0
        %701 = vmatpush1.bf16.msra.mxu0 0
        %702 = vmatprep.subr.bf16.mxu0 0
        %703 = vmatpush1.bf16.msra.mxu0 %v683
        %704 = vmatprep.subr.bf16.mxu0 0
        %705 = vmatpush1.bf16.msra.mxu0 %v682
        %706 = vmatprep.subr.bf16.mxu0 0
        %707 = vmatpush2.bf16.msra.mxu0 0
        %708 = vmatprep.subr.bf16.mxu0 0
        %709 = vmatpush2.bf16.msra.mxu0 0
        %710 = vmatprep.subr.bf16.mxu0 0
        %711 = vmatpush2.bf16.msra.mxu0 0
        %712 = vmatprep.subr.bf16.mxu0 0
        %713 = vmatpush2.bf16.msra.mxu0 0
        %714 = vmatprep.subr.bf16.mxu0 0
        %715 = vmatpush2.bf16.msra.mxu0 0
        %716 = vmatprep.subr.bf16.mxu0 0
        %717 = vmatpush2.bf16.msra.mxu0 0
        %718 = vmatprep.subr.bf16.mxu0 0
        %719 = vmatpush2.bf16.msra.mxu0 0
        %720 = vmatprep.subr.bf16.mxu0 0
        %721 = vmatpush2.bf16.msra.mxu0 0
        %722 = vmatprep.mubr.bf16.mxu0 0
        %723 = vmatmul.mubr.bf16.gmra.mxu0 %v688
        %v724 = vpop.f32.mrf.mxu0
        %v725 = vadd.f32 0.0, %v724
        %v726 = vpop.f32.mrf.mxu0
        %v727 = vpop.f32.mrf.mxu0
        %v728 = vadd.f32 0.0, %v727
        %v729 = vpop.f32.mrf.mxu0
        %730 = vmatprep.mubr.bf16.mxu0 0
        %731 = vmatmul.mubr.bf16.gmra.mxu0 %v688
        %v732 = vpop.f32.mrf.mxu0
        %v733 = vadd.f32 0.0, %v732
        %v734 = vpop.f32.mrf.mxu0
        %v735 = vpop.f32.mrf.mxu0
        %v736 = vpop.f32.mrf.mxu0
        %737 = vdwg.mxu0
        %v738 = vadd.f32 %v661, %v725
        %v739 = vadd.f32 %v664, %v728
        %v740 = vadd.f32 %v669, %v733
        %v741 = vxor.u32 %v738, 2147483648
        %v742 = vxor.u32 %v739, 2147483648
        %v743 = vxor.u32 %v740, 2147483648
        %v744 = vmul.f32 %v741, 1.442695
        %v745 = vpow.pop %v744
        %v746 = vmul.f32 %v742, 1.442695
        %v747 = vpow.pop %v746
        %v748 = vmul.f32 %v743, 1.442695
        %v749 = vpow.pop %v748
        %v750 = vadd.f32 %v745, 1.0
        %v751 = vadd.f32 %v747, 1.0
        %v752 = vadd.f32 %v749, 1.0
        %v753 = vrcp.pop %v750
        %v754 = vmul.f32 1.0, %v753
        %v755 = vrcp.pop %v751
        %v756 = vmul.f32 1.0, %v755
        %v757 = vrcp.pop %v752
        %v758 = vmul.f32 1.0, %v757
        %v759 = vtanh.pop %v738
        %v760 = vtanh.pop %v739
        %v761 = vtanh.pop %v740
        %v762 = vmul.f32 %v754, 0.0
        %v763 = vmul.f32 %v756, 0.0
        %v764 = vmul.f32 %v758, 0.0
        %768 = vrot.lane.b32.xlu0 %v759, 32
        %v769 = vpop.permute.xlu0 %768
        %770 = vrot.lane.b32.xlu0 %v760, 32
        %v771 = vpop.permute.xlu0 %770
        %772 = vrot.lane.b32.xlu0 %v761, 32
        %v773 = vpop.permute.xlu0 %772
        %v777 = vmul.f32 %v754, %v769
        %v778 = vmul.f32 %v756, %v771
        %v779 = vmul.f32 %v758, %v773
        %783 = vrot.lane.b32.xlu0 %v777, 32
        %v784 = vpop.permute.xlu0 %783
        %785 = vrot.lane.b32.xlu0 %v778, 32
        %v786 = vpop.permute.xlu0 %785
        %787 = vrot.lane.b32.xlu0 %v779, 32
        %v788 = vpop.permute.xlu0 %787
        %v792 = vadd.f32 %v762, %v784
        %v793 = vadd.f32 %v763, %v786
        %v794 = vadd.f32 %v764, %v788
        %v795 = vtanh.pop %v792
        %v796 = vtanh.pop %v793
        %v797 = vtanh.pop %v794
        %801 = vrot.lane.b32.xlu0 %v795, 32
        %v802 = vpop.permute.xlu0 %801
        %803 = vrot.lane.b32.xlu0 %v796, 32
        %v804 = vpop.permute.xlu0 %803
        %805 = vrot.lane.b32.xlu0 %v797, 32
        %v806 = vpop.permute.xlu0 %805
        %v810 = vmul.f32 %v754, %v802
        %v811 = vmul.f32 %v756, %v804
        %v812 = vmul.f32 %v758, %v806
        %813 = vset.pattern.permute.xlu0 8
        %814 = vperm.xlu0 %813, %v352
        %v815 = vpop.permute.xlu0 %814
        %vm816 = vcmp.eq.s32.totalorder %v815, %v401
        %v817 = vsel %vm816, 1, 0
        %v818 = vcvt.s32.f32 %v817
        %v819 = vadd.f32 %v818, 0.0
        %820 = vset.pattern.permute.xlu0 9
        %821 = vperm.xlu0 %820, %v352
        %v822 = vpop.permute.xlu0 %821
        %vm823 = vcmp.eq.s32.totalorder %v822, %v401
        %v824 = vsel %vm823, 1, 0
        %v825 = vcvt.s32.f32 %v824
        %v826 = vadd.f32 %v819, %v825
        %827 = vset.pattern.permute.xlu0 10
        %828 = vperm.xlu0 %827, %v352
        %v829 = vpop.permute.xlu0 %828
        %vm830 = vcmp.eq.s32.totalorder %v829, %v401
        %v831 = vsel %vm830, 1, 0
        %v832 = vcvt.s32.f32 %v831
        %v833 = vadd.f32 %v826, %v832
        %834 = vset.pattern.permute.xlu0 11
        %835 = vperm.xlu0 %834, %v352
        %v836 = vpop.permute.xlu0 %835
        %vm837 = vcmp.eq.s32.totalorder %v836, %v401
        %v838 = vsel %vm837, 1, 0
        %v839 = vcvt.s32.f32 %v838
        %v840 = vadd.f32 %v833, %v839
        %841 = vset.pattern.permute.xlu0 12
        %842 = vperm.xlu0 %841, %v352
        %v843 = vpop.permute.xlu0 %842
        %vm844 = vcmp.eq.s32.totalorder %v843, %v401
        %v845 = vsel %vm844, 1, 0
        %v846 = vcvt.s32.f32 %v845
        %v847 = vadd.f32 %v840, %v846
        %848 = vset.pattern.permute.xlu0 13
        %849 = vperm.xlu0 %848, %v352
        %v850 = vpop.permute.xlu0 %849
        %vm851 = vcmp.eq.s32.totalorder %v850, %v401
        %v852 = vsel %vm851, 1, 0
        %v853 = vcvt.s32.f32 %v852
        %v854 = vadd.f32 %v847, %v853
        %855 = vset.pattern.permute.xlu0 14
        %856 = vperm.xlu0 %855, %v352
        %v857 = vpop.permute.xlu0 %856
        %vm858 = vcmp.eq.s32.totalorder %v857, %v401
        %v859 = vsel %vm858, 1, 0
        %v860 = vcvt.s32.f32 %v859
        %v861 = vadd.f32 %v854, %v860
        %862 = vset.pattern.permute.xlu0 15
        %863 = vperm.xlu0 %862, %v352
        %v864 = vpop.permute.xlu0 %863
        %vm865 = vcmp.eq.s32.totalorder %v864, %v401
        %v866 = vsel %vm865, 1, 0
        %v867 = vcvt.s32.f32 %v866
        %v868 = vadd.f32 %v861, %v867
        %869 = vset.pattern.permute.xlu0 32
        %870 = vperm.xlu0 %869, %v352
        %v871 = vpop.permute.xlu0 %870
        %vm872 = vcmp.eq.s32.totalorder %v871, %v401
        %v873 = vsel %vm872, 1, 0
        %v874 = vcvt.s32.f32 %v873
        %v875 = vadd.f32 %v874, 0.0
        %876 = vset.pattern.permute.xlu0 33
        %877 = vperm.xlu0 %876, %v352
        %v878 = vpop.permute.xlu0 %877
        %vm879 = vcmp.eq.s32.totalorder %v878, %v401
        %v880 = vsel %vm879, 1, 0
        %v881 = vcvt.s32.f32 %v880
        %v882 = vadd.f32 %v875, %v881
        %883 = vset.pattern.permute.xlu0 34
        %884 = vperm.xlu0 %883, %v352
        %v885 = vpop.permute.xlu0 %884
        %vm886 = vcmp.eq.s32.totalorder %v885, %v401
        %v887 = vsel %vm886, 1, 0
        %v888 = vcvt.s32.f32 %v887
        %v889 = vadd.f32 %v882, %v888
        %890 = vset.pattern.permute.xlu0 35
        %891 = vperm.xlu0 %890, %v352
        %v892 = vpop.permute.xlu0 %891
        %vm893 = vcmp.eq.s32.totalorder %v892, %v401
        %v894 = vsel %vm893, 1, 0
        %v895 = vcvt.s32.f32 %v894
        %v896 = vadd.f32 %v889, %v895
        %897 = vset.pattern.permute.xlu0 36
        %898 = vperm.xlu0 %897, %v352
        %v899 = vpop.permute.xlu0 %898
        %vm900 = vcmp.eq.s32.totalorder %v899, %v401
        %v901 = vsel %vm900, 1, 0
        %v902 = vcvt.s32.f32 %v901
        %v903 = vadd.f32 %v896, %v902
        %904 = vset.pattern.permute.xlu0 37
        %905 = vperm.xlu0 %904, %v352
        %v906 = vpop.permute.xlu0 %905
        %vm907 = vcmp.eq.s32.totalorder %v906, %v401
        %v908 = vsel %vm907, 1, 0
        %v909 = vcvt.s32.f32 %v908
        %v910 = vadd.f32 %v903, %v909
        %911 = vset.pattern.permute.xlu0 38
        %912 = vperm.xlu0 %911, %v352
        %v913 = vpop.permute.xlu0 %912
        %vm914 = vcmp.eq.s32.totalorder %v913, %v401
        %v915 = vsel %vm914, 1, 0
        %v916 = vcvt.s32.f32 %v915
        %v917 = vadd.f32 %v910, %v916
        %918 = vset.pattern.permute.xlu0 39
        %919 = vperm.xlu0 %918, %v352
        %v920 = vpop.permute.xlu0 %919
        %vm921 = vcmp.eq.s32.totalorder %v920, %v401
        %v922 = vsel %vm921, 1, 0
        %v923 = vcvt.s32.f32 %v922
        %v924 = vadd.f32 %v917, %v923
        %925 = vset.pattern.permute.xlu0 56
        %926 = vperm.xlu0 %925, %v352
        %v927 = vpop.permute.xlu0 %926
        %vm928 = vcmp.eq.s32.totalorder %v927, %v401
        %v929 = vsel %vm928, 1, 0
        %v930 = vcvt.s32.f32 %v929
        %v931 = vadd.f32 %v930, 0.0
        %932 = vset.pattern.permute.xlu0 57
        %933 = vperm.xlu0 %932, %v352
        %v934 = vpop.permute.xlu0 %933
        %vm935 = vcmp.eq.s32.totalorder %v934, %v401
        %v936 = vsel %vm935, 1, 0
        %v937 = vcvt.s32.f32 %v936
        %v938 = vadd.f32 %v931, %v937
        %939 = vset.pattern.permute.xlu0 58
        %940 = vperm.xlu0 %939, %v352
        %v941 = vpop.permute.xlu0 %940
        %vm942 = vcmp.eq.s32.totalorder %v941, %v401
        %v943 = vsel %vm942, 1, 0
        %v944 = vcvt.s32.f32 %v943
        %v945 = vadd.f32 %v938, %v944
        %946 = vset.pattern.permute.xlu0 59
        %947 = vperm.xlu0 %946, %v352
        %v948 = vpop.permute.xlu0 %947
        %vm949 = vcmp.eq.s32.totalorder %v948, %v401
        %v950 = vsel %vm949, 1, 0
        %v951 = vcvt.s32.f32 %v950
        %v952 = vadd.f32 %v945, %v951
        %953 = vset.pattern.permute.xlu0 60
        %954 = vperm.xlu0 %953, %v352
        %v955 = vpop.permute.xlu0 %954
        %vm956 = vcmp.eq.s32.totalorder %v955, %v401
        %v957 = vsel %vm956, 1, 0
        %v958 = vcvt.s32.f32 %v957
        %v959 = vadd.f32 %v952, %v958
        %960 = vset.pattern.permute.xlu0 61
        %961 = vperm.xlu0 %960, %v352
        %v962 = vpop.permute.xlu0 %961
        %vm963 = vcmp.eq.s32.totalorder %v962, %v401
        %v964 = vsel %vm963, 1, 0
        %v965 = vcvt.s32.f32 %v964
        %v966 = vadd.f32 %v959, %v965
        %967 = vset.pattern.permute.xlu0 62
        %968 = vperm.xlu0 %967, %v352
        %v969 = vpop.permute.xlu0 %968
        %vm970 = vcmp.eq.s32.totalorder %v969, %v401
        %v971 = vsel %vm970, 1, 0
        %v972 = vcvt.s32.f32 %v971
        %v973 = vadd.f32 %v966, %v972
        %974 = vset.pattern.permute.xlu0 63
        %975 = vperm.xlu0 %974, %v352
        %v976 = vpop.permute.xlu0 %975
        %vm977 = vcmp.eq.s32.totalorder %v976, %v401
        %v978 = vsel %vm977, 1, 0
        %v979 = vcvt.s32.f32 %v978
        %v980 = vadd.f32 %v973, %v979
        %v981 = vpack.c.bf16 %v924, %v868
        %v982 = vpack.c.bf16 %v980, %v980
        %983 = vmatprep.subr.bf16.mxu0 0
        %984 = vmatpush1.bf16.msra.mxu0 %v617
        %985 = vmatprep.subr.bf16.mxu0 0
        %986 = vmatpush1.bf16.msra.mxu0 %v616
        %987 = vmatprep.subr.bf16.mxu0 0
        %988 = vmatpush1.bf16.msra.mxu0 %v615
        %989 = vmatprep.subr.bf16.mxu0 0
        %990 = vmatpush1.bf16.msra.mxu0 %v614
        %991 = vmatprep.subr.bf16.mxu0 0
        %992 = vmatpush1.bf16.msra.mxu0 %v613
        %993 = vmatprep.subr.bf16.mxu0 0
        %994 = vmatpush1.bf16.msra.mxu0 %v612
        %995 = vmatprep.subr.bf16.mxu0 0
        %996 = vmatpush1.bf16.msra.mxu0 %v611
        %997 = vmatprep.subr.bf16.mxu0 0
        %998 = vmatpush1.bf16.msra.mxu0 %v610
        %999 = vmatprep.subr.bf16.mxu0 0
        %1000 = vmatpush2.bf16.msra.mxu0 0
        %1001 = vmatprep.subr.bf16.mxu0 0
        %1002 = vmatpush2.bf16.msra.mxu0 0
        %1003 = vmatprep.subr.bf16.mxu0 0
        %1004 = vmatpush2.bf16.msra.mxu0 0
        %1005 = vmatprep.subr.bf16.mxu0 0
        %1006 = vmatpush2.bf16.msra.mxu0 0
        %1007 = vmatprep.subr.bf16.mxu0 0
        %1008 = vmatpush2.bf16.msra.mxu0 0
        %1009 = vmatprep.subr.bf16.mxu0 0
        %1010 = vmatpush2.bf16.msra.mxu0 0
        %1011 = vmatprep.subr.bf16.mxu0 0
        %1012 = vmatpush2.bf16.msra.mxu0 0
        %1013 = vmatprep.subr.bf16.mxu0 0
        %1014 = vmatpush2.bf16.msra.mxu0 0
        %1015 = vmatprep.mubr.bf16.mxu0 0
        %1016 = vmatmul.mubr.bf16.gmra.mxu0 %v981
        %v1017 = vpop.f32.mrf.mxu0
        %v1018 = vadd.f32 %v576, %v1017
        %v1019 = vpop.f32.mrf.mxu0
        %v1020 = vpop.f32.mrf.mxu0
        %v1021 = vadd.f32 %v576, %v1020
        %v1022 = vpop.f32.mrf.mxu0
        %1023 = vmatprep.mubr.bf16.mxu0 0
        %1024 = vmatmul.mubr.bf16.gmra.mxu0 %v982
        %v1025 = vpop.f32.mrf.mxu0
        %v1026 = vadd.f32 %v576, %v1025
        %v1027 = vpop.f32.mrf.mxu0
        %v1028 = vpop.f32.mrf.mxu0
        %v1029 = vpop.f32.mrf.mxu0
        %1030 = vdwg.mxu0
        %v1031 = vpack.c.bf16 %v811, %v810
        %v1032 = vpack.c.bf16 %v812, %v812
        %1035 = vrot.lane.b32.xlu0 %v1031, 64
        %v1036 = vpop.permute.xlu0 %1035
        %1037 = vrot.lane.b32.xlu0 %v1032, 64
        %v1038 = vpop.permute.xlu0 %1037
        %v1040 = vsel %vm686, %v1036, 0
        %v1043 = vsel %vm686, %v1038, 0
        %1045 = vmatprep.subr.bf16.mxu0 0
        %1046 = vmatpush1.bf16.msra.mxu0 0
        %1047 = vmatprep.subr.bf16.mxu0 0
        %1048 = vmatpush1.bf16.msra.mxu0 0
        %1049 = vmatprep.subr.bf16.mxu0 0
        %1050 = vmatpush1.bf16.msra.mxu0 0
        %1051 = vmatprep.subr.bf16.mxu0 0
        %1052 = vmatpush1.bf16.msra.mxu0 0
        %1053 = vmatprep.subr.bf16.mxu0 0
        %1054 = vmatpush1.bf16.msra.mxu0 0
        %1055 = vmatprep.subr.bf16.mxu0 0
        %1056 = vmatpush1.bf16.msra.mxu0 0
        %1057 = vmatprep.subr.bf16.mxu0 0
        %1058 = vmatpush1.bf16.msra.mxu0 %v683
        %1059 = vmatprep.subr.bf16.mxu0 0
        %1060 = vmatpush1.bf16.msra.mxu0 %v682
        %1061 = vmatprep.subr.bf16.mxu0 0
        %1062 = vmatpush2.bf16.msra.mxu0 0
        %1063 = vmatprep.subr.bf16.mxu0 0
        %1064 = vmatpush2.bf16.msra.mxu0 0
        %1065 = vmatprep.subr.bf16.mxu0 0
        %1066 = vmatpush2.bf16.msra.mxu0 0
        %1067 = vmatprep.subr.bf16.mxu0 0
        %1068 = vmatpush2.bf16.msra.mxu0 0
        %1069 = vmatprep.subr.bf16.mxu0 0
        %1070 = vmatpush2.bf16.msra.mxu0 0
        %1071 = vmatprep.subr.bf16.mxu0 0
        %1072 = vmatpush2.bf16.msra.mxu0 0
        %1073 = vmatprep.subr.bf16.mxu0 0
        %1074 = vmatpush2.bf16.msra.mxu0 0
        %1075 = vmatprep.subr.bf16.mxu0 0
        %1076 = vmatpush2.bf16.msra.mxu0 0
        %1077 = vmatprep.mubr.bf16.mxu0 0
        %1078 = vmatmul.mubr.bf16.gmra.mxu0 %v1040
        %v1079 = vpop.f32.mrf.mxu0
        %v1080 = vadd.f32 0.0, %v1079
        %v1081 = vpop.f32.mrf.mxu0
        %v1082 = vpop.f32.mrf.mxu0
        %v1083 = vadd.f32 0.0, %v1082
        %v1084 = vpop.f32.mrf.mxu0
        %1085 = vmatprep.mubr.bf16.mxu0 0
        %1086 = vmatmul.mubr.bf16.gmra.mxu0 %v1043
        %v1087 = vpop.f32.mrf.mxu0
        %v1088 = vadd.f32 0.0, %v1087
        %v1089 = vpop.f32.mrf.mxu0
        %v1090 = vpop.f32.mrf.mxu0
        %v1091 = vpop.f32.mrf.mxu0
        %1092 = vdwg.mxu0
        %v1093 = vadd.f32 %v1018, %v1080
        %v1094 = vadd.f32 %v1021, %v1083
        %v1095 = vadd.f32 %v1026, %v1088
        %v1096 = vxor.u32 %v1093, 2147483648
        %v1097 = vxor.u32 %v1094, 2147483648
        %v1098 = vxor.u32 %v1095, 2147483648
        %v1099 = vmul.f32 %v1096, 1.442695
        %v1100 = vpow.pop %v1099
        %v1101 = vmul.f32 %v1097, 1.442695
        %v1102 = vpow.pop %v1101
        %v1103 = vmul.f32 %v1098, 1.442695
        %v1104 = vpow.pop %v1103
        %v1105 = vadd.f32 %v1100, 1.0
        %v1106 = vadd.f32 %v1102, 1.0
        %v1107 = vadd.f32 %v1104, 1.0
        %v1108 = vrcp.pop %v1105
        %v1109 = vmul.f32 1.0, %v1108
        %v1110 = vrcp.pop %v1106
        %v1111 = vmul.f32 1.0, %v1110
        %v1112 = vrcp.pop %v1107
        %v1113 = vmul.f32 1.0, %v1112
        %v1114 = vtanh.pop %v1093
        %v1115 = vtanh.pop %v1094
        %v1116 = vtanh.pop %v1095
        %v1117 = vmul.f32 %v1109, %v792
        %v1118 = vmul.f32 %v1111, %v793
        %v1119 = vmul.f32 %v1113, %v794
        %1123 = vrot.lane.b32.xlu0 %v1114, 32
        %v1124 = vpop.permute.xlu0 %1123
        %1125 = vrot.lane.b32.xlu0 %v1115, 32
        %v1126 = vpop.permute.xlu0 %1125
        %1127 = vrot.lane.b32.xlu0 %v1116, 32
        %v1128 = vpop.permute.xlu0 %1127
        %v1132 = vmul.f32 %v1109, %v1124
        %v1133 = vmul.f32 %v1111, %v1126
        %v1134 = vmul.f32 %v1113, %v1128
        %1138 = vrot.lane.b32.xlu0 %v1132, 32
        %v1139 = vpop.permute.xlu0 %1138
        %1140 = vrot.lane.b32.xlu0 %v1133, 32
        %v1141 = vpop.permute.xlu0 %1140
        %1142 = vrot.lane.b32.xlu0 %v1134, 32
        %v1143 = vpop.permute.xlu0 %1142
        %v1147 = vadd.f32 %v1117, %v1139
        %v1148 = vadd.f32 %v1118, %v1141
        %v1149 = vadd.f32 %v1119, %v1143
        %v1150 = vtanh.pop %v1147
        %v1151 = vtanh.pop %v1148
        %v1152 = vtanh.pop %v1149
        %1156 = vrot.lane.b32.xlu0 %v1150, 32
        %v1157 = vpop.permute.xlu0 %1156
        %1158 = vrot.lane.b32.xlu0 %v1151, 32
        %v1159 = vpop.permute.xlu0 %1158
        %1160 = vrot.lane.b32.xlu0 %v1152, 32
        %v1161 = vpop.permute.xlu0 %1160
        %v1165 = vmul.f32 %v1109, %v1157
        %v1166 = vmul.f32 %v1111, %v1159
        %v1167 = vmul.f32 %v1113, %v1161
        %1168 = vset.pattern.permute.xlu0 16
        %1169 = vperm.xlu0 %1168, %v352
        %v1170 = vpop.permute.xlu0 %1169
        %vm1171 = vcmp.eq.s32.totalorder %v1170, %v401
        %v1172 = vsel %vm1171, 1, 0
        %v1173 = vcvt.s32.f32 %v1172
        %v1174 = vadd.f32 %v1173, 0.0
        %1175 = vset.pattern.permute.xlu0 17
        %1176 = vperm.xlu0 %1175, %v352
        %v1177 = vpop.permute.xlu0 %1176
        %vm1178 = vcmp.eq.s32.totalorder %v1177, %v401
        %v1179 = vsel %vm1178, 1, 0
        %v1180 = vcvt.s32.f32 %v1179
        %v1181 = vadd.f32 %v1174, %v1180
        %1182 = vset.pattern.permute.xlu0 18
        %1183 = vperm.xlu0 %1182, %v352
        %v1184 = vpop.permute.xlu0 %1183
        %vm1185 = vcmp.eq.s32.totalorder %v1184, %v401
        %v1186 = vsel %vm1185, 1, 0
        %v1187 = vcvt.s32.f32 %v1186
        %v1188 = vadd.f32 %v1181, %v1187
        %1189 = vset.pattern.permute.xlu0 19
        %1190 = vperm.xlu0 %1189, %v352
        %v1191 = vpop.permute.xlu0 %1190
        %vm1192 = vcmp.eq.s32.totalorder %v1191, %v401
        %v1193 = vsel %vm1192, 1, 0
        %v1194 = vcvt.s32.f32 %v1193
        %v1195 = vadd.f32 %v1188, %v1194
        %1196 = vset.pattern.permute.xlu0 20
        %1197 = vperm.xlu0 %1196, %v352
        %v1198 = vpop.permute.xlu0 %1197
        %vm1199 = vcmp.eq.s32.totalorder %v1198, %v401
        %v1200 = vsel %vm1199, 1, 0
        %v1201 = vcvt.s32.f32 %v1200
        %v1202 = vadd.f32 %v1195, %v1201
        %1203 = vset.pattern.permute.xlu0 21
        %1204 = vperm.xlu0 %1203, %v352
        %v1205 = vpop.permute.xlu0 %1204
        %vm1206 = vcmp.eq.s32.totalorder %v1205, %v401
        %v1207 = vsel %vm1206, 1, 0
        %v1208 = vcvt.s32.f32 %v1207
        %v1209 = vadd.f32 %v1202, %v1208
        %1210 = vset.pattern.permute.xlu0 22
        %1211 = vperm.xlu0 %1210, %v352
        %v1212 = vpop.permute.xlu0 %1211
        %vm1213 = vcmp.eq.s32.totalorder %v1212, %v401
        %v1214 = vsel %vm1213, 1, 0
        %v1215 = vcvt.s32.f32 %v1214
        %v1216 = vadd.f32 %v1209, %v1215
        %1217 = vset.pattern.permute.xlu0 23
        %1218 = vperm.xlu0 %1217, %v352
        %v1219 = vpop.permute.xlu0 %1218
        %vm1220 = vcmp.eq.s32.totalorder %v1219, %v401
        %v1221 = vsel %vm1220, 1, 0
        %v1222 = vcvt.s32.f32 %v1221
        %v1223 = vadd.f32 %v1216, %v1222
        %1224 = vset.pattern.permute.xlu0 40
        %1225 = vperm.xlu0 %1224, %v352
        %v1226 = vpop.permute.xlu0 %1225
        %vm1227 = vcmp.eq.s32.totalorder %v1226, %v401
        %v1228 = vsel %vm1227, 1, 0
        %v1229 = vcvt.s32.f32 %v1228
        %v1230 = vadd.f32 %v1229, 0.0
        %1231 = vset.pattern.permute.xlu0 41
        %1232 = vperm.xlu0 %1231, %v352
        %v1233 = vpop.permute.xlu0 %1232
        %vm1234 = vcmp.eq.s32.totalorder %v1233, %v401
        %v1235 = vsel %vm1234, 1, 0
        %v1236 = vcvt.s32.f32 %v1235
        %v1237 = vadd.f32 %v1230, %v1236
        %1238 = vset.pattern.permute.xlu0 42
        %1239 = vperm.xlu0 %1238, %v352
        %v1240 = vpop.permute.xlu0 %1239
        %vm1241 = vcmp.eq.s32.totalorder %v1240, %v401
        %v1242 = vsel %vm1241, 1, 0
        %v1243 = vcvt.s32.f32 %v1242
        %v1244 = vadd.f32 %v1237, %v1243
        %1245 = vset.pattern.permute.xlu0 43
        %1246 = vperm.xlu0 %1245, %v352
        %v1247 = vpop.permute.xlu0 %1246
        %vm1248 = vcmp.eq.s32.totalorder %v1247, %v401
        %v1249 = vsel %vm1248, 1, 0
        %v1250 = vcvt.s32.f32 %v1249
        %v1251 = vadd.f32 %v1244, %v1250
        %1252 = vset.pattern.permute.xlu0 44
        %1253 = vperm.xlu0 %1252, %v352
        %v1254 = vpop.permute.xlu0 %1253
        %vm1255 = vcmp.eq.s32.totalorder %v1254, %v401
        %v1256 = vsel %vm1255, 1, 0
        %v1257 = vcvt.s32.f32 %v1256
        %v1258 = vadd.f32 %v1251, %v1257
        %1259 = vset.pattern.permute.xlu0 45
        %1260 = vperm.xlu0 %1259, %v352
        %v1261 = vpop.permute.xlu0 %1260
        %vm1262 = vcmp.eq.s32.totalorder %v1261, %v401
        %v1263 = vsel %vm1262, 1, 0
        %v1264 = vcvt.s32.f32 %v1263
        %v1265 = vadd.f32 %v1258, %v1264
        %1266 = vset.pattern.permute.xlu0 46
        %1267 = vperm.xlu0 %1266, %v352
        %v1268 = vpop.permute.xlu0 %1267
        %vm1269 = vcmp.eq.s32.totalorder %v1268, %v401
        %v1270 = vsel %vm1269, 1, 0
        %v1271 = vcvt.s32.f32 %v1270
        %v1272 = vadd.f32 %v1265, %v1271
        %1273 = vset.pattern.permute.xlu0 47
        %1274 = vperm.xlu0 %1273, %v352
        %v1275 = vpop.permute.xlu0 %1274
        %vm1276 = vcmp.eq.s32.totalorder %v1275, %v401
        %v1277 = vsel %vm1276, 1, 0
        %v1278 = vcvt.s32.f32 %v1277
        %v1279 = vadd.f32 %v1272, %v1278
        %1280 = vset.pattern.permute.xlu0 64
        %1281 = vperm.xlu0 %1280, %v352
        %v1282 = vpop.permute.xlu0 %1281
        %vm1283 = vcmp.eq.s32.totalorder %v1282, %v401
        %v1284 = vsel %vm1283, 1, 0
        %v1285 = vcvt.s32.f32 %v1284
        %v1286 = vadd.f32 %v1285, 0.0
        %1287 = vset.pattern.permute.xlu0 65
        %1288 = vperm.xlu0 %1287, %v352
        %v1289 = vpop.permute.xlu0 %1288
        %vm1290 = vcmp.eq.s32.totalorder %v1289, %v401
        %v1291 = vsel %vm1290, 1, 0
        %v1292 = vcvt.s32.f32 %v1291
        %v1293 = vadd.f32 %v1286, %v1292
        %1294 = vset.pattern.permute.xlu0 66
        %1295 = vperm.xlu0 %1294, %v352
        %v1296 = vpop.permute.xlu0 %1295
        %vm1297 = vcmp.eq.s32.totalorder %v1296, %v401
        %v1298 = vsel %vm1297, 1, 0
        %v1299 = vcvt.s32.f32 %v1298
        %v1300 = vadd.f32 %v1293, %v1299
        %1301 = vset.pattern.permute.xlu0 67
        %1302 = vperm.xlu0 %1301, %v352
        %v1303 = vpop.permute.xlu0 %1302
        %vm1304 = vcmp.eq.s32.totalorder %v1303, %v401
        %v1305 = vsel %vm1304, 1, 0
        %v1306 = vcvt.s32.f32 %v1305
        %v1307 = vadd.f32 %v1300, %v1306
        %1308 = vset.pattern.permute.xlu0 68
        %1309 = vperm.xlu0 %1308, %v352
        %v1310 = vpop.permute.xlu0 %1309
        %vm1311 = vcmp.eq.s32.totalorder %v1310, %v401
        %v1312 = vsel %vm1311, 1, 0
        %v1313 = vcvt.s32.f32 %v1312
        %v1314 = vadd.f32 %v1307, %v1313
        %1315 = vset.pattern.permute.xlu0 69
        %1316 = vperm.xlu0 %1315, %v352
        %v1317 = vpop.permute.xlu0 %1316
        %vm1318 = vcmp.eq.s32.totalorder %v1317, %v401
        %v1319 = vsel %vm1318, 1, 0
        %v1320 = vcvt.s32.f32 %v1319
        %v1321 = vadd.f32 %v1314, %v1320
        %1322 = vset.pattern.permute.xlu0 70
        %1323 = vperm.xlu0 %1322, %v352
        %v1324 = vpop.permute.xlu0 %1323
        %vm1325 = vcmp.eq.s32.totalorder %v1324, %v401
        %v1326 = vsel %vm1325, 1, 0
        %v1327 = vcvt.s32.f32 %v1326
        %v1328 = vadd.f32 %v1321, %v1327
        %1329 = vset.pattern.permute.xlu0 71
        %1330 = vperm.xlu0 %1329, %v352
        %v1331 = vpop.permute.xlu0 %1330
        %vm1332 = vcmp.eq.s32.totalorder %v1331, %v401
        %v1333 = vsel %vm1332, 1, 0
        %v1334 = vcvt.s32.f32 %v1333
        %v1335 = vadd.f32 %v1328, %v1334
        %v1336 = vpack.c.bf16 %v1279, %v1223
        %v1337 = vpack.c.bf16 %v1335, %v1335
        %1338 = vmatprep.subr.bf16.mxu0 0
        %1339 = vmatpush1.bf16.msra.mxu0 %v617
        %1340 = vmatprep.subr.bf16.mxu0 0
        %1341 = vmatpush1.bf16.msra.mxu0 %v616
        %1342 = vmatprep.subr.bf16.mxu0 0
        %1343 = vmatpush1.bf16.msra.mxu0 %v615
        %1344 = vmatprep.subr.bf16.mxu0 0
        %1345 = vmatpush1.bf16.msra.mxu0 %v614
        %1346 = vmatprep.subr.bf16.mxu0 0
        %1347 = vmatpush1.bf16.msra.mxu0 %v613
        %1348 = vmatprep.subr.bf16.mxu0 0
        %1349 = vmatpush1.bf16.msra.mxu0 %v612
        %1350 = vmatprep.subr.bf16.mxu0 0
        %1351 = vmatpush1.bf16.msra.mxu0 %v611
        %1352 = vmatprep.subr.bf16.mxu0 0
        %1353 = vmatpush1.bf16.msra.mxu0 %v610
        %1354 = vmatprep.subr.bf16.mxu0 0
        %1355 = vmatpush2.bf16.msra.mxu0 0
        %1356 = vmatprep.subr.bf16.mxu0 0
        %1357 = vmatpush2.bf16.msra.mxu0 0
        %1358 = vmatprep.subr.bf16.mxu0 0
        %1359 = vmatpush2.bf16.msra.mxu0 0
        %1360 = vmatprep.subr.bf16.mxu0 0
        %1361 = vmatpush2.bf16.msra.mxu0 0
        %1362 = vmatprep.subr.bf16.mxu0 0
        %1363 = vmatpush2.bf16.msra.mxu0 0
        %1364 = vmatprep.subr.bf16.mxu0 0
        %1365 = vmatpush2.bf16.msra.mxu0 0
        %1366 = vmatprep.subr.bf16.mxu0 0
        %1367 = vmatpush2.bf16.msra.mxu0 0
        %1368 = vmatprep.subr.bf16.mxu0 0
        %1369 = vmatpush2.bf16.msra.mxu0 0
        %1370 = vmatprep.mubr.bf16.mxu0 0
        %1371 = vmatmul.mubr.bf16.gmra.mxu0 %v1336
        %v1372 = vpop.f32.mrf.mxu0
        %v1373 = vadd.f32 %v576, %v1372
        %v1374 = vpop.f32.mrf.mxu0
        %v1375 = vpop.f32.mrf.mxu0
        %v1376 = vadd.f32 %v576, %v1375
        %v1377 = vpop.f32.mrf.mxu0
        %1378 = vmatprep.mubr.bf16.mxu0 0
        %1379 = vmatmul.mubr.bf16.gmra.mxu0 %v1337
        %v1380 = vpop.f32.mrf.mxu0
        %v1381 = vadd.f32 %v576, %v1380
        %v1382 = vpop.f32.mrf.mxu0
        %v1383 = vpop.f32.mrf.mxu0
        %v1384 = vpop.f32.mrf.mxu0
        %1385 = vdwg.mxu0
        %v1386 = vpack.c.bf16 %v1166, %v1165
        %v1387 = vpack.c.bf16 %v1167, %v1167
        %1390 = vrot.lane.b32.xlu0 %v1386, 64
        %v1391 = vpop.permute.xlu0 %1390
        %1392 = vrot.lane.b32.xlu0 %v1387, 64
        %v1393 = vpop.permute.xlu0 %1392
        %v1395 = vsel %vm686, %v1391, 0
        %v1398 = vsel %vm686, %v1393, 0
        %1400 = vmatprep.subr.bf16.mxu0 0
        %1401 = vmatpush1.bf16.msra.mxu0 0
        %1402 = vmatprep.subr.bf16.mxu0 0
        %1403 = vmatpush1.bf16.msra.mxu0 0
        %1404 = vmatprep.subr.bf16.mxu0 0
        %1405 = vmatpush1.bf16.msra.mxu0 0
        %1406 = vmatprep.subr.bf16.mxu0 0
        %1407 = vmatpush1.bf16.msra.mxu0 0
        %1408 = vmatprep.subr.bf16.mxu0 0
        %1409 = vmatpush1.bf16.msra.mxu0 0
        %1410 = vmatprep.subr.bf16.mxu0 0
        %1411 = vmatpush1.bf16.msra.mxu0 0
        %1412 = vmatprep.subr.bf16.mxu0 0
        %1413 = vmatpush1.bf16.msra.mxu0 %v683
        %1414 = vmatprep.subr.bf16.mxu0 0
        %1415 = vmatpush1.bf16.msra.mxu0 %v682
        %1416 = vmatprep.subr.bf16.mxu0 0
        %1417 = vmatpush2.bf16.msra.mxu0 0
        %1418 = vmatprep.subr.bf16.mxu0 0
        %1419 = vmatpush2.bf16.msra.mxu0 0
        %1420 = vmatprep.subr.bf16.mxu0 0
        %1421 = vmatpush2.bf16.msra.mxu0 0
        %1422 = vmatprep.subr.bf16.mxu0 0
        %1423 = vmatpush2.bf16.msra.mxu0 0
        %1424 = vmatprep.subr.bf16.mxu0 0
        %1425 = vmatpush2.bf16.msra.mxu0 0
        %1426 = vmatprep.subr.bf16.mxu0 0
        %1427 = vmatpush2.bf16.msra.mxu0 0
        %1428 = vmatprep.subr.bf16.mxu0 0
        %1429 = vmatpush2.bf16.msra.mxu0 0
        %1430 = vmatprep.subr.bf16.mxu0 0
        %1431 = vmatpush2.bf16.msra.mxu0 0
        %1432 = vmatprep.mubr.bf16.mxu0 0
        %1433 = vmatmul.mubr.bf16.gmra.mxu0 %v1395
        %v1434 = vpop.f32.mrf.mxu0
        %v1435 = vadd.f32 0.0, %v1434
        %v1436 = vpop.f32.mrf.mxu0
        %v1437 = vpop.f32.mrf.mxu0
        %v1438 = vadd.f32 0.0, %v1437
        %v1439 = vpop.f32.mrf.mxu0
        %1440 = vmatprep.mubr.bf16.mxu0 0
        %1441 = vmatmul.mubr.bf16.gmra.mxu0 %v1398
        %v1442 = vpop.f32.mrf.mxu0
        %v1443 = vadd.f32 0.0, %v1442
        %v1444 = vpop.f32.mrf.mxu0
        %v1445 = vpop.f32.mrf.mxu0
        %v1446 = vpop.f32.mrf.mxu0
        %1447 = vdwg.mxu0
        %v1448 = vadd.f32 %v1373, %v1435
        %v1449 = vadd.f32 %v1376, %v1438
        %v1450 = vadd.f32 %v1381, %v1443
        %v1451 = vxor.u32 %v1448, 2147483648
        %v1452 = vxor.u32 %v1449, 2147483648
        %v1453 = vxor.u32 %v1450, 2147483648
        %v1454 = vmul.f32 %v1451, 1.442695
        %v1455 = vpow.pop %v1454
        %v1456 = vmul.f32 %v1452, 1.442695
        %v1457 = vpow.pop %v1456
        %v1458 = vmul.f32 %v1453, 1.442695
        %v1459 = vpow.pop %v1458
        %v1460 = vadd.f32 %v1455, 1.0
        %v1461 = vadd.f32 %v1457, 1.0
        %v1462 = vadd.f32 %v1459, 1.0
        %v1463 = vrcp.pop %v1460
        %v1464 = vmul.f32 1.0, %v1463
        %v1465 = vrcp.pop %v1461
        %v1466 = vmul.f32 1.0, %v1465
        %v1467 = vrcp.pop %v1462
        %v1468 = vmul.f32 1.0, %v1467
        %v1469 = vtanh.pop %v1448
        %v1470 = vtanh.pop %v1449
        %v1471 = vtanh.pop %v1450
        %v1472 = vmul.f32 %v1464, %v1147
        %v1473 = vmul.f32 %v1466, %v1148
        %v1474 = vmul.f32 %v1468, %v1149
        %1478 = vrot.lane.b32.xlu0 %v1469, 32
        %v1479 = vpop.permute.xlu0 %1478
        %1480 = vrot.lane.b32.xlu0 %v1470, 32
        %v1481 = vpop.permute.xlu0 %1480
        %1482 = vrot.lane.b32.xlu0 %v1471, 32
        %v1483 = vpop.permute.xlu0 %1482
        %v1487 = vmul.f32 %v1464, %v1479
        %v1488 = vmul.f32 %v1466, %v1481
        %v1489 = vmul.f32 %v1468, %v1483
        %1493 = vrot.lane.b32.xlu0 %v1487, 32
        %v1494 = vpop.permute.xlu0 %1493
        %1495 = vrot.lane.b32.xlu0 %v1488, 32
        %v1496 = vpop.permute.xlu0 %1495
        %1497 = vrot.lane.b32.xlu0 %v1489, 32
        %v1498 = vpop.permute.xlu0 %1497
        %v1502 = vadd.f32 %v1472, %v1494
        %v1503 = vadd.f32 %v1473, %v1496
        %v1504 = vadd.f32 %v1474, %v1498
        %v1505 = vtanh.pop %v1502
        %v1506 = vtanh.pop %v1503
        %v1507 = vtanh.pop %v1504
        %1511 = vrot.lane.b32.xlu0 %v1505, 32
        %v1512 = vpop.permute.xlu0 %1511
        %1513 = vrot.lane.b32.xlu0 %v1506, 32
        %v1514 = vpop.permute.xlu0 %1513
        %1515 = vrot.lane.b32.xlu0 %v1507, 32
        %v1516 = vpop.permute.xlu0 %1515
        %v1520 = vmul.f32 %v1464, %v1512
        %v1521 = vmul.f32 %v1466, %v1514
        %v1522 = vmul.f32 %v1468, %v1516
        %v1523 = vpack.c.bf16 %v1521, %v1520
        %v1524 = vpack.c.bf16 %v1522, %v1522
        %v1526 = vlaneseq
        %v1527 = vshrl.u32 %v1526, 7
        %v1528 = vsub.s32 0, %v1527
        %v1529 = vrot.slane %v399, %v1528
        %1533 = vrot.lane.b32.xlu0 %v1523, 64
        %v1534 = vpop.permute.xlu0 %1533
        %1535 = vrot.lane.b32.xlu0 %v1524, 64
        %v1536 = vpop.permute.xlu0 %1535
        %v1541 = vunpack.c.l.b16 %v391
        %v1542 = vunpack.c.l.b16 %v392
        %v1543 = vunpack.c.l.b16 %v393
        %v1544 = vunpack.c.l.b16 %v394
        %v1545 = vpack.c.b16 %v1542, %v1541
        %v1546 = vpack.c.b16 %v1544, %v1543
        %v1550 = vsel %vm686, %v1534, 0
        %v1553 = vsel %vm686, %v1536, 0
        %1555 = vmatprep.subr.bf16.mxu0 0
        %1556 = vmatpush1.bf16.msra.mxu0 0
        %1557 = vmatprep.subr.bf16.mxu0 0
        %1558 = vmatpush1.bf16.msra.mxu0 0
        %1559 = vmatprep.subr.bf16.mxu0 0
        %1560 = vmatpush1.bf16.msra.mxu0 0
        %1561 = vmatprep.subr.bf16.mxu0 0
        %1562 = vmatpush1.bf16.msra.mxu0 0
        %1563 = vmatprep.subr.bf16.mxu0 0
        %1564 = vmatpush1.bf16.msra.mxu0 0
        %1565 = vmatprep.subr.bf16.mxu0 0
        %1566 = vmatpush1.bf16.msra.mxu0 0
        %1567 = vmatprep.subr.bf16.mxu0 0
        %1568 = vmatpush1.bf16.msra.mxu0 %v1546
        %1569 = vmatprep.subr.bf16.mxu0 0
        %1570 = vmatpush1.bf16.msra.mxu0 %v1545
        %1571 = vmatprep.subr.bf16.mxu0 0
        %1572 = vmatpush2.bf16.msra.mxu0 0
        %1573 = vmatprep.subr.bf16.mxu0 0
        %1574 = vmatpush2.bf16.msra.mxu0 0
        %1575 = vmatprep.subr.bf16.mxu0 0
        %1576 = vmatpush2.bf16.msra.mxu0 0
        %1577 = vmatprep.subr.bf16.mxu0 0
        %1578 = vmatpush2.bf16.msra.mxu0 0
        %1579 = vmatprep.subr.bf16.mxu0 0
        %1580 = vmatpush2.bf16.msra.mxu0 0
        %1581 = vmatprep.subr.bf16.mxu0 0
        %1582 = vmatpush2.bf16.msra.mxu0 0
        %1583 = vmatprep.subr.bf16.mxu0 0
        %1584 = vmatpush2.bf16.msra.mxu0 0
        %1585 = vmatprep.subr.bf16.mxu0 0
        %1586 = vmatpush2.bf16.msra.mxu0 0
        %1587 = vmatprep.mubr.bf16.mxu0 0
        %1588 = vmatmul.mubr.bf16.gmra.mxu0 %v1550
        %v1589 = vpop.f32.mrf.mxu0
        %v1590 = vadd.f32 %v1529, %v1589
        %v1591 = vpop.f32.mrf.mxu0
        %v1592 = vpop.f32.mrf.mxu0
        %v1593 = vadd.f32 %v1529, %v1592
        %v1594 = vpop.f32.mrf.mxu0
        %1595 = vmatprep.mubr.bf16.mxu0 0
        %1596 = vmatmul.mubr.bf16.gmra.mxu0 %v1553
        %v1597 = vpop.f32.mrf.mxu0
        %v1598 = vadd.f32 %v1529, %v1597
        %v1599 = vpop.f32.mrf.mxu0
        %v1600 = vpop.f32.mrf.mxu0
        %v1601 = vpop.f32.mrf.mxu0
        %1602 = vdwg.mxu0
        %v1607 = vunpack.c.l.b16 %v395
        %v1608 = vunpack.c.l.b16 %v396
        %v1609 = vunpack.c.l.b16 %v397
        %v1610 = vunpack.c.l.b16 %v398
        %v1611 = vpack.c.b16 %v1608, %v1607
        %v1612 = vpack.c.b16 %v1610, %v1609
        %1615 = vmatprep.subr.bf16.mxu0 0
        %1616 = vmatpush1.bf16.msra.mxu0 0
        %1617 = vmatprep.subr.bf16.mxu0 0
        %1618 = vmatpush1.bf16.msra.mxu0 0
        %1619 = vmatprep.subr.bf16.mxu0 0
        %1620 = vmatpush1.bf16.msra.mxu0 0
        %1621 = vmatprep.subr.bf16.mxu0 0
        %1622 = vmatpush1.bf16.msra.mxu0 0
        %1623 = vmatprep.subr.bf16.mxu0 0
        %1624 = vmatpush1.bf16.msra.mxu0 0
        %1625 = vmatprep.subr.bf16.mxu0 0
        %1626 = vmatpush1.bf16.msra.mxu0 0
        %1627 = vmatprep.subr.bf16.mxu0 0
        %1628 = vmatpush1.bf16.msra.mxu0 %v1612
        %1629 = vmatprep.subr.bf16.mxu0 0
        %1630 = vmatpush1.bf16.msra.mxu0 %v1611
        %1631 = vmatprep.subr.bf16.mxu0 0
        %1632 = vmatpush2.bf16.msra.mxu0 0
        %1633 = vmatprep.subr.bf16.mxu0 0
        %1634 = vmatpush2.bf16.msra.mxu0 0
        %1635 = vmatprep.subr.bf16.mxu0 0
        %1636 = vmatpush2.bf16.msra.mxu0 0
        %1637 = vmatprep.subr.bf16.mxu0 0
        %1638 = vmatpush2.bf16.msra.mxu0 0
        %1639 = vmatprep.subr.bf16.mxu0 0
        %1640 = vmatpush2.bf16.msra.mxu0 0
        %1641 = vmatprep.subr.bf16.mxu0 0
        %1642 = vmatpush2.bf16.msra.mxu0 0
        %1643 = vmatprep.subr.bf16.mxu0 0
        %1644 = vmatpush2.bf16.msra.mxu0 0
        %1645 = vmatprep.subr.bf16.mxu0 0
        %1646 = vmatpush2.bf16.msra.mxu0 0
        %1647 = vmatprep.mubr.bf16.mxu0 0
        %1648 = vmatmul.mubr.bf16.gmra.mxu0 %v688
        %v1649 = vpop.f32.mrf.mxu0
        %v1650 = vadd.f32 0.0, %v1649
        %v1651 = vpop.f32.mrf.mxu0
        %v1652 = vpop.f32.mrf.mxu0
        %v1653 = vpop.f32.mrf.mxu0
        %1654 = vdwg.mxu0
        %v1655 = vadd.f32 %v1590, %v1650
        %v1656 = vxor.u32 %v1655, 2147483648
        %v1657 = vmul.f32 %v1656, 1.442695
        %v1658 = vpow.pop %v1657
        %v1659 = vadd.f32 %v1658, 1.0
        %v1660 = vrcp.pop %v1659
        %v1661 = vmul.f32 1.0, %v1660
        %v1662 = vtanh.pop %v1655
        %v1663 = vmul.f32 %v1661, 0.0
        %1665 = vrot.lane.b32.xlu0 %v1662, 32
        %v1666 = vpop.permute.xlu0 %1665
        %v1668 = vmul.f32 %v1661, %v1666
        %1670 = vrot.lane.b32.xlu0 %v1668, 32
        %v1671 = vpop.permute.xlu0 %1670
        %v1673 = vadd.f32 %v1663, %v1671
        %v1674 = vtanh.pop %v1673
        %1676 = vrot.lane.b32.xlu0 %v1674, 32
        %v1677 = vpop.permute.xlu0 %1676
        %v1679 = vmul.f32 %v1661, %v1677
        %v1680 = vpack.c.bf16 %v1679, %v1679
        %1682 = vrot.lane.b32.xlu0 %v1680, 64
        %v1683 = vpop.permute.xlu0 %1682
        %v1685 = vsel %vm686, %v1683, 0
        %1687 = vmatprep.subr.bf16.mxu0 0
        %1688 = vmatpush1.bf16.msra.mxu0 0
        %1689 = vmatprep.subr.bf16.mxu0 0
        %1690 = vmatpush1.bf16.msra.mxu0 0
        %1691 = vmatprep.subr.bf16.mxu0 0
        %1692 = vmatpush1.bf16.msra.mxu0 0
        %1693 = vmatprep.subr.bf16.mxu0 0
        %1694 = vmatpush1.bf16.msra.mxu0 0
        %1695 = vmatprep.subr.bf16.mxu0 0
        %1696 = vmatpush1.bf16.msra.mxu0 0
        %1697 = vmatprep.subr.bf16.mxu0 0
        %1698 = vmatpush1.bf16.msra.mxu0 0
        %1699 = vmatprep.subr.bf16.mxu0 0
        %1700 = vmatpush1.bf16.msra.mxu0 %v1612
        %1701 = vmatprep.subr.bf16.mxu0 0
        %1702 = vmatpush1.bf16.msra.mxu0 %v1611
        %1703 = vmatprep.subr.bf16.mxu0 0
        %1704 = vmatpush2.bf16.msra.mxu0 0
        %1705 = vmatprep.subr.bf16.mxu0 0
        %1706 = vmatpush2.bf16.msra.mxu0 0
        %1707 = vmatprep.subr.bf16.mxu0 0
        %1708 = vmatpush2.bf16.msra.mxu0 0
        %1709 = vmatprep.subr.bf16.mxu0 0
        %1710 = vmatpush2.bf16.msra.mxu0 0
        %1711 = vmatprep.subr.bf16.mxu0 0
        %1712 = vmatpush2.bf16.msra.mxu0 0
        %1713 = vmatprep.subr.bf16.mxu0 0
        %1714 = vmatpush2.bf16.msra.mxu0 0
        %1715 = vmatprep.subr.bf16.mxu0 0
        %1716 = vmatpush2.bf16.msra.mxu0 0
        %1717 = vmatprep.subr.bf16.mxu0 0
        %1718 = vmatpush2.bf16.msra.mxu0 0
        %1719 = vmatprep.mubr.bf16.mxu0 0
        %1720 = vmatmul.mubr.bf16.gmra.mxu0 %v1685
        %v1721 = vpop.f32.mrf.mxu0
        %v1722 = vadd.f32 0.0, %v1721
        %v1723 = vpop.f32.mrf.mxu0
        %v1724 = vpop.f32.mrf.mxu0
        %v1725 = vpop.f32.mrf.mxu0
        %1726 = vdwg.mxu0
        %v1727 = vadd.f32 %v1593, %v1722
        %v1728 = vxor.u32 %v1727, 2147483648
        %v1729 = vmul.f32 %v1728, 1.442695
        %v1730 = vpow.pop %v1729
        %v1731 = vadd.f32 %v1730, 1.0
        %v1732 = vrcp.pop %v1731
        %v1733 = vmul.f32 1.0, %v1732
        %v1734 = vtanh.pop %v1727
        %v1735 = vmul.f32 %v1733, %v1673
        %1737 = vrot.lane.b32.xlu0 %v1734, 32
        %v1738 = vpop.permute.xlu0 %1737
        %v1740 = vmul.f32 %v1733, %v1738
        %1742 = vrot.lane.b32.xlu0 %v1740, 32
        %v1743 = vpop.permute.xlu0 %1742
        %v1745 = vadd.f32 %v1735, %v1743
        %v1746 = vtanh.pop %v1745
        %1748 = vrot.lane.b32.xlu0 %v1746, 32
        %v1749 = vpop.permute.xlu0 %1748
        %v1751 = vmul.f32 %v1733, %v1749
        %v1752 = vpack.c.bf16 %v1751, %v1751
        %1754 = vrot.lane.b32.xlu0 %v1752, 64
        %v1755 = vpop.permute.xlu0 %1754
        %v1757 = vsel %vm686, %v1755, 0
        %1759 = vmatprep.subr.bf16.mxu0 0
        %1760 = vmatpush1.bf16.msra.mxu0 0
        %1761 = vmatprep.subr.bf16.mxu0 0
        %1762 = vmatpush1.bf16.msra.mxu0 0
        %1763 = vmatprep.subr.bf16.mxu0 0
        %1764 = vmatpush1.bf16.msra.mxu0 0
        %1765 = vmatprep.subr.bf16.mxu0 0
        %1766 = vmatpush1.bf16.msra.mxu0 0
        %1767 = vmatprep.subr.bf16.mxu0 0
        %1768 = vmatpush1.bf16.msra.mxu0 0
        %1769 = vmatprep.subr.bf16.mxu0 0
        %1770 = vmatpush1.bf16.msra.mxu0 0
        %1771 = vmatprep.subr.bf16.mxu0 0
        %1772 = vmatpush1.bf16.msra.mxu0 %v1612
        %1773 = vmatprep.subr.bf16.mxu0 0
        %1774 = vmatpush1.bf16.msra.mxu0 %v1611
        %1775 = vmatprep.subr.bf16.mxu0 0
        %1776 = vmatpush2.bf16.msra.mxu0 0
        %1777 = vmatprep.subr.bf16.mxu0 0
        %1778 = vmatpush2.bf16.msra.mxu0 0
        %1779 = vmatprep.subr.bf16.mxu0 0
        %1780 = vmatpush2.bf16.msra.mxu0 0
        %1781 = vmatprep.subr.bf16.mxu0 0
        %1782 = vmatpush2.bf16.msra.mxu0 0
        %1783 = vmatprep.subr.bf16.mxu0 0
        %1784 = vmatpush2.bf16.msra.mxu0 0
        %1785 = vmatprep.subr.bf16.mxu0 0
        %1786 = vmatpush2.bf16.msra.mxu0 0
        %1787 = vmatprep.subr.bf16.mxu0 0
        %1788 = vmatpush2.bf16.msra.mxu0 0
        %1789 = vmatprep.subr.bf16.mxu0 0
        %1790 = vmatpush2.bf16.msra.mxu0 0
        %1791 = vmatprep.mubr.bf16.mxu0 0
        %1792 = vmatmul.mubr.bf16.gmra.mxu0 %v1757
        %v1793 = vpop.f32.mrf.mxu0
        %v1794 = vadd.f32 0.0, %v1793
        %v1795 = vpop.f32.mrf.mxu0
        %v1796 = vpop.f32.mrf.mxu0
        %v1797 = vpop.f32.mrf.mxu0
        %1798 = vdwg.mxu0
        %v1799 = vadd.f32 %v1598, %v1794
        %v1800 = vxor.u32 %v1799, 2147483648
        %v1801 = vmul.f32 %v1800, 1.442695
        %v1802 = vpow.pop %v1801
        %v1803 = vadd.f32 %v1802, 1.0
        %v1804 = vrcp.pop %v1803
        %v1805 = vmul.f32 1.0, %v1804
        %v1806 = vtanh.pop %v1799
        %v1807 = vmul.f32 %v1805, %v1745
        %1809 = vrot.lane.b32.xlu0 %v1806, 32
        %v1810 = vpop.permute.xlu0 %1809
        %v1812 = vmul.f32 %v1805, %v1810
        %1814 = vrot.lane.b32.xlu0 %v1812, 32
        %v1815 = vpop.permute.xlu0 %1814
        %v1817 = vadd.f32 %v1807, %v1815
        %v1818 = vtanh.pop %v1817
        %1820 = vrot.lane.b32.xlu0 %v1818, 32
        %v1821 = vpop.permute.xlu0 %1820
        %v1823 = vmul.f32 %v1805, %v1821
        %1824 = vset.pattern.permute.xlu0 72
        %1825 = vperm.xlu0 %1824, %v352
        %v1826 = vpop.permute.xlu0 %1825
        %vm1827 = vcmp.eq.s32.totalorder %v1826, %v401
        %v1828 = vsel %vm1827, 1, 0
        %v1829 = vcvt.s32.f32 %v1828
        %v1830 = vadd.f32 %v1829, 0.0
        %1831 = vset.pattern.permute.xlu0 73
        %1832 = vperm.xlu0 %1831, %v352
        %v1833 = vpop.permute.xlu0 %1832
        %vm1834 = vcmp.eq.s32.totalorder %v1833, %v401
        %v1835 = vsel %vm1834, 1, 0
        %v1836 = vcvt.s32.f32 %v1835
        %v1837 = vadd.f32 %v1830, %v1836
        %1838 = vset.pattern.permute.xlu0 74
        %1839 = vperm.xlu0 %1838, %v352
        %v1840 = vpop.permute.xlu0 %1839
        %vm1841 = vcmp.eq.s32.totalorder %v1840, %v401
        %v1842 = vsel %vm1841, 1, 0
        %v1843 = vcvt.s32.f32 %v1842
        %v1844 = vadd.f32 %v1837, %v1843
        %1845 = vset.pattern.permute.xlu0 75
        %1846 = vperm.xlu0 %1845, %v352
        %v1847 = vpop.permute.xlu0 %1846
        %vm1848 = vcmp.eq.s32.totalorder %v1847, %v401
        %v1849 = vsel %vm1848, 1, 0
        %v1850 = vcvt.s32.f32 %v1849
        %v1851 = vadd.f32 %v1844, %v1850
        %1852 = vset.pattern.permute.xlu0 76
        %1853 = vperm.xlu0 %1852, %v352
        %v1854 = vpop.permute.xlu0 %1853
        %vm1855 = vcmp.eq.s32.totalorder %v1854, %v401
        %v1856 = vsel %vm1855, 1, 0
        %v1857 = vcvt.s32.f32 %v1856
        %v1858 = vadd.f32 %v1851, %v1857
        %1859 = vset.pattern.permute.xlu0 77
        %1860 = vperm.xlu0 %1859, %v352
        %v1861 = vpop.permute.xlu0 %1860
        %vm1862 = vcmp.eq.s32.totalorder %v1861, %v401
        %v1863 = vsel %vm1862, 1, 0
        %v1864 = vcvt.s32.f32 %v1863
        %v1865 = vadd.f32 %v1858, %v1864
        %1866 = vset.pattern.permute.xlu0 78
        %1867 = vperm.xlu0 %1866, %v352
        %v1868 = vpop.permute.xlu0 %1867
        %vm1869 = vcmp.eq.s32.totalorder %v1868, %v401
        %v1870 = vsel %vm1869, 1, 0
        %v1871 = vcvt.s32.f32 %v1870
        %v1872 = vadd.f32 %v1865, %v1871
        %1873 = vset.pattern.permute.xlu0 79
        %1874 = vperm.xlu0 %1873, %v352
        %v1875 = vpop.permute.xlu0 %1874
        %vm1876 = vcmp.eq.s32.totalorder %v1875, %v401
        %v1877 = vsel %vm1876, 1, 0
        %v1878 = vcvt.s32.f32 %v1877
        %v1879 = vadd.f32 %v1872, %v1878
        %1880 = vset.pattern.permute.xlu0 80
        %1881 = vperm.xlu0 %1880, %v352
        %v1882 = vpop.permute.xlu0 %1881
        %vm1883 = vcmp.eq.s32.totalorder %v1882, %v401
        %v1884 = vsel %vm1883, 1, 0
        %v1885 = vcvt.s32.f32 %v1884
        %v1886 = vadd.f32 %v1879, %v1885
        %1887 = vset.pattern.permute.xlu0 81
        %1888 = vperm.xlu0 %1887, %v352
        %v1889 = vpop.permute.xlu0 %1888
        %vm1890 = vcmp.eq.s32.totalorder %v1889, %v401
        %v1891 = vsel %vm1890, 1, 0
        %v1892 = vcvt.s32.f32 %v1891
        %v1893 = vadd.f32 %v1886, %v1892
        %1894 = vset.pattern.permute.xlu0 82
        %1895 = vperm.xlu0 %1894, %v352
        %v1896 = vpop.permute.xlu0 %1895
        %vm1897 = vcmp.eq.s32.totalorder %v1896, %v401
        %v1898 = vsel %vm1897, 1, 0
        %v1899 = vcvt.s32.f32 %v1898
        %v1900 = vadd.f32 %v1893, %v1899
        %1901 = vset.pattern.permute.xlu0 83
        %1902 = vperm.xlu0 %1901, %v352
        %v1903 = vpop.permute.xlu0 %1902
        %vm1904 = vcmp.eq.s32.totalorder %v1903, %v401
        %v1905 = vsel %vm1904, 1, 0
        %v1906 = vcvt.s32.f32 %v1905
        %v1907 = vadd.f32 %v1900, %v1906
        %1908 = vset.pattern.permute.xlu0 84
        %1909 = vperm.xlu0 %1908, %v352
        %v1910 = vpop.permute.xlu0 %1909
        %vm1911 = vcmp.eq.s32.totalorder %v1910, %v401
        %v1912 = vsel %vm1911, 1, 0
        %v1913 = vcvt.s32.f32 %v1912
        %v1914 = vadd.f32 %v1907, %v1913
        %1915 = vset.pattern.permute.xlu0 85
        %1916 = vperm.xlu0 %1915, %v352
        %v1917 = vpop.permute.xlu0 %1916
        %vm1918 = vcmp.eq.s32.totalorder %v1917, %v401
        %v1919 = vsel %vm1918, 1, 0
        %v1920 = vcvt.s32.f32 %v1919
        %v1921 = vadd.f32 %v1914, %v1920
        %1922 = vset.pattern.permute.xlu0 86
        %1923 = vperm.xlu0 %1922, %v352
        %v1924 = vpop.permute.xlu0 %1923
        %vm1925 = vcmp.eq.s32.totalorder %v1924, %v401
        %v1926 = vsel %vm1925, 1, 0
        %v1927 = vcvt.s32.f32 %v1926
        %v1928 = vadd.f32 %v1921, %v1927
        %1929 = vset.pattern.permute.xlu0 87
        %1930 = vperm.xlu0 %1929, %v352
        %v1931 = vpop.permute.xlu0 %1930
        %vm1932 = vcmp.eq.s32.totalorder %v1931, %v401
        %v1933 = vsel %vm1932, 1, 0
        %v1934 = vcvt.s32.f32 %v1933
        %v1935 = vadd.f32 %v1928, %v1934
        %1936 = vset.pattern.permute.xlu0 88
        %1937 = vperm.xlu0 %1936, %v352
        %v1938 = vpop.permute.xlu0 %1937
        %vm1939 = vcmp.eq.s32.totalorder %v1938, %v401
        %v1940 = vsel %vm1939, 1, 0
        %v1941 = vcvt.s32.f32 %v1940
        %v1942 = vadd.f32 %v1935, %v1941
        %1943 = vset.pattern.permute.xlu0 89
        %1944 = vperm.xlu0 %1943, %v352
        %v1945 = vpop.permute.xlu0 %1944
        %vm1946 = vcmp.eq.s32.totalorder %v1945, %v401
        %v1947 = vsel %vm1946, 1, 0
        %v1948 = vcvt.s32.f32 %v1947
        %v1949 = vadd.f32 %v1942, %v1948
        %1950 = vset.pattern.permute.xlu0 90
        %1951 = vperm.xlu0 %1950, %v352
        %v1952 = vpop.permute.xlu0 %1951
        %vm1953 = vcmp.eq.s32.totalorder %v1952, %v401
        %v1954 = vsel %vm1953, 1, 0
        %v1955 = vcvt.s32.f32 %v1954
        %v1956 = vadd.f32 %v1949, %v1955
        %1957 = vset.pattern.permute.xlu0 91
        %1958 = vperm.xlu0 %1957, %v352
        %v1959 = vpop.permute.xlu0 %1958
        %vm1960 = vcmp.eq.s32.totalorder %v1959, %v401
        %v1961 = vsel %vm1960, 1, 0
        %v1962 = vcvt.s32.f32 %v1961
        %v1963 = vadd.f32 %v1956, %v1962
        %1964 = vset.pattern.permute.xlu0 92
        %1965 = vperm.xlu0 %1964, %v352
        %v1966 = vpop.permute.xlu0 %1965
        %vm1967 = vcmp.eq.s32.totalorder %v1966, %v401
        %v1968 = vsel %vm1967, 1, 0
        %v1969 = vcvt.s32.f32 %v1968
        %v1970 = vadd.f32 %v1963, %v1969
        %1971 = vset.pattern.permute.xlu0 93
        %1972 = vperm.xlu0 %1971, %v352
        %v1973 = vpop.permute.xlu0 %1972
        %vm1974 = vcmp.eq.s32.totalorder %v1973, %v401
        %v1975 = vsel %vm1974, 1, 0
        %v1976 = vcvt.s32.f32 %v1975
        %v1977 = vadd.f32 %v1970, %v1976
        %1978 = vset.pattern.permute.xlu0 94
        %1979 = vperm.xlu0 %1978, %v352
        %v1980 = vpop.permute.xlu0 %1979
        %vm1981 = vcmp.eq.s32.totalorder %v1980, %v401
        %v1982 = vsel %vm1981, 1, 0
        %v1983 = vcvt.s32.f32 %v1982
        %v1984 = vadd.f32 %v1977, %v1983
        %1985 = vset.pattern.permute.xlu0 95
        %1986 = vperm.xlu0 %1985, %v352
        %v1987 = vpop.permute.xlu0 %1986
        %vm1988 = vcmp.eq.s32.totalorder %v1987, %v401
        %v1989 = vsel %vm1988, 1, 0
        %v1990 = vcvt.s32.f32 %v1989
        %v1991 = vadd.f32 %v1984, %v1990
        %1992 = vset.pattern.permute.xlu0 96
        %1993 = vperm.xlu0 %1992, %v352
        %v1994 = vpop.permute.xlu0 %1993
        %vm1995 = vcmp.eq.s32.totalorder %v1994, %v401
        %v1996 = vsel %vm1995, 1, 0
        %v1997 = vcvt.s32.f32 %v1996
        %v1998 = vadd.f32 %v1991, %v1997
        %1999 = vset.pattern.permute.xlu0 97
        %2000 = vperm.xlu0 %1999, %v352
        %v2001 = vpop.permute.xlu0 %2000
        %vm2002 = vcmp.eq.s32.totalorder %v2001, %v401
        %v2003 = vsel %vm2002, 1, 0
        %v2004 = vcvt.s32.f32 %v2003
        %v2005 = vadd.f32 %v1998, %v2004
        %2006 = vset.pattern.permute.xlu0 98
        %2007 = vperm.xlu0 %2006, %v352
        %v2008 = vpop.permute.xlu0 %2007
        %vm2009 = vcmp.eq.s32.totalorder %v2008, %v401
        %v2010 = vsel %vm2009, 1, 0
        %v2011 = vcvt.s32.f32 %v2010
        %v2012 = vadd.f32 %v2005, %v2011
        %2013 = vset.pattern.permute.xlu0 99
        %2014 = vperm.xlu0 %2013, %v352
        %v2015 = vpop.permute.xlu0 %2014
        %vm2016 = vcmp.eq.s32.totalorder %v2015, %v401
        %v2017 = vsel %vm2016, 1, 0
        %v2018 = vcvt.s32.f32 %v2017
        %v2019 = vadd.f32 %v2012, %v2018
        %2020 = vset.pattern.permute.xlu0 100
        %2021 = vperm.xlu0 %2020, %v352
        %v2022 = vpop.permute.xlu0 %2021
        %vm2023 = vcmp.eq.s32.totalorder %v2022, %v401
        %v2024 = vsel %vm2023, 1, 0
        %v2025 = vcvt.s32.f32 %v2024
        %v2026 = vadd.f32 %v2019, %v2025
        %2027 = vset.pattern.permute.xlu0 101
        %2028 = vperm.xlu0 %2027, %v352
        %v2029 = vpop.permute.xlu0 %2028
        %vm2030 = vcmp.eq.s32.totalorder %v2029, %v401
        %v2031 = vsel %vm2030, 1, 0
        %v2032 = vcvt.s32.f32 %v2031
        %v2033 = vadd.f32 %v2026, %v2032
        %v2034 = vpack.c.bf16 %v2033, %v2033
        %v2051 = vunpack.c.l.b16 %v354
        %v2052 = vunpack.c.l.b16 %v355
        %v2053 = vunpack.c.l.b16 %v356
        %v2054 = vunpack.c.l.b16 %v357
        %v2055 = vunpack.c.l.b16 %v358
        %v2056 = vunpack.c.l.b16 %v359
        %v2057 = vunpack.c.l.b16 %v360
        %v2058 = vunpack.c.l.b16 %v361
        %v2059 = vunpack.c.l.b16 %v362
        %v2060 = vunpack.c.l.b16 %v363
        %v2061 = vunpack.c.l.b16 %v364
        %v2062 = vunpack.c.l.b16 %v365
        %v2063 = vunpack.c.l.b16 %v366
        %v2064 = vunpack.c.l.b16 %v367
        %v2065 = vunpack.c.l.b16 %v368
        %v2066 = vunpack.c.l.b16 %v369
        %v2067 = vpack.c.b16 %v2052, %v2051
        %v2068 = vpack.c.b16 %v2054, %v2053
        %v2069 = vpack.c.b16 %v2056, %v2055
        %v2070 = vpack.c.b16 %v2058, %v2057
        %v2071 = vpack.c.b16 %v2060, %v2059
        %v2072 = vpack.c.b16 %v2062, %v2061
        %v2073 = vpack.c.b16 %v2064, %v2063
        %v2074 = vpack.c.b16 %v2066, %v2065
        %2083 = vmatprep.subr.bf16.mxu0 0
        %2084 = vmatpush1.bf16.msra.mxu0 %v2074
        %2085 = vmatprep.subr.bf16.mxu0 0
        %2086 = vmatpush1.bf16.msra.mxu0 %v2073
        %2087 = vmatprep.subr.bf16.mxu0 0
        %2088 = vmatpush1.bf16.msra.mxu0 %v2072
        %2089 = vmatprep.subr.bf16.mxu0 0
        %2090 = vmatpush1.bf16.msra.mxu0 %v2071
        %2091 = vmatprep.subr.bf16.mxu0 0
        %2092 = vmatpush1.bf16.msra.mxu0 %v2070
        %2093 = vmatprep.subr.bf16.mxu0 0
        %2094 = vmatpush1.bf16.msra.mxu0 %v2069
        %2095 = vmatprep.subr.bf16.mxu0 0
        %2096 = vmatpush1.bf16.msra.mxu0 %v2068
        %2097 = vmatprep.subr.bf16.mxu0 0
        %2098 = vmatpush1.bf16.msra.mxu0 %v2067
        %2099 = vmatprep.subr.bf16.mxu0 0
        %2100 = vmatpush2.bf16.msra.mxu0 0
        %2101 = vmatprep.subr.bf16.mxu0 0
        %2102 = vmatpush2.bf16.msra.mxu0 0
        %2103 = vmatprep.subr.bf16.mxu0 0
        %2104 = vmatpush2.bf16.msra.mxu0 0
        %2105 = vmatprep.subr.bf16.mxu0 0
        %2106 = vmatpush2.bf16.msra.mxu0 0
        %2107 = vmatprep.subr.bf16.mxu0 0
        %2108 = vmatpush2.bf16.msra.mxu0 0
        %2109 = vmatprep.subr.bf16.mxu0 0
        %2110 = vmatpush2.bf16.msra.mxu0 0
        %2111 = vmatprep.subr.bf16.mxu0 0
        %2112 = vmatpush2.bf16.msra.mxu0 0
        %2113 = vmatprep.subr.bf16.mxu0 0
        %2114 = vmatpush2.bf16.msra.mxu0 0
        %2115 = vmatprep.mubr.bf16.mxu0 0
        %2116 = vmatmul.mubr.bf16.gmra.mxu0 %v2034
        %v2117 = vpop.f32.mrf.mxu0
        %v2118 = vadd.f32 0.0, %v2117
        %v2119 = vpop.f32.mrf.mxu0
        %v2120 = vpop.f32.mrf.mxu0
        %v2121 = vpop.f32.mrf.mxu0
        %2122 = vdwg.mxu0
        %2124 = vrot.lane.b32.xlu0 %v2118, 64
        %v2125 = vpop.permute.xlu0 %2124
        %v2127 = vmul.f32 %v1823, %v2125
        %2129 = vrot.lane.b32.xlu0 %v2127, 64
        %v2130 = vpop.permute.xlu0 %2129
        %v2132 = vsel %vm686, %v2130, 0.0
        %2133 = vadd.xlane.f32.xlu0 %v2132
        %v2134 = vpop.xlane.xlu0 %2133
        %2135 = vset.pattern.permute.xlu0 102
        %2136 = vperm.xlu0 %2135, %v352
        %v2137 = vpop.permute.xlu0 %2136
        %vm2138 = vcmp.eq.s32.totalorder %v2137, %v401
        %v2139 = vsel %vm2138, 1, 0
        %v2140 = vcvt.s32.f32 %v2139
        %v2141 = vadd.f32 %v2140, 0.0
        %2142 = vset.pattern.permute.xlu0 103
        %2143 = vperm.xlu0 %2142, %v352
        %v2144 = vpop.permute.xlu0 %2143
        %vm2145 = vcmp.eq.s32.totalorder %v2144, %v401
        %v2146 = vsel %vm2145, 1, 0
        %v2147 = vcvt.s32.f32 %v2146
        %v2148 = vadd.f32 %v2141, %v2147
        %2149 = vset.pattern.permute.xlu0 104
        %2150 = vperm.xlu0 %2149, %v352
        %v2151 = vpop.permute.xlu0 %2150
        %vm2152 = vcmp.eq.s32.totalorder %v2151, %v401
        %v2153 = vsel %vm2152, 1, 0
        %v2154 = vcvt.s32.f32 %v2153
        %v2155 = vadd.f32 %v2148, %v2154
        %2156 = vset.pattern.permute.xlu0 105
        %2157 = vperm.xlu0 %2156, %v352
        %v2158 = vpop.permute.xlu0 %2157
        %vm2159 = vcmp.eq.s32.totalorder %v2158, %v401
        %v2160 = vsel %vm2159, 1, 0
        %v2161 = vcvt.s32.f32 %v2160
        %v2162 = vadd.f32 %v2155, %v2161
        %2163 = vset.pattern.permute.xlu0 106
        %2164 = vperm.xlu0 %2163, %v352
        %v2165 = vpop.permute.xlu0 %2164
        %vm2166 = vcmp.eq.s32.totalorder %v2165, %v401
        %v2167 = vsel %vm2166, 1, 0
        %v2168 = vcvt.s32.f32 %v2167
        %v2169 = vadd.f32 %v2162, %v2168
        %2170 = vset.pattern.permute.xlu0 107
        %2171 = vperm.xlu0 %2170, %v352
        %v2172 = vpop.permute.xlu0 %2171
        %vm2173 = vcmp.eq.s32.totalorder %v2172, %v401
        %v2174 = vsel %vm2173, 1, 0
        %v2175 = vcvt.s32.f32 %v2174
        %v2176 = vadd.f32 %v2169, %v2175
        %2177 = vset.pattern.permute.xlu0 108
        %2178 = vperm.xlu0 %2177, %v352
        %v2179 = vpop.permute.xlu0 %2178
        %vm2180 = vcmp.eq.s32.totalorder %v2179, %v401
        %v2181 = vsel %vm2180, 1, 0
        %v2182 = vcvt.s32.f32 %v2181
        %v2183 = vadd.f32 %v2176, %v2182
        %2184 = vset.pattern.permute.xlu0 109
        %2185 = vperm.xlu0 %2184, %v352
        %v2186 = vpop.permute.xlu0 %2185
        %vm2187 = vcmp.eq.s32.totalorder %v2186, %v401
        %v2188 = vsel %vm2187, 1, 0
        %v2189 = vcvt.s32.f32 %v2188
        %v2190 = vadd.f32 %v2183, %v2189
        %2191 = vset.pattern.permute.xlu0 110
        %2192 = vperm.xlu0 %2191, %v352
        %v2193 = vpop.permute.xlu0 %2192
        %vm2194 = vcmp.eq.s32.totalorder %v2193, %v401
        %v2195 = vsel %vm2194, 1, 0
        %v2196 = vcvt.s32.f32 %v2195
        %v2197 = vadd.f32 %v2190, %v2196
        %2198 = vset.pattern.permute.xlu0 111
        %2199 = vperm.xlu0 %2198, %v352
        %v2200 = vpop.permute.xlu0 %2199
        %vm2201 = vcmp.eq.s32.totalorder %v2200, %v401
        %v2202 = vsel %vm2201, 1, 0
        %v2203 = vcvt.s32.f32 %v2202
        %v2204 = vadd.f32 %v2197, %v2203
        %2205 = vset.pattern.permute.xlu0 112
        %2206 = vperm.xlu0 %2205, %v352
        %v2207 = vpop.permute.xlu0 %2206
        %vm2208 = vcmp.eq.s32.totalorder %v2207, %v401
        %v2209 = vsel %vm2208, 1, 0
        %v2210 = vcvt.s32.f32 %v2209
        %v2211 = vadd.f32 %v2204, %v2210
        %2212 = vset.pattern.permute.xlu0 113
        %2213 = vperm.xlu0 %2212, %v352
        %v2214 = vpop.permute.xlu0 %2213
        %vm2215 = vcmp.eq.s32.totalorder %v2214, %v401
        %v2216 = vsel %vm2215, 1, 0
        %v2217 = vcvt.s32.f32 %v2216
        %v2218 = vadd.f32 %v2211, %v2217
        %2219 = vset.pattern.permute.xlu0 114
        %2220 = vperm.xlu0 %2219, %v352
        %v2221 = vpop.permute.xlu0 %2220
        %vm2222 = vcmp.eq.s32.totalorder %v2221, %v401
        %v2223 = vsel %vm2222, 1, 0
        %v2224 = vcvt.s32.f32 %v2223
        %v2225 = vadd.f32 %v2218, %v2224
        %2226 = vset.pattern.permute.xlu0 115
        %2227 = vperm.xlu0 %2226, %v352
        %v2228 = vpop.permute.xlu0 %2227
        %vm2229 = vcmp.eq.s32.totalorder %v2228, %v401
        %v2230 = vsel %vm2229, 1, 0
        %v2231 = vcvt.s32.f32 %v2230
        %v2232 = vadd.f32 %v2225, %v2231
        %2233 = vset.pattern.permute.xlu0 116
        %2234 = vperm.xlu0 %2233, %v352
        %v2235 = vpop.permute.xlu0 %2234
        %vm2236 = vcmp.eq.s32.totalorder %v2235, %v401
        %v2237 = vsel %vm2236, 1, 0
        %v2238 = vcvt.s32.f32 %v2237
        %v2239 = vadd.f32 %v2232, %v2238
        %2240 = vset.pattern.permute.xlu0 117
        %2241 = vperm.xlu0 %2240, %v352
        %v2242 = vpop.permute.xlu0 %2241
        %vm2243 = vcmp.eq.s32.totalorder %v2242, %v401
        %v2244 = vsel %vm2243, 1, 0
        %v2245 = vcvt.s32.f32 %v2244
        %v2246 = vadd.f32 %v2239, %v2245
        %2247 = vset.pattern.permute.xlu0 118
        %2248 = vperm.xlu0 %2247, %v352
        %v2249 = vpop.permute.xlu0 %2248
        %vm2250 = vcmp.eq.s32.totalorder %v2249, %v401
        %v2251 = vsel %vm2250, 1, 0
        %v2252 = vcvt.s32.f32 %v2251
        %v2253 = vadd.f32 %v2246, %v2252
        %2254 = vset.pattern.permute.xlu0 119
        %2255 = vperm.xlu0 %2254, %v352
        %v2256 = vpop.permute.xlu0 %2255
        %vm2257 = vcmp.eq.s32.totalorder %v2256, %v401
        %v2258 = vsel %vm2257, 1, 0
        %v2259 = vcvt.s32.f32 %v2258
        %v2260 = vadd.f32 %v2253, %v2259
        %2261 = vset.pattern.permute.xlu0 120
        %2262 = vperm.xlu0 %2261, %v352
        %v2263 = vpop.permute.xlu0 %2262
        %vm2264 = vcmp.eq.s32.totalorder %v2263, %v401
        %v2265 = vsel %vm2264, 1, 0
        %v2266 = vcvt.s32.f32 %v2265
        %v2267 = vadd.f32 %v2260, %v2266
        %2268 = vset.pattern.permute.xlu0 121
        %2269 = vperm.xlu0 %2268, %v352
        %v2270 = vpop.permute.xlu0 %2269
        %vm2271 = vcmp.eq.s32.totalorder %v2270, %v401
        %v2272 = vsel %vm2271, 1, 0
        %v2273 = vcvt.s32.f32 %v2272
        %v2274 = vadd.f32 %v2267, %v2273
        %2275 = vset.pattern.permute.xlu0 122
        %2276 = vperm.xlu0 %2275, %v352
        %v2277 = vpop.permute.xlu0 %2276
        %vm2278 = vcmp.eq.s32.totalorder %v2277, %v401
        %v2279 = vsel %vm2278, 1, 0
        %v2280 = vcvt.s32.f32 %v2279
        %v2281 = vadd.f32 %v2274, %v2280
        %2282 = vset.pattern.permute.xlu0 123
        %2283 = vperm.xlu0 %2282, %v352
        %v2284 = vpop.permute.xlu0 %2283
        %vm2285 = vcmp.eq.s32.totalorder %v2284, %v401
        %v2286 = vsel %vm2285, 1, 0
        %v2287 = vcvt.s32.f32 %v2286
        %v2288 = vadd.f32 %v2281, %v2287
        %2289 = vset.pattern.permute.xlu0 124
        %2290 = vperm.xlu0 %2289, %v352
        %v2291 = vpop.permute.xlu0 %2290
        %vm2292 = vcmp.eq.s32.totalorder %v2291, %v401
        %v2293 = vsel %vm2292, 1, 0
        %v2294 = vcvt.s32.f32 %v2293
        %v2295 = vadd.f32 %v2288, %v2294
        %2296 = vset.pattern.permute.xlu0 125
        %2297 = vperm.xlu0 %2296, %v352
        %v2298 = vpop.permute.xlu0 %2297
        %vm2299 = vcmp.eq.s32.totalorder %v2298, %v401
        %v2300 = vsel %vm2299, 1, 0
        %v2301 = vcvt.s32.f32 %v2300
        %v2302 = vadd.f32 %v2295, %v2301
        %2303 = vset.pattern.permute.xlu0 126
        %2304 = vperm.xlu0 %2303, %v352
        %v2305 = vpop.permute.xlu0 %2304
        %vm2306 = vcmp.eq.s32.totalorder %v2305, %v401
        %v2307 = vsel %vm2306, 1, 0
        %v2308 = vcvt.s32.f32 %v2307
        %v2309 = vadd.f32 %v2302, %v2308
        %2310 = vset.pattern.permute.xlu0 127
        %2311 = vperm.xlu0 %2310, %v352
        %v2312 = vpop.permute.xlu0 %2311
        %vm2313 = vcmp.eq.s32.totalorder %v2312, %v401
        %v2314 = vsel %vm2313, 1, 0
        %v2315 = vcvt.s32.f32 %v2314
        %v2316 = vadd.f32 %v2309, %v2315
        %2317 = vset.pattern.permute.xlu0 0
        %2318 = vperm.xlu0 %2317, %v353
        %v2319 = vpop.permute.xlu0 %2318
        %vm2320 = vcmp.eq.s32.totalorder %v2319, %v401
        %v2321 = vsel %vm2320, 1, 0
        %v2322 = vcvt.s32.f32 %v2321
        %v2323 = vadd.f32 %v2316, %v2322
        %2324 = vset.pattern.permute.xlu0 1
        %2325 = vperm.xlu0 %2324, %v353
        %v2326 = vpop.permute.xlu0 %2325
        %vm2327 = vcmp.eq.s32.totalorder %v2326, %v401
        %v2328 = vsel %vm2327, 1, 0
        %v2329 = vcvt.s32.f32 %v2328
        %v2330 = vadd.f32 %v2323, %v2329
        %2331 = vset.pattern.permute.xlu0 2
        %2332 = vperm.xlu0 %2331, %v353
        %v2333 = vpop.permute.xlu0 %2332
        %vm2334 = vcmp.eq.s32.totalorder %v2333, %v401
        %v2335 = vsel %vm2334, 1, 0
        %v2336 = vcvt.s32.f32 %v2335
        %v2337 = vadd.f32 %v2330, %v2336
        %2338 = vset.pattern.permute.xlu0 3
        %2339 = vperm.xlu0 %2338, %v353
        %v2340 = vpop.permute.xlu0 %2339
        %vm2341 = vcmp.eq.s32.totalorder %v2340, %v401
        %v2342 = vsel %vm2341, 1, 0
        %v2343 = vcvt.s32.f32 %v2342
        %v2344 = vadd.f32 %v2337, %v2343
        %v2345 = vpack.c.bf16 %v2344, %v2344
        %2346 = vmatprep.subr.bf16.mxu0 0
        %2347 = vmatpush1.bf16.msra.mxu0 %v2074
        %2348 = vmatprep.subr.bf16.mxu0 0
        %2349 = vmatpush1.bf16.msra.mxu0 %v2073
        %2350 = vmatprep.subr.bf16.mxu0 0
        %2351 = vmatpush1.bf16.msra.mxu0 %v2072
        %2352 = vmatprep.subr.bf16.mxu0 0
        %2353 = vmatpush1.bf16.msra.mxu0 %v2071
        %2354 = vmatprep.subr.bf16.mxu0 0
        %2355 = vmatpush1.bf16.msra.mxu0 %v2070
        %2356 = vmatprep.subr.bf16.mxu0 0
        %2357 = vmatpush1.bf16.msra.mxu0 %v2069
        %2358 = vmatprep.subr.bf16.mxu0 0
        %2359 = vmatpush1.bf16.msra.mxu0 %v2068
        %2360 = vmatprep.subr.bf16.mxu0 0
        %2361 = vmatpush1.bf16.msra.mxu0 %v2067
        %2362 = vmatprep.subr.bf16.mxu0 0
        %2363 = vmatpush2.bf16.msra.mxu0 0
        %2364 = vmatprep.subr.bf16.mxu0 0
        %2365 = vmatpush2.bf16.msra.mxu0 0
        %2366 = vmatprep.subr.bf16.mxu0 0
        %2367 = vmatpush2.bf16.msra.mxu0 0
        %2368 = vmatprep.subr.bf16.mxu0 0
        %2369 = vmatpush2.bf16.msra.mxu0 0
        %2370 = vmatprep.subr.bf16.mxu0 0
        %2371 = vmatpush2.bf16.msra.mxu0 0
        %2372 = vmatprep.subr.bf16.mxu0 0
        %2373 = vmatpush2.bf16.msra.mxu0 0
        %2374 = vmatprep.subr.bf16.mxu0 0
        %2375 = vmatpush2.bf16.msra.mxu0 0
        %2376 = vmatprep.subr.bf16.mxu0 0
        %2377 = vmatpush2.bf16.msra.mxu0 0
        %2378 = vmatprep.mubr.bf16.mxu0 0
        %2379 = vmatmul.mubr.bf16.gmra.mxu0 %v2345
        %v2380 = vpop.f32.mrf.mxu0
        %v2381 = vadd.f32 0.0, %v2380
        %v2382 = vpop.f32.mrf.mxu0
        %v2383 = vpop.f32.mrf.mxu0
        %v2384 = vpop.f32.mrf.mxu0
        %2385 = vdwg.mxu0
        %2387 = vrot.lane.b32.xlu0 %v2381, 64
        %v2388 = vpop.permute.xlu0 %2387
        %v2390 = vmul.f32 %v1823, %v2388
        %2392 = vrot.lane.b32.xlu0 %v2390, 64
        %v2393 = vpop.permute.xlu0 %2392
        %v2395 = vsel %vm686, %v2393, 0.0
        %2396 = vadd.xlane.f32.xlu0 %v2395
        %v2397 = vpop.xlane.xlu0 %2396
        %2398 = vset.pattern.permute.xlu0 4
        %2399 = vperm.xlu0 %2398, %v353
        %v2400 = vpop.permute.xlu0 %2399
        %vm2401 = vcmp.eq.s32.totalorder %v2400, %v401
        %v2402 = vsel %vm2401, 1, 0
        %v2403 = vcvt.s32.f32 %v2402
        %v2404 = vadd.f32 %v2403, 0.0
        %2405 = vset.pattern.permute.xlu0 5
        %2406 = vperm.xlu0 %2405, %v353
        %v2407 = vpop.permute.xlu0 %2406
        %vm2408 = vcmp.eq.s32.totalorder %v2407, %v401
        %v2409 = vsel %vm2408, 1, 0
        %v2410 = vcvt.s32.f32 %v2409
        %v2411 = vadd.f32 %v2404, %v2410
        %2412 = vset.pattern.permute.xlu0 6
        %2413 = vperm.xlu0 %2412, %v353
        %v2414 = vpop.permute.xlu0 %2413
        %vm2415 = vcmp.eq.s32.totalorder %v2414, %v401
        %v2416 = vsel %vm2415, 1, 0
        %v2417 = vcvt.s32.f32 %v2416
        %v2418 = vadd.f32 %v2411, %v2417
        %2419 = vset.pattern.permute.xlu0 7
        %2420 = vperm.xlu0 %2419, %v353
        %v2421 = vpop.permute.xlu0 %2420
        %vm2422 = vcmp.eq.s32.totalorder %v2421, %v401
        %v2423 = vsel %vm2422, 1, 0
        %v2424 = vcvt.s32.f32 %v2423
        %v2425 = vadd.f32 %v2418, %v2424
        %2426 = vset.pattern.permute.xlu0 8
        %2427 = vperm.xlu0 %2426, %v353
        %v2428 = vpop.permute.xlu0 %2427
        %vm2429 = vcmp.eq.s32.totalorder %v2428, %v401
        %v2430 = vsel %vm2429, 1, 0
        %v2431 = vcvt.s32.f32 %v2430
        %v2432 = vadd.f32 %v2425, %v2431
        %2433 = vset.pattern.permute.xlu0 9
        %2434 = vperm.xlu0 %2433, %v353
        %v2435 = vpop.permute.xlu0 %2434
        %vm2436 = vcmp.eq.s32.totalorder %v2435, %v401
        %v2437 = vsel %vm2436, 1, 0
        %v2438 = vcvt.s32.f32 %v2437
        %v2439 = vadd.f32 %v2432, %v2438
        %2440 = vset.pattern.permute.xlu0 10
        %2441 = vperm.xlu0 %2440, %v353
        %v2442 = vpop.permute.xlu0 %2441
        %vm2443 = vcmp.eq.s32.totalorder %v2442, %v401
        %v2444 = vsel %vm2443, 1, 0
        %v2445 = vcvt.s32.f32 %v2444
        %v2446 = vadd.f32 %v2439, %v2445
        %2447 = vset.pattern.permute.xlu0 11
        %2448 = vperm.xlu0 %2447, %v353
        %v2449 = vpop.permute.xlu0 %2448
        %vm2450 = vcmp.eq.s32.totalorder %v2449, %v401
        %v2451 = vsel %vm2450, 1, 0
        %v2452 = vcvt.s32.f32 %v2451
        %v2453 = vadd.f32 %v2446, %v2452
        %2454 = vset.pattern.permute.xlu0 12
        %2455 = vperm.xlu0 %2454, %v353
        %v2456 = vpop.permute.xlu0 %2455
        %vm2457 = vcmp.eq.s32.totalorder %v2456, %v401
        %v2458 = vsel %vm2457, 1, 0
        %v2459 = vcvt.s32.f32 %v2458
        %v2460 = vadd.f32 %v2453, %v2459
        %2461 = vset.pattern.permute.xlu0 13
        %2462 = vperm.xlu0 %2461, %v353
        %v2463 = vpop.permute.xlu0 %2462
        %vm2464 = vcmp.eq.s32.totalorder %v2463, %v401
        %v2465 = vsel %vm2464, 1, 0
        %v2466 = vcvt.s32.f32 %v2465
        %v2467 = vadd.f32 %v2460, %v2466
        %2468 = vset.pattern.permute.xlu0 14
        %2469 = vperm.xlu0 %2468, %v353
        %v2470 = vpop.permute.xlu0 %2469
        %vm2471 = vcmp.eq.s32.totalorder %v2470, %v401
        %v2472 = vsel %vm2471, 1, 0
        %v2473 = vcvt.s32.f32 %v2472
        %v2474 = vadd.f32 %v2467, %v2473
        %2475 = vset.pattern.permute.xlu0 15
        %2476 = vperm.xlu0 %2475, %v353
        %v2477 = vpop.permute.xlu0 %2476
        %vm2478 = vcmp.eq.s32.totalorder %v2477, %v401
        %v2479 = vsel %vm2478, 1, 0
        %v2480 = vcvt.s32.f32 %v2479
        %v2481 = vadd.f32 %v2474, %v2480
        %2482 = vset.pattern.permute.xlu0 16
        %2483 = vperm.xlu0 %2482, %v353
        %v2484 = vpop.permute.xlu0 %2483
        %vm2485 = vcmp.eq.s32.totalorder %v2484, %v401
        %v2486 = vsel %vm2485, 1, 0
        %v2487 = vcvt.s32.f32 %v2486
        %v2488 = vadd.f32 %v2481, %v2487
        %2489 = vset.pattern.permute.xlu0 17
        %2490 = vperm.xlu0 %2489, %v353
        %v2491 = vpop.permute.xlu0 %2490
        %vm2492 = vcmp.eq.s32.totalorder %v2491, %v401
        %v2493 = vsel %vm2492, 1, 0
        %v2494 = vcvt.s32.f32 %v2493
        %v2495 = vadd.f32 %v2488, %v2494
        %2496 = vset.pattern.permute.xlu0 18
        %2497 = vperm.xlu0 %2496, %v353
        %v2498 = vpop.permute.xlu0 %2497
        %vm2499 = vcmp.eq.s32.totalorder %v2498, %v401
        %v2500 = vsel %vm2499, 1, 0
        %v2501 = vcvt.s32.f32 %v2500
        %v2502 = vadd.f32 %v2495, %v2501
        %2503 = vset.pattern.permute.xlu0 19
        %2504 = vperm.xlu0 %2503, %v353
        %v2505 = vpop.permute.xlu0 %2504
        %vm2506 = vcmp.eq.s32.totalorder %v2505, %v401
        %v2507 = vsel %vm2506, 1, 0
        %v2508 = vcvt.s32.f32 %v2507
        %v2509 = vadd.f32 %v2502, %v2508
        %2510 = vset.pattern.permute.xlu0 20
        %2511 = vperm.xlu0 %2510, %v353
        %v2512 = vpop.permute.xlu0 %2511
        %vm2513 = vcmp.eq.s32.totalorder %v2512, %v401
        %v2514 = vsel %vm2513, 1, 0
        %v2515 = vcvt.s32.f32 %v2514
        %v2516 = vadd.f32 %v2509, %v2515
        %2517 = vset.pattern.permute.xlu0 21
        %2518 = vperm.xlu0 %2517, %v353
        %v2519 = vpop.permute.xlu0 %2518
        %vm2520 = vcmp.eq.s32.totalorder %v2519, %v401
        %v2521 = vsel %vm2520, 1, 0
        %v2522 = vcvt.s32.f32 %v2521
        %v2523 = vadd.f32 %v2516, %v2522
        %2524 = vset.pattern.permute.xlu0 22
        %2525 = vperm.xlu0 %2524, %v353
        %v2526 = vpop.permute.xlu0 %2525
        %vm2527 = vcmp.eq.s32.totalorder %v2526, %v401
        %v2528 = vsel %vm2527, 1, 0
        %v2529 = vcvt.s32.f32 %v2528
        %v2530 = vadd.f32 %v2523, %v2529
        %2531 = vset.pattern.permute.xlu0 23
        %2532 = vperm.xlu0 %2531, %v353
        %v2533 = vpop.permute.xlu0 %2532
        %vm2534 = vcmp.eq.s32.totalorder %v2533, %v401
        %v2535 = vsel %vm2534, 1, 0
        %v2536 = vcvt.s32.f32 %v2535
        %v2537 = vadd.f32 %v2530, %v2536
        %2538 = vset.pattern.permute.xlu0 24
        %2539 = vperm.xlu0 %2538, %v353
        %v2540 = vpop.permute.xlu0 %2539
        %vm2541 = vcmp.eq.s32.totalorder %v2540, %v401
        %v2542 = vsel %vm2541, 1, 0
        %v2543 = vcvt.s32.f32 %v2542
        %v2544 = vadd.f32 %v2537, %v2543
        %2545 = vset.pattern.permute.xlu0 25
        %2546 = vperm.xlu0 %2545, %v353
        %v2547 = vpop.permute.xlu0 %2546
        %vm2548 = vcmp.eq.s32.totalorder %v2547, %v401
        %v2549 = vsel %vm2548, 1, 0
        %v2550 = vcvt.s32.f32 %v2549
        %v2551 = vadd.f32 %v2544, %v2550
        %2552 = vset.pattern.permute.xlu0 26
        %2553 = vperm.xlu0 %2552, %v353
        %v2554 = vpop.permute.xlu0 %2553
        %vm2555 = vcmp.eq.s32.totalorder %v2554, %v401
        %v2556 = vsel %vm2555, 1, 0
        %v2557 = vcvt.s32.f32 %v2556
        %v2558 = vadd.f32 %v2551, %v2557
        %2559 = vset.pattern.permute.xlu0 27
        %2560 = vperm.xlu0 %2559, %v353
        %v2561 = vpop.permute.xlu0 %2560
        %vm2562 = vcmp.eq.s32.totalorder %v2561, %v401
        %v2563 = vsel %vm2562, 1, 0
        %v2564 = vcvt.s32.f32 %v2563
        %v2565 = vadd.f32 %v2558, %v2564
        %2566 = vset.pattern.permute.xlu0 28
        %2567 = vperm.xlu0 %2566, %v353
        %v2568 = vpop.permute.xlu0 %2567
        %vm2569 = vcmp.eq.s32.totalorder %v2568, %v401
        %v2570 = vsel %vm2569, 1, 0
        %v2571 = vcvt.s32.f32 %v2570
        %v2572 = vadd.f32 %v2565, %v2571
        %2573 = vset.pattern.permute.xlu0 29
        %2574 = vperm.xlu0 %2573, %v353
        %v2575 = vpop.permute.xlu0 %2574
        %vm2576 = vcmp.eq.s32.totalorder %v2575, %v401
        %v2577 = vsel %vm2576, 1, 0
        %v2578 = vcvt.s32.f32 %v2577
        %v2579 = vadd.f32 %v2572, %v2578
        %2580 = vset.pattern.permute.xlu0 30
        %2581 = vperm.xlu0 %2580, %v353
        %v2582 = vpop.permute.xlu0 %2581
        %vm2583 = vcmp.eq.s32.totalorder %v2582, %v401
        %v2584 = vsel %vm2583, 1, 0
        %v2585 = vcvt.s32.f32 %v2584
        %v2586 = vadd.f32 %v2579, %v2585
        %2587 = vset.pattern.permute.xlu0 31
        %2588 = vperm.xlu0 %2587, %v353
        %v2589 = vpop.permute.xlu0 %2588
        %vm2590 = vcmp.eq.s32.totalorder %v2589, %v401
        %v2591 = vsel %vm2590, 1, 0
        %v2592 = vcvt.s32.f32 %v2591
        %v2593 = vadd.f32 %v2586, %v2592
        %2594 = vset.pattern.permute.xlu0 32
        %2595 = vperm.xlu0 %2594, %v353
        %v2596 = vpop.permute.xlu0 %2595
        %vm2597 = vcmp.eq.s32.totalorder %v2596, %v401
        %v2598 = vsel %vm2597, 1, 0
        %v2599 = vcvt.s32.f32 %v2598
        %v2600 = vadd.f32 %v2593, %v2599
        %2601 = vset.pattern.permute.xlu0 33
        %2602 = vperm.xlu0 %2601, %v353
        %v2603 = vpop.permute.xlu0 %2602
        %vm2604 = vcmp.eq.s32.totalorder %v2603, %v401
        %v2605 = vsel %vm2604, 1, 0
        %v2606 = vcvt.s32.f32 %v2605
        %v2607 = vadd.f32 %v2600, %v2606
        %v2608 = vpack.c.bf16 %v2607, %v2607
        %2609 = vmatprep.subr.bf16.mxu0 0
        %2610 = vmatpush1.bf16.msra.mxu0 %v2074
        %2611 = vmatprep.subr.bf16.mxu0 0
        %2612 = vmatpush1.bf16.msra.mxu0 %v2073
        %2613 = vmatprep.subr.bf16.mxu0 0
        %2614 = vmatpush1.bf16.msra.mxu0 %v2072
        %2615 = vmatprep.subr.bf16.mxu0 0
        %2616 = vmatpush1.bf16.msra.mxu0 %v2071
        %2617 = vmatprep.subr.bf16.mxu0 0
        %2618 = vmatpush1.bf16.msra.mxu0 %v2070
        %2619 = vmatprep.subr.bf16.mxu0 0
        %2620 = vmatpush1.bf16.msra.mxu0 %v2069
        %2621 = vmatprep.subr.bf16.mxu0 0
        %2622 = vmatpush1.bf16.msra.mxu0 %v2068
        %2623 = vmatprep.subr.bf16.mxu0 0
        %2624 = vmatpush1.bf16.msra.mxu0 %v2067
        %2625 = vmatprep.subr.bf16.mxu0 0
        %2626 = vmatpush2.bf16.msra.mxu0 0
        %2627 = vmatprep.subr.bf16.mxu0 0
        %2628 = vmatpush2.bf16.msra.mxu0 0
        %2629 = vmatprep.subr.bf16.mxu0 0
        %2630 = vmatpush2.bf16.msra.mxu0 0
        %2631 = vmatprep.subr.bf16.mxu0 0
        %2632 = vmatpush2.bf16.msra.mxu0 0
        %2633 = vmatprep.subr.bf16.mxu0 0
        %2634 = vmatpush2.bf16.msra.mxu0 0
        %2635 = vmatprep.subr.bf16.mxu0 0
        %2636 = vmatpush2.bf16.msra.mxu0 0
        %2637 = vmatprep.subr.bf16.mxu0 0
        %2638 = vmatpush2.bf16.msra.mxu0 0
        %2639 = vmatprep.subr.bf16.mxu0 0
        %2640 = vmatpush2.bf16.msra.mxu0 0
        %2641 = vmatprep.mubr.bf16.mxu0 0
        %2642 = vmatmul.mubr.bf16.gmra.mxu0 %v2608
        %v2643 = vpop.f32.mrf.mxu0
        %v2644 = vadd.f32 0.0, %v2643
        %v2645 = vpop.f32.mrf.mxu0
        %v2646 = vpop.f32.mrf.mxu0
        %v2647 = vpop.f32.mrf.mxu0
        %2648 = vdwg.mxu0
        %2650 = vrot.lane.b32.xlu0 %v2644, 64
        %v2651 = vpop.permute.xlu0 %2650
        %v2653 = vmul.f32 %v1823, %v2651
        %2655 = vrot.lane.b32.xlu0 %v2653, 64
        %v2656 = vpop.permute.xlu0 %2655
        %v2658 = vsel %vm686, %v2656, 0.0
        %2659 = vadd.xlane.f32.xlu0 %v2658
        %v2660 = vpop.xlane.xlu0 %2659
        %vm2661 = vcmask 7168
        %v2662 = vsel %vm2661, %v2134, %v2397
        %vm2663 = vcmask 15360
        %v2664 = vsel %vm2663, %v2662, %v2660
        %vm2665 = vcmask 23552
        %v2666 = vsel %vm2665, %v2664, -inf
        %2667 = vmax.xlane.f32.xlu0 %v2666
        %v2668 = vpop.xlane.xlu0 %2667
        %v2669 = vsub.f32 %v2664, %v2668
        %v2670 = vmul.f32 %v2669, 1.442695
        %v2671 = vpow.pop %v2670
        %v2672 = vsel %vm2665, %v2671, 0.0
        %2673 = vadd.xlane.f32.xlu0 %v2672
        %v2674 = vpop.xlane.xlu0 %2673
        %v2675 = vrcp.pop %v2674
        %v2676 = vmul.f32 %v2671, %v2675
        %2677 = vst.msk [vmem:[%s350] sm:$0xff] %vm2665, %v2676
        %p2678 = scmp.lt.s32.totalorder %s23, 1
        %s2679 = scalar_select %p2678, %s23, 1
        %s2680 = smul.addr %s2679, 8
        %s2681 = scalar_lea.vmem %s8, %s2680
        // Predicated region
        $region65: #{tpu_custom_call.1} parent=51 // pred_check
          %p2682 = pneg %p214
        $region66: #{tpu_custom_call.1} parent=51 // pred_check_branch
          %2684 = sbr.rel (%p2682) target = $region68
        $region67: #{tpu_custom_call.1} parent=51 // pred_region
          _
        $region68: #{tpu_custom_call.1} parent=51 // pred_fallthru
          _
      $region52: #{tpu_custom_call.1} parent=5 // pred_fallthru
        _
      %p2685 = scmp.le.s32.totalorder 2, %s18
      // Predicated region
      $region69: #{tpu_custom_call.1} parent=5 // pred_check
        %p2686 = pneg %p2685
      $region70: #{tpu_custom_call.1} parent=5 // pred_check_branch
        %2688 = sbr.rel (%p2686) target = $region72
      $region71: #{tpu_custom_call.1} parent=5 // pred_region
        %s2689 = ssub.s32 %s18, 2
        // Predicated region
        $region73: #{tpu_custom_call.1} parent=71 // pred_check
          %p2690 = pneg %p220
        $region74: #{tpu_custom_call.1} parent=71 // pred_check_branch
          %2692 = sbr.rel (%p2690) target = $region76
        $region75: #{tpu_custom_call.1} parent=71 // pred_region
          %p2693 = scmp.lt.s32.totalorder %s24, 1
          %s2694 = scalar_select %p2693, %s24, 1
          %s2695 = smul.addr %s2694, 8
          %s2696 = scalar_lea.vmem %s8, %s2695
        $region76: #{tpu_custom_call.1} parent=71 // pred_fallthru
          _
      $region72: #{tpu_custom_call.1} parent=5 // pred_fallthru
        _
    $region6: #{tpu_custom_call.1} parent=1 // loop_footer
      %s22 = sadd.s32 1, %s18
    $region7: #{tpu_custom_call.1} parent=1 // loop_footer_branch
      %17 = sbr.rel target = $region3
    $region8: #{tpu_custom_call.1} parent=1 // loop_exit
      _
    %2697 = vsyncpa [#allocation3], 1
    %s2698 = scalar_lea.sflag [#allocation3], 1
    %2699 = vsyncpa %s2698, 1
    %2700 = vsyncpa [#allocation5], 1

</llo_original>
